<compile_context>
chip_gen: v7x
topology: tpu7x:2x2x1
jax: 0.10.0
libtpu: 0.0.40
codegen_flags: <defaults>
</compile_context>

<pallas_src>
import functools

import jax
import jax.numpy as jnp
from jax import lax
from jax.experimental import pallas as pl
from jax.experimental.pallas import tpu as pltpu

EPS = 1e-5  # nn.InstanceNorm2d default eps


def _compiler_params():
    # Per-generation VMEM budget: half of physical VMEM, never above 64 MiB
    # (v7x: 64 MiB physical -> 32 MiB; v5e/v6e: 128 MiB -> 64 MiB).
    cap = 64 * 1024 * 1024
    try:
        cap = int(getattr(pltpu.get_tpu_info(), "vmem_capacity_bytes", cap))
    except Exception:
        pass
    return pltpu.CompilerParams(
        dimension_semantics=("parallel",),            # batch axis -> megacore / 2 TCs
        vmem_limit_bytes=min(cap // 2, 64 * 1024 * 1024),
    )


def _instnorm_relu(v):
    """relu(instance_norm(v)) for one (H, W, C) f32 sample. Two-pass variance."""
    mu = jnp.mean(v, axis=(0, 1), keepdims=True)
    var = jnp.mean(jnp.square(v - mu), axis=(0, 1), keepdims=True)
    return jnp.maximum((v - mu) * lax.rsqrt(var + EPS), 0.0)


def _conv_same(v, w_ref, *, k, dil, h, w):
    """'same' KxK dilated conv of v:(H,W,C) f32 as ONE bf16 MXU matmul (f32 acc).

    w_ref holds the pre-packed (K*K*C, Cout) bf16 weight (tap-major rows).
    """
    c = v.shape[-1]
    cout = w_ref.shape[-1]
    p = dil * (k - 1) // 2
    vb = v.astype(jnp.bfloat16)                       # single cast of the activation
    if p:
        # Explicit zero halo, built in VMEM only (never written to HBM).
        zr = jnp.zeros((p, w, c), jnp.bfloat16)
        vb = jnp.concatenate([zr, vb, zr], axis=0)    # (H+2p, W, C)
        zc = jnp.zeros((h + 2 * p, p, c), jnp.bfloat16)
        vb = jnp.concatenate([zc, vb, zc], axis=1)    # (H+2p, W+2p, C)
    taps = [vb[i * dil:i * dil + h, j * dil:j * dil + w, :].reshape(h * w, c)
            for i in range(k) for j in range(k)]
    a = taps[0] if len(taps) == 1 else jnp.concatenate(taps, axis=-1)  # (H*W, K*K*C)
    out = jnp.dot(a, w_ref[...], preferred_element_type=jnp.float32)
    return out.reshape(h, w, cout)


def _block_kernel(x_ref, w1_ref, w2_ref, w3_ref, w4_ref, wo_ref, o_ref,
                  *, h, w, cin, cout):
    x = x_ref[...].reshape(h, w, cin).astype(jnp.float32)     # (H, W, Cin) f32

    # conv1(relu(bn1(x)))  and  conv_o(x)  share the single VMEM-resident x slab.
    y = _instnorm_relu(x)
    out = _conv_same(y, w1_ref, k=1, dil=1, h=h, w=w)         # conv1: 1x1, pad 0
    outx = _conv_same(x, wo_ref, k=1, dil=1, h=h, w=w)        # conv_o: 1x1 on raw x

    out = _conv_same(_instnorm_relu(out), w2_ref, k=3, dil=1, h=h, w=w)   # pad 1
    out = _conv_same(_instnorm_relu(out), w3_ref, k=3, dil=2, h=h, w=w)   # pad 2, dil 2
    out = outx + _conv_same(_instnorm_relu(out), w4_ref, k=3, dil=1, h=h, w=w)

    # torch.cat([x, out], channel) emitted as ONE lane-dense (H, W*(Cin+Cout)) store.
    res = jnp.concatenate([x, out], axis=-1)                  # (H, W, Cin+Cout) f32
    o_ref[...] = res.reshape(1, h, w * (cin + cout))


# ----------------------------------------------------------------------------
# Wrapper
# ----------------------------------------------------------------------------
def bottleneck_block_rs1(params, x_nchw):
    """Forward of BottleneckBlockrs1 (dropRate=0).  x: NCHW f32 -> NCHW f32."""
    x = jnp.transpose(x_nchw, (0, 2, 3, 1)).astype(jnp.float32)   # NHWC
    n, h, w, cin = x.shape
    cinter = params["conv2"].shape[-1]
    cout = params["conv_o"].shape[-1]

    # Rough per-sample VMEM working-set check (double-buffered in/out blocks,
    # padded activation and tap-concat operand of the widest conv, f32 temps).
    approx = (2 * h * w * cin * 4 + 2 * h * w * (cin + cout) * 4
              + (h + 4) * (w + 4) * cinter * 2 + h * w * 9 * cinter * 2
              + 2 * h * w * cinter * 4)
    assert approx < 32 * 1024 * 1024, (
        "per-sample working set too large for the fully-fused kernel; "
        "a row-tiled fallback is required")  # TODO(synk): row-tiled path

    weight_keys = ("conv1", "conv2", "conv3", "conv4", "conv_o")
    out_flat = pl.pallas_call(
        functools.partial(_block_kernel, h=h, w=w, cin=cin, cout=cout),
        grid=(n,),
        in_specs=[pl.BlockSpec((1, h, w, cin), lambda i: (i, 0, 0, 0))]
                 + [pl.BlockSpec(params[k].shape, lambda i: (0, 0))
                    for k in weight_keys],
        out_specs=pl.BlockSpec((1, h, w * (cin + cout)), lambda i: (i, 0, 0)),
        out_shape=jax.ShapeDtypeStruct((n, h, w * (cin + cout)), jnp.float32),
        compiler_params=_compiler_params(),
    )(x, *[params[k] for k in weight_keys])

    y = out_flat.reshape(n, h, w, cin + cout)
    return jnp.transpose(y, (0, 3, 1, 2))


# ----------------------------------------------------------------------------
# Parameters: packed once so the hot path sees (K*K*Cin, Cout) bf16 MXU operands.
# ----------------------------------------------------------------------------
def pack_conv_weight(w_pt):
    """PyTorch (Cout, Cin, kh, kw) f32 -> (kh*kw*Cin, Cout) bf16 (tap-major rows)."""
    co, ci, kh, kw = w_pt.shape
    return (jnp.transpose(w_pt, (2, 3, 1, 0)).reshape(kh * kw * ci, co)
            .astype(jnp.bfloat16))


def init_params(key, in_planes, out_planes):
    inter = out_planes * 3
    ks = jax.random.split(key, 5)
    raw = {
        "conv_o": 0.1 * jax.random.normal(ks[0], (out_planes, in_planes, 1, 1), jnp.float32),
        "conv1": 0.1 * jax.random.normal(ks[1], (inter, in_planes, 1, 1), jnp.float32),
        "conv2": 0.1 * jax.random.normal(ks[2], (inter, inter, 3, 3), jnp.float32),
        "conv3": 0.1 * jax.random.normal(ks[3], (inter, inter, 3, 3), jnp.float32),
        "conv4": 0.1 * jax.random.normal(ks[4], (out_planes, inter, 3, 3), jnp.float32),
    }
    packed = {k: pack_conv_weight(v) for k, v in raw.items()}
    return packed, raw


# ----------------------------------------------------------------------------
# Pure-JAX reference (identical bf16 MXU operands, f32 norm / accumulation)
# ----------------------------------------------------------------------------
def _ref_instnorm_relu(v):
    mu = jnp.mean(v, axis=(1, 2), keepdims=True)
    var = jnp.mean(jnp.square(v - mu), axis=(1, 2), keepdims=True)
    return jnp.maximum((v - mu) * lax.rsqrt(var + EPS), 0.0)


def _ref_conv(v, w_pt, dilation, pad):
    a = v.astype(jnp.bfloat16)                                     # mirror MXU operands
    wgt = jnp.transpose(w_pt, (2, 3, 1, 0)).astype(jnp.bfloat16)   # HWIO
    return lax.conv_general_dilated(
        a, wgt, window_strides=(1, 1), padding=[(pad, pad), (pad, pad)],
        rhs_dilation=(dilation, dilation),
        dimension_numbers=("NHWC", "HWIO", "NHWC"),
        preferred_element_type=jnp.float32)


def reference_forward(raw_w, x_nchw):
    x = jnp.transpose(x_nchw, (0, 2, 3, 1)).astype(jnp.float32)
    out = _ref_conv(_ref_instnorm_relu(x), raw_w["conv1"], 1, 0)
    out = _ref_conv(_ref_instnorm_relu(out), raw_w["conv2"], 1, 1)
    out = _ref_conv(_ref_instnorm_relu(out), raw_w["conv3"], 2, 2)
    outx = _ref_conv(x, raw_w["conv_o"], 1, 0)
    out = outx + _ref_conv(_ref_instnorm_relu(out), raw_w["conv4"], 1, 1)
    y = jnp.concatenate([x, out], axis=-1)
    return jnp.transpose(y, (0, 3, 1, 2))


if __name__ == "__main__":
    key = jax.random.PRNGKey(0)
    kx, kp = jax.random.split(key)

    N, H, W = 2, 16, 16
    in_planes, out_planes = 16, 16

    x = jax.random.normal(kx, (N, in_planes, H, W), jnp.float32)
    packed, raw = init_params(kp, in_planes, out_planes)

    fwd = jax.jit(bottleneck_block_rs1)
    y = fwd(packed, x)
    jax.block_until_ready(y)

    assert y.shape == (N, in_planes + out_planes, H, W), y.shape
    assert bool(jnp.all(jnp.isfinite(y)))

    # Kernel and reference use identical bf16 MXU operands, identical f32
    # InstanceNorm math, and f32 intermediates (nothing rounds through bf16 HBM),
    # so the remaining difference is f32 summation-order noise only.
    y_ref = reference_forward(raw, x)
    err = float(jnp.max(jnp.abs(y - y_ref)))
    assert err < 2e-2, f"max abs err vs reference = {err}"

    print("KERNEL_OK")
</pallas_src>

<mosaic_0001>
module attributes {stable_mosaic.version = 11 : i64} {
  func.func @_block_kernel(%arg0: i32, %arg1: memref<1x16x16x16xf32, #tpu.memory_space<vmem>>, %arg2: memref<16x48xbf16, #tpu.memory_space<vmem>>, %arg3: memref<432x48xbf16, #tpu.memory_space<vmem>>, %arg4: memref<432x48xbf16, #tpu.memory_space<vmem>>, %arg5: memref<432x16xbf16, #tpu.memory_space<vmem>>, %arg6: memref<16x16xbf16, #tpu.memory_space<vmem>>, %arg7: memref<1x16x512xf32, #tpu.memory_space<vmem>>) attributes {dimension_semantics = [#tpu.dimension_semantics<parallel>], iteration_bounds = array<i64: 2>, scalar_prefetch = 0 : i64, scratch_operands = 0 : i64, tpu.core_type = #tpu.core_type<tc>, window_params = [{transform_indices = @transform_0, window_bounds = array<i64: 1, 16, 16, 16>}, {pipeline_mode = #tpu.pipeline_mode<synchronous>, transform_indices = @transform_1, window_bounds = array<i64: 16, 48>}, {pipeline_mode = #tpu.pipeline_mode<synchronous>, transform_indices = @transform_2, window_bounds = array<i64: 432, 48>}, {pipeline_mode = #tpu.pipeline_mode<synchronous>, transform_indices = @transform_3, window_bounds = array<i64: 432, 48>}, {pipeline_mode = #tpu.pipeline_mode<synchronous>, transform_indices = @transform_4, window_bounds = array<i64: 432, 16>}, {pipeline_mode = #tpu.pipeline_mode<synchronous>, transform_indices = @transform_5, window_bounds = array<i64: 16, 16>}, {transform_indices = @transform_6, window_bounds = array<i64: 1, 16, 512>}]} {
    %c0 = arith.constant 0 : index
    %c0_0 = arith.constant 0 : index
    %c0_1 = arith.constant 0 : index
    %c0_2 = arith.constant 0 : index
    %0 = vector.load %arg1[%c0, %c0_0, %c0_1, %c0_2] : memref<1x16x16x16xf32, #tpu.memory_space<vmem>>, vector<1x16x16x16xf32>
    %1 = vector.shape_cast %0 : vector<1x16x16x16xf32> to vector<16x16x16xf32>
    %cst = arith.constant dense<0.000000e+00> : vector<16xf32>
    %2 = vector.multi_reduction <add>, %1, %cst [0, 1] : vector<16x16x16xf32> to vector<16xf32>
    %3 = vector.shape_cast %2 : vector<16xf32> to vector<1x1x16xf32>
    %cst_3 = arith.constant 2.560000e+02 : f32
    %4 = vector.broadcast %cst_3 : f32 to vector<1x1x16xf32>
    %5 = arith.divf %3, %4 : vector<1x1x16xf32>
    %6 = vector.broadcast %5 : vector<1x1x16xf32> to vector<16x16x16xf32>
    %7 = arith.subf %1, %6 : vector<16x16x16xf32>
    %8 = arith.mulf %7, %7 : vector<16x16x16xf32>
    %cst_4 = arith.constant dense<0.000000e+00> : vector<16xf32>
    %9 = vector.multi_reduction <add>, %8, %cst_4 [0, 1] : vector<16x16x16xf32> to vector<16xf32>
    %10 = vector.shape_cast %9 : vector<16xf32> to vector<1x1x16xf32>
    %cst_5 = arith.constant 2.560000e+02 : f32
    %11 = vector.broadcast %cst_5 : f32 to vector<1x1x16xf32>
    %12 = arith.divf %10, %11 : vector<1x1x16xf32>
    %13 = vector.broadcast %5 : vector<1x1x16xf32> to vector<16x16x16xf32>
    %14 = arith.subf %1, %13 : vector<16x16x16xf32>
    %cst_6 = arith.constant 9.99999974E-6 : f32
    %15 = vector.broadcast %cst_6 : f32 to vector<1x1x16xf32>
    %16 = arith.addf %12, %15 : vector<1x1x16xf32>
    %17 = math.rsqrt %16 : vector<1x1x16xf32>
    %18 = vector.broadcast %17 : vector<1x1x16xf32> to vector<16x16x16xf32>
    %19 = arith.mulf %14, %18 : vector<16x16x16xf32>
    %cst_7 = arith.constant 0.000000e+00 : f32
    %20 = vector.broadcast %cst_7 : f32 to vector<16x16x16xf32>
    %21 = arith.maximumf %19, %20 : vector<16x16x16xf32>
    %22 = arith.truncf %21 : vector<16x16x16xf32> to vector<16x16x16xbf16>
    %23 = vector.shape_cast %22 : vector<16x16x16xbf16> to vector<256x16xbf16>
    %c0_8 = arith.constant 0 : index
    %c0_9 = arith.constant 0 : index
    %24 = vector.load %arg2[%c0_8, %c0_9] : memref<16x48xbf16, #tpu.memory_space<vmem>>, vector<16x48xbf16>
    %cst_10 = arith.constant dense<0.000000e+00> : vector<256x48xf32>
    %25 = tpu.matmul %23, %24, %cst_10 {dimension_numbers = #tpu.dot_dimension_numbers<[1], [0], [0], [1], [0, 0, 1, 1], [], []>} : vector<256x16xbf16>, vector<16x48xbf16>, vector<256x48xf32> -> vector<256x48xf32>
    %26 = vector.shape_cast %25 : vector<256x48xf32> to vector<16x16x48xf32>
    %27 = arith.truncf %1 : vector<16x16x16xf32> to vector<16x16x16xbf16>
    %28 = vector.shape_cast %27 : vector<16x16x16xbf16> to vector<256x16xbf16>
    %c0_11 = arith.constant 0 : index
    %c0_12 = arith.constant 0 : index
    %29 = vector.load %arg6[%c0_11, %c0_12] : memref<16x16xbf16, #tpu.memory_space<vmem>>, vector<16x16xbf16>
    %cst_13 = arith.constant dense<0.000000e+00> : vector<256x16xf32>
    %30 = tpu.matmul %28, %29, %cst_13 {dimension_numbers = #tpu.dot_dimension_numbers<[1], [0], [0], [1], [0, 0, 1, 1], [], []>} : vector<256x16xbf16>, vector<16x16xbf16>, vector<256x16xf32> -> vector<256x16xf32>
    %31 = vector.shape_cast %30 : vector<256x16xf32> to vector<16x16x16xf32>
    %cst_14 = arith.constant dense<0.000000e+00> : vector<48xf32>
    %32 = vector.multi_reduction <add>, %26, %cst_14 [0, 1] : vector<16x16x48xf32> to vector<48xf32>
    %33 = vector.shape_cast %32 : vector<48xf32> to vector<1x1x48xf32>
    %cst_15 = arith.constant 2.560000e+02 : f32
    %34 = vector.broadcast %cst_15 : f32 to vector<1x1x48xf32>
    %35 = arith.divf %33, %34 : vector<1x1x48xf32>
    %36 = vector.broadcast %35 : vector<1x1x48xf32> to vector<16x16x48xf32>
    %37 = arith.subf %26, %36 : vector<16x16x48xf32>
    %38 = arith.mulf %37, %37 : vector<16x16x48xf32>
    %cst_16 = arith.constant dense<0.000000e+00> : vector<48xf32>
    %39 = vector.multi_reduction <add>, %38, %cst_16 [0, 1] : vector<16x16x48xf32> to vector<48xf32>
    %40 = vector.shape_cast %39 : vector<48xf32> to vector<1x1x48xf32>
    %cst_17 = arith.constant 2.560000e+02 : f32
    %41 = vector.broadcast %cst_17 : f32 to vector<1x1x48xf32>
    %42 = arith.divf %40, %41 : vector<1x1x48xf32>
    %43 = vector.broadcast %35 : vector<1x1x48xf32> to vector<16x16x48xf32>
    %44 = arith.subf %26, %43 : vector<16x16x48xf32>
    %cst_18 = arith.constant 9.99999974E-6 : f32
    %45 = vector.broadcast %cst_18 : f32 to vector<1x1x48xf32>
    %46 = arith.addf %42, %45 : vector<1x1x48xf32>
    %47 = math.rsqrt %46 : vector<1x1x48xf32>
    %48 = vector.broadcast %47 : vector<1x1x48xf32> to vector<16x16x48xf32>
    %49 = arith.mulf %44, %48 : vector<16x16x48xf32>
    %cst_19 = arith.constant 0.000000e+00 : f32
    %50 = vector.broadcast %cst_19 : f32 to vector<16x16x48xf32>
    %51 = arith.maximumf %49, %50 : vector<16x16x48xf32>
    %52 = arith.truncf %51 : vector<16x16x48xf32> to vector<16x16x48xbf16>
    %cst_20 = arith.constant 0.000000e+00 : bf16
    %53 = vector.broadcast %cst_20 : bf16 to vector<1x16x48xbf16>
    %54 = tpu.concatenate %53, %52, %53 in 0 : vector<1x16x48xbf16>, vector<16x16x48xbf16>, vector<1x16x48xbf16> -> vector<18x16x48xbf16>
    %cst_21 = arith.constant 0.000000e+00 : bf16
    %55 = vector.broadcast %cst_21 : bf16 to vector<18x1x48xbf16>
    %56 = tpu.concatenate %55, %54, %55 in 1 : vector<18x1x48xbf16>, vector<18x16x48xbf16>, vector<18x1x48xbf16> -> vector<18x18x48xbf16>
    %57 = vector.extract_strided_slice %56 {offsets = [0, 0, 0], sizes = [16, 16, 48], strides = [1, 1, 1]} : vector<18x18x48xbf16> to vector<16x16x48xbf16>
    %58 = vector.shape_cast %57 : vector<16x16x48xbf16> to vector<256x48xbf16>
    %59 = vector.extract_strided_slice %56 {offsets = [0, 1, 0], sizes = [16, 16, 48], strides = [1, 1, 1]} : vector<18x18x48xbf16> to vector<16x16x48xbf16>
    %60 = vector.shape_cast %59 : vector<16x16x48xbf16> to vector<256x48xbf16>
    %61 = vector.extract_strided_slice %56 {offsets = [0, 2, 0], sizes = [16, 16, 48], strides = [1, 1, 1]} : vector<18x18x48xbf16> to vector<16x16x48xbf16>
    %62 = vector.shape_cast %61 : vector<16x16x48xbf16> to vector<256x48xbf16>
    %63 = vector.extract_strided_slice %56 {offsets = [1, 0, 0], sizes = [16, 16, 48], strides = [1, 1, 1]} : vector<18x18x48xbf16> to vector<16x16x48xbf16>
    %64 = vector.shape_cast %63 : vector<16x16x48xbf16> to vector<256x48xbf16>
    %65 = vector.extract_strided_slice %56 {offsets = [1, 1, 0], sizes = [16, 16, 48], strides = [1, 1, 1]} : vector<18x18x48xbf16> to vector<16x16x48xbf16>
    %66 = vector.shape_cast %65 : vector<16x16x48xbf16> to vector<256x48xbf16>
    %67 = vector.extract_strided_slice %56 {offsets = [1, 2, 0], sizes = [16, 16, 48], strides = [1, 1, 1]} : vector<18x18x48xbf16> to vector<16x16x48xbf16>
    %68 = vector.shape_cast %67 : vector<16x16x48xbf16> to vector<256x48xbf16>
    %69 = vector.extract_strided_slice %56 {offsets = [2, 0, 0], sizes = [16, 16, 48], strides = [1, 1, 1]} : vector<18x18x48xbf16> to vector<16x16x48xbf16>
    %70 = vector.shape_cast %69 : vector<16x16x48xbf16> to vector<256x48xbf16>
    %71 = vector.extract_strided_slice %56 {offsets = [2, 1, 0], sizes = [16, 16, 48], strides = [1, 1, 1]} : vector<18x18x48xbf16> to vector<16x16x48xbf16>
    %72 = vector.shape_cast %71 : vector<16x16x48xbf16> to vector<256x48xbf16>
    %73 = vector.extract_strided_slice %56 {offsets = [2, 2, 0], sizes = [16, 16, 48], strides = [1, 1, 1]} : vector<18x18x48xbf16> to vector<16x16x48xbf16>
    %74 = vector.shape_cast %73 : vector<16x16x48xbf16> to vector<256x48xbf16>
    %75 = tpu.concatenate %58, %60, %62, %64, %66, %68, %70, %72, %74 in 1 : vector<256x48xbf16>, vector<256x48xbf16>, vector<256x48xbf16>, vector<256x48xbf16>, vector<256x48xbf16>, vector<256x48xbf16>, vector<256x48xbf16>, vector<256x48xbf16>, vector<256x48xbf16> -> vector<256x432xbf16>
    %c0_22 = arith.constant 0 : index
    %c0_23 = arith.constant 0 : index
    %76 = vector.load %arg3[%c0_22, %c0_23] : memref<432x48xbf16, #tpu.memory_space<vmem>>, vector<432x48xbf16>
    %cst_24 = arith.constant dense<0.000000e+00> : vector<256x48xf32>
    %77 = tpu.matmul %75, %76, %cst_24 {dimension_numbers = #tpu.dot_dimension_numbers<[1], [0], [0], [1], [0, 0, 1, 1], [], []>} : vector<256x432xbf16>, vector<432x48xbf16>, vector<256x48xf32> -> vector<256x48xf32>
    %78 = vector.shape_cast %77 : vector<256x48xf32> to vector<16x16x48xf32>
    %cst_25 = arith.constant dense<0.000000e+00> : vector<48xf32>
    %79 = vector.multi_reduction <add>, %78, %cst_25 [0, 1] : vector<16x16x48xf32> to vector<48xf32>
    %80 = vector.shape_cast %79 : vector<48xf32> to vector<1x1x48xf32>
    %cst_26 = arith.constant 2.560000e+02 : f32
    %81 = vector.broadcast %cst_26 : f32 to vector<1x1x48xf32>
    %82 = arith.divf %80, %81 : vector<1x1x48xf32>
    %83 = vector.broadcast %82 : vector<1x1x48xf32> to vector<16x16x48xf32>
    %84 = arith.subf %78, %83 : vector<16x16x48xf32>
    %85 = arith.mulf %84, %84 : vector<16x16x48xf32>
    %cst_27 = arith.constant dense<0.000000e+00> : vector<48xf32>
    %86 = vector.multi_reduction <add>, %85, %cst_27 [0, 1] : vector<16x16x48xf32> to vector<48xf32>
    %87 = vector.shape_cast %86 : vector<48xf32> to vector<1x1x48xf32>
    %cst_28 = arith.constant 2.560000e+02 : f32
    %88 = vector.broadcast %cst_28 : f32 to vector<1x1x48xf32>
    %89 = arith.divf %87, %88 : vector<1x1x48xf32>
    %90 = vector.broadcast %82 : vector<1x1x48xf32> to vector<16x16x48xf32>
    %91 = arith.subf %78, %90 : vector<16x16x48xf32>
    %cst_29 = arith.constant 9.99999974E-6 : f32
    %92 = vector.broadcast %cst_29 : f32 to vector<1x1x48xf32>
    %93 = arith.addf %89, %92 : vector<1x1x48xf32>
    %94 = math.rsqrt %93 : vector<1x1x48xf32>
    %95 = vector.broadcast %94 : vector<1x1x48xf32> to vector<16x16x48xf32>
    %96 = arith.mulf %91, %95 : vector<16x16x48xf32>
    %cst_30 = arith.constant 0.000000e+00 : f32
    %97 = vector.broadcast %cst_30 : f32 to vector<16x16x48xf32>
    %98 = arith.maximumf %96, %97 : vector<16x16x48xf32>
    %99 = arith.truncf %98 : vector<16x16x48xf32> to vector<16x16x48xbf16>
    %cst_31 = arith.constant 0.000000e+00 : bf16
    %100 = vector.broadcast %cst_31 : bf16 to vector<2x16x48xbf16>
    %101 = tpu.concatenate %100, %99, %100 in 0 : vector<2x16x48xbf16>, vector<16x16x48xbf16>, vector<2x16x48xbf16> -> vector<20x16x48xbf16>
    %cst_32 = arith.constant 0.000000e+00 : bf16
    %102 = vector.broadcast %cst_32 : bf16 to vector<20x2x48xbf16>
    %103 = tpu.concatenate %102, %101, %102 in 1 : vector<20x2x48xbf16>, vector<20x16x48xbf16>, vector<20x2x48xbf16> -> vector<20x20x48xbf16>
    %104 = vector.extract_strided_slice %103 {offsets = [0, 0, 0], sizes = [16, 16, 48], strides = [1, 1, 1]} : vector<20x20x48xbf16> to vector<16x16x48xbf16>
    %105 = vector.shape_cast %104 : vector<16x16x48xbf16> to vector<256x48xbf16>
    %106 = vector.extract_strided_slice %103 {offsets = [0, 2, 0], sizes = [16, 16, 48], strides = [1, 1, 1]} : vector<20x20x48xbf16> to vector<16x16x48xbf16>
    %107 = vector.shape_cast %106 : vector<16x16x48xbf16> to vector<256x48xbf16>
    %108 = vector.extract_strided_slice %103 {offsets = [0, 4, 0], sizes = [16, 16, 48], strides = [1, 1, 1]} : vector<20x20x48xbf16> to vector<16x16x48xbf16>
    %109 = vector.shape_cast %108 : vector<16x16x48xbf16> to vector<256x48xbf16>
    %110 = vector.extract_strided_slice %103 {offsets = [2, 0, 0], sizes = [16, 16, 48], strides = [1, 1, 1]} : vector<20x20x48xbf16> to vector<16x16x48xbf16>
    %111 = vector.shape_cast %110 : vector<16x16x48xbf16> to vector<256x48xbf16>
    %112 = vector.extract_strided_slice %103 {offsets = [2, 2, 0], sizes = [16, 16, 48], strides = [1, 1, 1]} : vector<20x20x48xbf16> to vector<16x16x48xbf16>
    %113 = vector.shape_cast %112 : vector<16x16x48xbf16> to vector<256x48xbf16>
    %114 = vector.extract_strided_slice %103 {offsets = [2, 4, 0], sizes = [16, 16, 48], strides = [1, 1, 1]} : vector<20x20x48xbf16> to vector<16x16x48xbf16>
    %115 = vector.shape_cast %114 : vector<16x16x48xbf16> to vector<256x48xbf16>
    %116 = vector.extract_strided_slice %103 {offsets = [4, 0, 0], sizes = [16, 16, 48], strides = [1, 1, 1]} : vector<20x20x48xbf16> to vector<16x16x48xbf16>
    %117 = vector.shape_cast %116 : vector<16x16x48xbf16> to vector<256x48xbf16>
    %118 = vector.extract_strided_slice %103 {offsets = [4, 2, 0], sizes = [16, 16, 48], strides = [1, 1, 1]} : vector<20x20x48xbf16> to vector<16x16x48xbf16>
    %119 = vector.shape_cast %118 : vector<16x16x48xbf16> to vector<256x48xbf16>
    %120 = vector.extract_strided_slice %103 {offsets = [4, 4, 0], sizes = [16, 16, 48], strides = [1, 1, 1]} : vector<20x20x48xbf16> to vector<16x16x48xbf16>
    %121 = vector.shape_cast %120 : vector<16x16x48xbf16> to vector<256x48xbf16>
    %122 = tpu.concatenate %105, %107, %109, %111, %113, %115, %117, %119, %121 in 1 : vector<256x48xbf16>, vector<256x48xbf16>, vector<256x48xbf16>, vector<256x48xbf16>, vector<256x48xbf16>, vector<256x48xbf16>, vector<256x48xbf16>, vector<256x48xbf16>, vector<256x48xbf16> -> vector<256x432xbf16>
    %c0_33 = arith.constant 0 : index
    %c0_34 = arith.constant 0 : index
    %123 = vector.load %arg4[%c0_33, %c0_34] : memref<432x48xbf16, #tpu.memory_space<vmem>>, vector<432x48xbf16>
    %cst_35 = arith.constant dense<0.000000e+00> : vector<256x48xf32>
    %124 = tpu.matmul %122, %123, %cst_35 {dimension_numbers = #tpu.dot_dimension_numbers<[1], [0], [0], [1], [0, 0, 1, 1], [], []>} : vector<256x432xbf16>, vector<432x48xbf16>, vector<256x48xf32> -> vector<256x48xf32>
    %125 = vector.shape_cast %124 : vector<256x48xf32> to vector<16x16x48xf32>
    %cst_36 = arith.constant dense<0.000000e+00> : vector<48xf32>
    %126 = vector.multi_reduction <add>, %125, %cst_36 [0, 1] : vector<16x16x48xf32> to vector<48xf32>
    %127 = vector.shape_cast %126 : vector<48xf32> to vector<1x1x48xf32>
    %cst_37 = arith.constant 2.560000e+02 : f32
    %128 = vector.broadcast %cst_37 : f32 to vector<1x1x48xf32>
    %129 = arith.divf %127, %128 : vector<1x1x48xf32>
    %130 = vector.broadcast %129 : vector<1x1x48xf32> to vector<16x16x48xf32>
    %131 = arith.subf %125, %130 : vector<16x16x48xf32>
    %132 = arith.mulf %131, %131 : vector<16x16x48xf32>
    %cst_38 = arith.constant dense<0.000000e+00> : vector<48xf32>
    %133 = vector.multi_reduction <add>, %132, %cst_38 [0, 1] : vector<16x16x48xf32> to vector<48xf32>
    %134 = vector.shape_cast %133 : vector<48xf32> to vector<1x1x48xf32>
    %cst_39 = arith.constant 2.560000e+02 : f32
    %135 = vector.broadcast %cst_39 : f32 to vector<1x1x48xf32>
    %136 = arith.divf %134, %135 : vector<1x1x48xf32>
    %137 = vector.broadcast %129 : vector<1x1x48xf32> to vector<16x16x48xf32>
    %138 = arith.subf %125, %137 : vector<16x16x48xf32>
    %cst_40 = arith.constant 9.99999974E-6 : f32
    %139 = vector.broadcast %cst_40 : f32 to vector<1x1x48xf32>
    %140 = arith.addf %136, %139 : vector<1x1x48xf32>
    %141 = math.rsqrt %140 : vector<1x1x48xf32>
    %142 = vector.broadcast %141 : vector<1x1x48xf32> to vector<16x16x48xf32>
    %143 = arith.mulf %138, %142 : vector<16x16x48xf32>
    %cst_41 = arith.constant 0.000000e+00 : f32
    %144 = vector.broadcast %cst_41 : f32 to vector<16x16x48xf32>
    %145 = arith.maximumf %143, %144 : vector<16x16x48xf32>
    %146 = arith.truncf %145 : vector<16x16x48xf32> to vector<16x16x48xbf16>
    %cst_42 = arith.constant 0.000000e+00 : bf16
    %147 = vector.broadcast %cst_42 : bf16 to vector<1x16x48xbf16>
    %148 = tpu.concatenate %147, %146, %147 in 0 : vector<1x16x48xbf16>, vector<16x16x48xbf16>, vector<1x16x48xbf16> -> vector<18x16x48xbf16>
    %cst_43 = arith.constant 0.000000e+00 : bf16
    %149 = vector.broadcast %cst_43 : bf16 to vector<18x1x48xbf16>
    %150 = tpu.concatenate %149, %148, %149 in 1 : vector<18x1x48xbf16>, vector<18x16x48xbf16>, vector<18x1x48xbf16> -> vector<18x18x48xbf16>
    %151 = vector.extract_strided_slice %150 {offsets = [0, 0, 0], sizes = [16, 16, 48], strides = [1, 1, 1]} : vector<18x18x48xbf16> to vector<16x16x48xbf16>
    %152 = vector.shape_cast %151 : vector<16x16x48xbf16> to vector<256x48xbf16>
    %153 = vector.extract_strided_slice %150 {offsets = [0, 1, 0], sizes = [16, 16, 48], strides = [1, 1, 1]} : vector<18x18x48xbf16> to vector<16x16x48xbf16>
    %154 = vector.shape_cast %153 : vector<16x16x48xbf16> to vector<256x48xbf16>
    %155 = vector.extract_strided_slice %150 {offsets = [0, 2, 0], sizes = [16, 16, 48], strides = [1, 1, 1]} : vector<18x18x48xbf16> to vector<16x16x48xbf16>
    %156 = vector.shape_cast %155 : vector<16x16x48xbf16> to vector<256x48xbf16>
    %157 = vector.extract_strided_slice %150 {offsets = [1, 0, 0], sizes = [16, 16, 48], strides = [1, 1, 1]} : vector<18x18x48xbf16> to vector<16x16x48xbf16>
    %158 = vector.shape_cast %157 : vector<16x16x48xbf16> to vector<256x48xbf16>
    %159 = vector.extract_strided_slice %150 {offsets = [1, 1, 0], sizes = [16, 16, 48], strides = [1, 1, 1]} : vector<18x18x48xbf16> to vector<16x16x48xbf16>
    %160 = vector.shape_cast %159 : vector<16x16x48xbf16> to vector<256x48xbf16>
    %161 = vector.extract_strided_slice %150 {offsets = [1, 2, 0], sizes = [16, 16, 48], strides = [1, 1, 1]} : vector<18x18x48xbf16> to vector<16x16x48xbf16>
    %162 = vector.shape_cast %161 : vector<16x16x48xbf16> to vector<256x48xbf16>
    %163 = vector.extract_strided_slice %150 {offsets = [2, 0, 0], sizes = [16, 16, 48], strides = [1, 1, 1]} : vector<18x18x48xbf16> to vector<16x16x48xbf16>
    %164 = vector.shape_cast %163 : vector<16x16x48xbf16> to vector<256x48xbf16>
    %165 = vector.extract_strided_slice %150 {offsets = [2, 1, 0], sizes = [16, 16, 48], strides = [1, 1, 1]} : vector<18x18x48xbf16> to vector<16x16x48xbf16>
    %166 = vector.shape_cast %165 : vector<16x16x48xbf16> to vector<256x48xbf16>
    %167 = vector.extract_strided_slice %150 {offsets = [2, 2, 0], sizes = [16, 16, 48], strides = [1, 1, 1]} : vector<18x18x48xbf16> to vector<16x16x48xbf16>
    %168 = vector.shape_cast %167 : vector<16x16x48xbf16> to vector<256x48xbf16>
    %169 = tpu.concatenate %152, %154, %156, %158, %160, %162, %164, %166, %168 in 1 : vector<256x48xbf16>, vector<256x48xbf16>, vector<256x48xbf16>, vector<256x48xbf16>, vector<256x48xbf16>, vector<256x48xbf16>, vector<256x48xbf16>, vector<256x48xbf16>, vector<256x48xbf16> -> vector<256x432xbf16>
    %c0_44 = arith.constant 0 : index
    %c0_45 = arith.constant 0 : index
    %170 = vector.load %arg5[%c0_44, %c0_45] : memref<432x16xbf16, #tpu.memory_space<vmem>>, vector<432x16xbf16>
    %cst_46 = arith.constant dense<0.000000e+00> : vector<256x16xf32>
    %171 = tpu.matmul %169, %170, %cst_46 {dimension_numbers = #tpu.dot_dimension_numbers<[1], [0], [0], [1], [0, 0, 1, 1], [], []>} : vector<256x432xbf16>, vector<432x16xbf16>, vector<256x16xf32> -> vector<256x16xf32>
    %172 = vector.shape_cast %171 : vector<256x16xf32> to vector<16x16x16xf32>
    %173 = arith.addf %31, %172 : vector<16x16x16xf32>
    %174 = tpu.concatenate %1, %173 in 2 : vector<16x16x16xf32>, vector<16x16x16xf32> -> vector<16x16x32xf32>
    %175 = vector.shape_cast %174 : vector<16x16x32xf32> to vector<1x16x512xf32>
    %c0_47 = arith.constant 0 : index
    %c0_48 = arith.constant 0 : index
    %c0_49 = arith.constant 0 : index
    %176 = vector.load %arg7[%c0_47, %c0_48, %c0_49] : memref<1x16x512xf32, #tpu.memory_space<vmem>>, vector<1x16x512xf32>
    tpu.vector_store %arg7[%c0_47, %c0_48, %c0_49], %175 {strides = array<i32>} : memref<1x16x512xf32, #tpu.memory_space<vmem>>, vector<1x16x512xf32>,
    return
  }
  func.func @transform_0(%arg0: i32) -> (i32, i32, i32, i32) {
    %c0_i32 = arith.constant 0 : i32
    %c0_i32_0 = arith.constant 0 : i32
    %c0_i32_1 = arith.constant 0 : i32
    %c0_i32_2 = arith.constant 0 : i32
    return %arg0, %c0_i32, %c0_i32_0, %c0_i32_1 : i32, i32, i32, i32
  }
  func.func @transform_1(%arg0: i32) -> (i32, i32) {
    %c0_i32 = arith.constant 0 : i32
    %c0_i32_0 = arith.constant 0 : i32
    %c0_i32_1 = arith.constant 0 : i32
    return %c0_i32, %c0_i32_0 : i32, i32
  }
  func.func @transform_2(%arg0: i32) -> (i32, i32) {
    %c0_i32 = arith.constant 0 : i32
    %c0_i32_0 = arith.constant 0 : i32
    %c0_i32_1 = arith.constant 0 : i32
    return %c0_i32, %c0_i32_0 : i32, i32
  }
  func.func @transform_3(%arg0: i32) -> (i32, i32) {
    %c0_i32 = arith.constant 0 : i32
    %c0_i32_0 = arith.constant 0 : i32
    %c0_i32_1 = arith.constant 0 : i32
    return %c0_i32, %c0_i32_0 : i32, i32
  }
  func.func @transform_4(%arg0: i32) -> (i32, i32) {
    %c0_i32 = arith.constant 0 : i32
    %c0_i32_0 = arith.constant 0 : i32
    %c0_i32_1 = arith.constant 0 : i32
    return %c0_i32, %c0_i32_0 : i32, i32
  }
  func.func @transform_5(%arg0: i32) -> (i32, i32) {
    %c0_i32 = arith.constant 0 : i32
    %c0_i32_0 = arith.constant 0 : i32
    %c0_i32_1 = arith.constant 0 : i32
    return %c0_i32, %c0_i32_0 : i32, i32
  }
  func.func @transform_6(%arg0: i32) -> (i32, i32, i32) {
    %c0_i32 = arith.constant 0 : i32
    %c0_i32_0 = arith.constant 0 : i32
    %c0_i32_1 = arith.constant 0 : i32
    return %arg0, %c0_i32, %c0_i32_0 : i32, i32, i32
  }
}

</mosaic_0001>

<llo_original>
// kernel: bottleneck_block_rs1.1
$region0: #{bottleneck_block_rs1.1}
  #allocation0 [shape = 'u32[]', space=smem, size = 0x4, offset = 0x4, fixed_abs, tag = 'smem constant byte address 0x4 - core index']
  #allocation1 [shape = 'u32[144,128]{1,0:T(1,128)}', space=vmem, size = 0x12000, scoped, tag = 'internal scratch']
  %s0 = inlined_call_operand.vmem [shape: f32[2,16,16,16], index: 0, kind: input, shape index: {}]
  %s1 = inlined_call_operand.vmem [shape: bf16[16,48], index: 1, kind: input, shape index: {}]
  %s2 = inlined_call_operand.vmem [shape: bf16[432,48], index: 2, kind: input, shape index: {}]
  %s3 = inlined_call_operand.vmem [shape: bf16[432,48], index: 3, kind: input, shape index: {}]
  %s4 = inlined_call_operand.vmem [shape: bf16[432,16], index: 4, kind: input, shape index: {}]
  %s5 = inlined_call_operand.vmem [shape: bf16[16,16], index: 5, kind: input, shape index: {}]
  %s6 = inlined_call_operand.vmem [shape: f32[2,16,512], index: 6, kind: output, shape index: {}]
  %s7 = sld [smem:[#allocation0]]
  $region57: #{bottleneck_block_rs1.1} parent=0
    _
  %s9 = ssub.s32 1, %s7
  %s10 = scalar_select 0, %s9, %s7
  loop: start=0, step=1, limit=4
  $region2: #{bottleneck_block_rs1.1} parent=0 // loop_pre_header
    _
  $region3: #{bottleneck_block_rs1.1} parent=0 // loop_header
    %s12 = sphi 0, %s16
    %p13 = scmp.ge.s32.totalorder %s12, 4
    %s22 = sphi 0, %s24
    %s25 = sphi 0, %s22
    %s26 = sphi 0, %s25
    %s42 = sphi 0, %s26
    %s46 = sphi 0, %s46
    %s48 = sphi 0, %s46
    %s49 = sphi 0, %s48
    %s63 = sphi 0, %s49
    %s67 = sphi 0, %s67
    %s69 = sphi 0, %s67
    %s70 = sphi 0, %s69
    %s84 = sphi 0, %s70
    %s88 = sphi 0, %s88
    %s90 = sphi 0, %s88
    %s91 = sphi 0, %s90
    %s105 = sphi 0, %s91
    %s109 = sphi 0, %s109
    %s111 = sphi 0, %s109
    %s112 = sphi 0, %s111
    %s126 = sphi 0, %s112
    %s130 = sphi 0, %s130
    %s132 = sphi 0, %s130
    %s133 = sphi 0, %s132
    %s147 = sphi 0, %s133
    %s153 = sphi 0, %s155
    %s156 = sphi 0, %s153
    %s157 = sphi 0, %s156
    %s173 = sphi 0, %s157
  $region4: #{bottleneck_block_rs1.1} parent=0 // loop_header_branch
    %15 = sbr.rel (%p13) target = $region8
  $region5: #{bottleneck_block_rs1.1} parent=0 // loop_body
    %s17 = ssub.s32 %s12, 1
    %s18 = ssub.s32 %s12, 2
    %s19 = sadd.s32 %s12, 1
    %s20 = ssub.s32 %s12, %s19
    %p21 = scmp.eq.s32.totalorder %s20, 0
    %s23 = sadd.s32 %s22, 1
    %s24 = scalar_select %p21, %s22, %s23
    %p27 = pneg %p21
    %p28 = scmp.eq.s32.totalorder %s12, 1
    %p29 = por %p27, %p28
    %p30 = scmp.ne.s32.totalorder %s22, %s25
    %p31 = scmp.eq.s32.totalorder %s12, 0
    %p32 = por %p30, %p31
    %p33 = scmp.ne.s32.totalorder %s22, %s25
    %p34 = scmp.eq.s32.totalorder %s17, 1
    %p35 = por %p33, %p34
    %p36 = scmp.ne.s32.totalorder %s25, %s26
    %p37 = scmp.eq.s32.totalorder %s17, 0
    %p38 = por %p36, %p37
    %p39 = scmp.ne.s32.totalorder %s25, %s26
    %p40 = scmp.eq.s32.totalorder %s18, 1
    %p41 = por %p39, %p40
    %p43 = scmp.ne.s32.totalorder %s26, %s42
    %p44 = scmp.eq.s32.totalorder %s18, 0
    %p45 = por %p43, %p44
    %s47 = sadd.s32 %s46, 1
    %p50 = scmp.eq.s32.totalorder %s12, 1
    %p51 = scmp.ne.s32.totalorder %s46, %s48
    %p52 = scmp.eq.s32.totalorder %s12, 0
    %p53 = por %p51, %p52
    %p54 = scmp.ne.s32.totalorder %s46, %s48
    %p55 = scmp.eq.s32.totalorder %s17, 1
    %p56 = por %p54, %p55
    %p57 = scmp.ne.s32.totalorder %s48, %s49
    %p58 = scmp.eq.s32.totalorder %s17, 0
    %p59 = por %p57, %p58
    %p60 = scmp.ne.s32.totalorder %s48, %s49
    %p61 = scmp.eq.s32.totalorder %s18, 1
    %p62 = por %p60, %p61
    %p64 = scmp.ne.s32.totalorder %s49, %s63
    %p65 = scmp.eq.s32.totalorder %s18, 0
    %p66 = por %p64, %p65
    %s68 = sadd.s32 %s67, 1
    %p71 = scmp.eq.s32.totalorder %s12, 1
    %p72 = scmp.ne.s32.totalorder %s67, %s69
    %p73 = scmp.eq.s32.totalorder %s12, 0
    %p74 = por %p72, %p73
    %p75 = scmp.ne.s32.totalorder %s67, %s69
    %p76 = scmp.eq.s32.totalorder %s17, 1
    %p77 = por %p75, %p76
    %p78 = scmp.ne.s32.totalorder %s69, %s70
    %p79 = scmp.eq.s32.totalorder %s17, 0
    %p80 = por %p78, %p79
    %p81 = scmp.ne.s32.totalorder %s69, %s70
    %p82 = scmp.eq.s32.totalorder %s18, 1
    %p83 = por %p81, %p82
    %p85 = scmp.ne.s32.totalorder %s70, %s84
    %p86 = scmp.eq.s32.totalorder %s18, 0
    %p87 = por %p85, %p86
    %s89 = sadd.s32 %s88, 1
    %p92 = scmp.eq.s32.totalorder %s12, 1
    %p93 = scmp.ne.s32.totalorder %s88, %s90
    %p94 = scmp.eq.s32.totalorder %s12, 0
    %p95 = por %p93, %p94
    %p96 = scmp.ne.s32.totalorder %s88, %s90
    %p97 = scmp.eq.s32.totalorder %s17, 1
    %p98 = por %p96, %p97
    %p99 = scmp.ne.s32.totalorder %s90, %s91
    %p100 = scmp.eq.s32.totalorder %s17, 0
    %p101 = por %p99, %p100
    %p102 = scmp.ne.s32.totalorder %s90, %s91
    %p103 = scmp.eq.s32.totalorder %s18, 1
    %p104 = por %p102, %p103
    %p106 = scmp.ne.s32.totalorder %s91, %s105
    %p107 = scmp.eq.s32.totalorder %s18, 0
    %p108 = por %p106, %p107
    %s110 = sadd.s32 %s109, 1
    %p113 = scmp.eq.s32.totalorder %s12, 1
    %p114 = scmp.ne.s32.totalorder %s109, %s111
    %p115 = scmp.eq.s32.totalorder %s12, 0
    %p116 = por %p114, %p115
    %p117 = scmp.ne.s32.totalorder %s109, %s111
    %p118 = scmp.eq.s32.totalorder %s17, 1
    %p119 = por %p117, %p118
    %p120 = scmp.ne.s32.totalorder %s111, %s112
    %p121 = scmp.eq.s32.totalorder %s17, 0
    %p122 = por %p120, %p121
    %p123 = scmp.ne.s32.totalorder %s111, %s112
    %p124 = scmp.eq.s32.totalorder %s18, 1
    %p125 = por %p123, %p124
    %p127 = scmp.ne.s32.totalorder %s112, %s126
    %p128 = scmp.eq.s32.totalorder %s18, 0
    %p129 = por %p127, %p128
    %s131 = sadd.s32 %s130, 1
    %p134 = scmp.eq.s32.totalorder %s12, 1
    %p135 = scmp.ne.s32.totalorder %s130, %s132
    %p136 = scmp.eq.s32.totalorder %s12, 0
    %p137 = por %p135, %p136
    %p138 = scmp.ne.s32.totalorder %s130, %s132
    %p139 = scmp.eq.s32.totalorder %s17, 1
    %p140 = por %p138, %p139
    %p141 = scmp.ne.s32.totalorder %s132, %s133
    %p142 = scmp.eq.s32.totalorder %s17, 0
    %p143 = por %p141, %p142
    %p144 = scmp.ne.s32.totalorder %s132, %s133
    %p145 = scmp.eq.s32.totalorder %s18, 1
    %p146 = por %p144, %p145
    %p148 = scmp.ne.s32.totalorder %s133, %s147
    %p149 = scmp.eq.s32.totalorder %s18, 0
    %p150 = por %p148, %p149
    %s151 = ssub.s32 %s12, %s19
    %p152 = scmp.eq.s32.totalorder %s151, 0
    %s154 = sadd.s32 %s153, 1
    %s155 = scalar_select %p152, %s153, %s154
    %p158 = pneg %p152
    %p159 = scmp.eq.s32.totalorder %s12, 1
    %p160 = por %p158, %p159
    %p161 = scmp.ne.s32.totalorder %s153, %s156
    %p162 = scmp.eq.s32.totalorder %s12, 0
    %p163 = por %p161, %p162
    %p164 = scmp.ne.s32.totalorder %s153, %s156
    %p165 = scmp.eq.s32.totalorder %s17, 1
    %p166 = por %p164, %p165
    %p167 = scmp.ne.s32.totalorder %s156, %s157
    %p168 = scmp.eq.s32.totalorder %s17, 0
    %p169 = por %p167, %p168
    %p170 = scmp.ne.s32.totalorder %s156, %s157
    %p171 = scmp.eq.s32.totalorder %s18, 1
    %p172 = por %p170, %p171
    %p174 = scmp.ne.s32.totalorder %s157, %s173
    %p175 = scmp.eq.s32.totalorder %s18, 0
    %p176 = por %p174, %p175
    %p177 = scmp.le.s32.totalorder 1, %s12
    %p178 = scmp.lt.s32.totalorder %s12, 3
    %p179 = pnand %p177, %p178
    %p180 = pneg %p179
    // Predicated region
    $region9: #{bottleneck_block_rs1.1} parent=5 // pred_check
      _
    $region10: #{bottleneck_block_rs1.1} parent=5 // pred_check_branch
      %182 = sbr.rel (%p179) target = $region12
    $region11: #{bottleneck_block_rs1.1} parent=5 // pred_region
      %s183 = ssub.s32 %s12, 1
      // Predicated region
      $region13: #{bottleneck_block_rs1.1} parent=11 // pred_check
        %p184 = pneg %p59
      $region14: #{bottleneck_block_rs1.1} parent=11 // pred_check_branch
        %186 = sbr.rel (%p184) target = $region16
      $region15: #{bottleneck_block_rs1.1} parent=11 // pred_region
        _
      $region16: #{bottleneck_block_rs1.1} parent=11 // pred_fallthru
        _
      // Predicated region
      $region17: #{bottleneck_block_rs1.1} parent=11 // pred_check
        %p187 = pneg %p80
      $region18: #{bottleneck_block_rs1.1} parent=11 // pred_check_branch
        %189 = sbr.rel (%p187) target = $region20
      $region19: #{bottleneck_block_rs1.1} parent=11 // pred_region
        _
      $region20: #{bottleneck_block_rs1.1} parent=11 // pred_fallthru
        _
      // Predicated region
      $region21: #{bottleneck_block_rs1.1} parent=11 // pred_check
        %p190 = pneg %p101
      $region22: #{bottleneck_block_rs1.1} parent=11 // pred_check_branch
        %192 = sbr.rel (%p190) target = $region24
      $region23: #{bottleneck_block_rs1.1} parent=11 // pred_region
        _
      $region24: #{bottleneck_block_rs1.1} parent=11 // pred_fallthru
        _
      // Predicated region
      $region25: #{bottleneck_block_rs1.1} parent=11 // pred_check
        %p193 = pneg %p122
      $region26: #{bottleneck_block_rs1.1} parent=11 // pred_check_branch
        %195 = sbr.rel (%p193) target = $region28
      $region27: #{bottleneck_block_rs1.1} parent=11 // pred_region
        _
      $region28: #{bottleneck_block_rs1.1} parent=11 // pred_fallthru
        _
      // Predicated region
      $region29: #{bottleneck_block_rs1.1} parent=11 // pred_check
        %p196 = pneg %p143
      $region30: #{bottleneck_block_rs1.1} parent=11 // pred_check_branch
        %198 = sbr.rel (%p196) target = $region32
      $region31: #{bottleneck_block_rs1.1} parent=11 // pred_region
        _
      $region32: #{bottleneck_block_rs1.1} parent=11 // pred_fallthru
        _
    $region12: #{bottleneck_block_rs1.1} parent=5 // pred_fallthru
      _
    %p199 = scmp.lt.s32.totalorder %s12, 2
    // Predicated region
    $region33: #{bottleneck_block_rs1.1} parent=5 // pred_check
      %p200 = pneg %p199
    $region34: #{bottleneck_block_rs1.1} parent=5 // pred_check_branch
      %202 = sbr.rel (%p200) target = $region36
    $region35: #{bottleneck_block_rs1.1} parent=5 // pred_region
      // Predicated region
      $region37: #{bottleneck_block_rs1.1} parent=35 // pred_check
        %p203 = pneg %p32
      $region38: #{bottleneck_block_rs1.1} parent=35 // pred_check_branch
        %205 = sbr.rel (%p203) target = $region40
      $region39: #{bottleneck_block_rs1.1} parent=35 // pred_region
        %p206 = scmp.lt.s32.totalorder %s12, 1
        %s207 = scalar_select %p206, %s12, 1
        %s208 = smul.addr %s207, 32
        %s209 = smul.addr %s208, 8
        %s210 = scalar_lea.vmem %s0, %s209
      $region40: #{bottleneck_block_rs1.1} parent=35 // pred_fallthru
        _
    $region36: #{bottleneck_block_rs1.1} parent=5 // pred_fallthru
      _
    %p211 = scmp.le.s32.totalorder 1, %s12
    %p212 = scmp.lt.s32.totalorder %s12, 3
    %p213 = pnand %p211, %p212
    %p214 = pneg %p213
    // Predicated region
    $region41: #{bottleneck_block_rs1.1} parent=5 // pred_check
      _
    $region42: #{bottleneck_block_rs1.1} parent=5 // pred_check_branch
      %216 = sbr.rel (%p213) target = $region44
    $region43: #{bottleneck_block_rs1.1} parent=5 // pred_region
      %s217 = ssub.s32 %s12, 1
      %p218 = scmp.lt.s32.totalorder %s17, 1
      %s219 = scalar_select %p218, %s17, 1
      %s220 = smul.addr %s219, 32
      %s221 = smul.addr %s220, 8
      %s222 = scalar_lea.vmem %s0, %s221
      %p223 = pneg %p38
      %p224 = pneg %p35
      %p225 = pneg %p59
      %p226 = pneg %p56
      %p227 = pneg %p80
      %p228 = pneg %p77
      %p229 = pneg %p101
      %p230 = pneg %p98
      %p231 = pneg %p122
      %p232 = pneg %p119
      %p233 = pneg %p143
      %p234 = pneg %p140
      %p235 = pneg %p169
      %p236 = pneg %p166
      %p237 = scmp.lt.s32.totalorder %s17, 1
      %s238 = scalar_select %p237, %s17, 1
      %s239 = smul.addr %s238, 8
      %s240 = smul.addr %s239, 8
      %s241 = scalar_lea.vmem %s6, %s240
      %p242 = scmp.lt.s32.totalorder %s17, 1
      %s243 = scalar_select %p242, %s17, 1
      %s244 = smul.addr %s243, 32
      %s245 = smul.addr %s244, 8
      %s246 = scalar_lea.vmem %s0, %s245
      %p247 = scmp.lt.s32.totalorder %s17, 1
      %s248 = scalar_select %p247, %s17, 1
      %s249 = smul.addr %s248, 8
      %s250 = smul.addr %s249, 8
      %s251 = scalar_lea.vmem %s6, %s250
      %v253 = vld [vmem:[%s246] sm:$0xff]
      %v254 = vld [vmem:[%s246 + $0x8] sm:$0xff]
      %v255 = vld [vmem:[%s246 + $0x10] sm:$0xff]
      %v256 = vld [vmem:[%s246 + $0x18] sm:$0xff]
      %v257 = vld [vmem:[%s246 + $0x20] sm:$0xff]
      %v258 = vld [vmem:[%s246 + $0x28] sm:$0xff]
      %v259 = vld [vmem:[%s246 + $0x30] sm:$0xff]
      %v260 = vld [vmem:[%s246 + $0x38] sm:$0xff]
      %v261 = vld [vmem:[%s246 + $0x40] sm:$0xff]
      %v262 = vld [vmem:[%s246 + $0x48] sm:$0xff]
      %v263 = vld [vmem:[%s246 + $0x50] sm:$0xff]
      %v264 = vld [vmem:[%s246 + $0x58] sm:$0xff]
      %v265 = vld [vmem:[%s246 + $0x60] sm:$0xff]
      %v266 = vld [vmem:[%s246 + $0x68] sm:$0xff]
      %v267 = vld [vmem:[%s246 + $0x70] sm:$0xff]
      %v268 = vld [vmem:[%s246 + $0x78] sm:$0xff]
      %v269 = vld [vmem:[%s246 + $0x80] sm:$0xff]
      %v270 = vld [vmem:[%s246 + $0x88] sm:$0xff]
      %v271 = vld [vmem:[%s246 + $0x90] sm:$0xff]
      %v272 = vld [vmem:[%s246 + $0x98] sm:$0xff]
      %v273 = vld [vmem:[%s246 + $0xa0] sm:$0xff]
      %v274 = vld [vmem:[%s246 + $0xa8] sm:$0xff]
      %v275 = vld [vmem:[%s246 + $0xb0] sm:$0xff]
      %v276 = vld [vmem:[%s246 + $0xb8] sm:$0xff]
      %v277 = vld [vmem:[%s246 + $0xc0] sm:$0xff]
      %v278 = vld [vmem:[%s246 + $0xc8] sm:$0xff]
      %v279 = vld [vmem:[%s246 + $0xd0] sm:$0xff]
      %v280 = vld [vmem:[%s246 + $0xd8] sm:$0xff]
      %v281 = vld [vmem:[%s246 + $0xe0] sm:$0xff]
      %v282 = vld [vmem:[%s246 + $0xe8] sm:$0xff]
      %v283 = vld [vmem:[%s246 + $0xf0] sm:$0xff]
      %v284 = vld [vmem:[%s246 + $0xf8] sm:$0xff]
      %vm285 = vcmask 130048
      %v286 = vsel %vm285, %v253, 0.0
      %v287 = vsel %vm285, %v254, 0.0
      %v288 = vadd.f32 %v286, %v287
      %v289 = vsel %vm285, %v255, 0.0
      %v290 = vadd.f32 %v288, %v289
      %v291 = vsel %vm285, %v256, 0.0
      %v292 = vadd.f32 %v290, %v291
      %v293 = vsel %vm285, %v257, 0.0
      %v294 = vadd.f32 %v292, %v293
      %v295 = vsel %vm285, %v258, 0.0
      %v296 = vadd.f32 %v294, %v295
      %v297 = vsel %vm285, %v259, 0.0
      %v298 = vadd.f32 %v296, %v297
      %v299 = vsel %vm285, %v260, 0.0
      %v300 = vadd.f32 %v298, %v299
      %v301 = vsel %vm285, %v261, 0.0
      %v302 = vadd.f32 %v300, %v301
      %v303 = vsel %vm285, %v262, 0.0
      %v304 = vadd.f32 %v302, %v303
      %v305 = vsel %vm285, %v263, 0.0
      %v306 = vadd.f32 %v304, %v305
      %v307 = vsel %vm285, %v264, 0.0
      %v308 = vadd.f32 %v306, %v307
      %v309 = vsel %vm285, %v265, 0.0
      %v310 = vadd.f32 %v308, %v309
      %v311 = vsel %vm285, %v266, 0.0
      %v312 = vadd.f32 %v310, %v311
      %v313 = vsel %vm285, %v267, 0.0
      %v314 = vadd.f32 %v312, %v313
      %v315 = vsel %vm285, %v268, 0.0
      %v316 = vadd.f32 %v314, %v315
      %v317 = vsel %vm285, %v269, 0.0
      %v318 = vadd.f32 %v316, %v317
      %v319 = vsel %vm285, %v270, 0.0
      %v320 = vadd.f32 %v318, %v319
      %v321 = vsel %vm285, %v271, 0.0
      %v322 = vadd.f32 %v320, %v321
      %v323 = vsel %vm285, %v272, 0.0
      %v324 = vadd.f32 %v322, %v323
      %v325 = vsel %vm285, %v273, 0.0
      %v326 = vadd.f32 %v324, %v325
      %v327 = vsel %vm285, %v274, 0.0
      %v328 = vadd.f32 %v326, %v327
      %v329 = vsel %vm285, %v275, 0.0
      %v330 = vadd.f32 %v328, %v329
      %v331 = vsel %vm285, %v276, 0.0
      %v332 = vadd.f32 %v330, %v331
      %v333 = vsel %vm285, %v277, 0.0
      %v334 = vadd.f32 %v332, %v333
      %v335 = vsel %vm285, %v278, 0.0
      %v336 = vadd.f32 %v334, %v335
      %v337 = vsel %vm285, %v279, 0.0
      %v338 = vadd.f32 %v336, %v337
      %v339 = vsel %vm285, %v280, 0.0
      %v340 = vadd.f32 %v338, %v339
      %v341 = vsel %vm285, %v281, 0.0
      %v342 = vadd.f32 %v340, %v341
      %v343 = vsel %vm285, %v282, 0.0
      %v344 = vadd.f32 %v342, %v343
      %v345 = vsel %vm285, %v283, 0.0
      %v346 = vadd.f32 %v344, %v345
      %v347 = vsel %vm285, %v284, 0.0
      %v348 = vadd.f32 %v346, %v347
      %v349 = vrot.slane %v348, 4
      %v350 = vadd.f32 %v348, %v349
      %v351 = vrot.slane %v350, 2
      %v352 = vadd.f32 %v350, %v351
      %v353 = vrot.slane %v352, 1
      %v354 = vadd.f32 %v352, %v353
      %v355 = vrcp.pop 256.0
      %v356 = vmul.f32 %v354, %v355
      %v357 = vsub.f32 %v253, %v356
      %v358 = vsub.f32 %v254, %v356
      %v359 = vsub.f32 %v255, %v356
      %v360 = vsub.f32 %v256, %v356
      %v361 = vsub.f32 %v257, %v356
      %v362 = vsub.f32 %v258, %v356
      %v363 = vsub.f32 %v259, %v356
      %v364 = vsub.f32 %v260, %v356
      %v365 = vsub.f32 %v261, %v356
      %v366 = vsub.f32 %v262, %v356
      %v367 = vsub.f32 %v263, %v356
      %v368 = vsub.f32 %v264, %v356
      %v369 = vsub.f32 %v265, %v356
      %v370 = vsub.f32 %v266, %v356
      %v371 = vsub.f32 %v267, %v356
      %v372 = vsub.f32 %v268, %v356
      %v373 = vsub.f32 %v269, %v356
      %v374 = vsub.f32 %v270, %v356
      %v375 = vsub.f32 %v271, %v356
      %v376 = vsub.f32 %v272, %v356
      %v377 = vsub.f32 %v273, %v356
      %v378 = vsub.f32 %v274, %v356
      %v379 = vsub.f32 %v275, %v356
      %v380 = vsub.f32 %v276, %v356
      %v381 = vsub.f32 %v277, %v356
      %v382 = vsub.f32 %v278, %v356
      %v383 = vsub.f32 %v279, %v356
      %v384 = vsub.f32 %v280, %v356
      %v385 = vsub.f32 %v281, %v356
      %v386 = vsub.f32 %v282, %v356
      %v387 = vsub.f32 %v283, %v356
      %v388 = vsub.f32 %v284, %v356
      %v389 = vmul.f32 %v357, %v357
      %v390 = vmul.f32 %v358, %v358
      %v391 = vmul.f32 %v359, %v359
      %v392 = vmul.f32 %v360, %v360
      %v393 = vmul.f32 %v361, %v361
      %v394 = vmul.f32 %v362, %v362
      %v395 = vmul.f32 %v363, %v363
      %v396 = vmul.f32 %v364, %v364
      %v397 = vmul.f32 %v365, %v365
      %v398 = vmul.f32 %v366, %v366
      %v399 = vmul.f32 %v367, %v367
      %v400 = vmul.f32 %v368, %v368
      %v401 = vmul.f32 %v369, %v369
      %v402 = vmul.f32 %v370, %v370
      %v403 = vmul.f32 %v371, %v371
      %v404 = vmul.f32 %v372, %v372
      %v405 = vmul.f32 %v373, %v373
      %v406 = vmul.f32 %v374, %v374
      %v407 = vmul.f32 %v375, %v375
      %v408 = vmul.f32 %v376, %v376
      %v409 = vmul.f32 %v377, %v377
      %v410 = vmul.f32 %v378, %v378
      %v411 = vmul.f32 %v379, %v379
      %v412 = vmul.f32 %v380, %v380
      %v413 = vmul.f32 %v381, %v381
      %v414 = vmul.f32 %v382, %v382
      %v415 = vmul.f32 %v383, %v383
      %v416 = vmul.f32 %v384, %v384
      %v417 = vmul.f32 %v385, %v385
      %v418 = vmul.f32 %v386, %v386
      %v419 = vmul.f32 %v387, %v387
      %v420 = vmul.f32 %v388, %v388
      %v421 = vsel %vm285, %v389, 0.0
      %v422 = vsel %vm285, %v390, 0.0
      %v423 = vadd.f32 %v421, %v422
      %v424 = vsel %vm285, %v391, 0.0
      %v425 = vadd.f32 %v423, %v424
      %v426 = vsel %vm285, %v392, 0.0
      %v427 = vadd.f32 %v425, %v426
      %v428 = vsel %vm285, %v393, 0.0
      %v429 = vadd.f32 %v427, %v428
      %v430 = vsel %vm285, %v394, 0.0
      %v431 = vadd.f32 %v429, %v430
      %v432 = vsel %vm285, %v395, 0.0
      %v433 = vadd.f32 %v431, %v432
      %v434 = vsel %vm285, %v396, 0.0
      %v435 = vadd.f32 %v433, %v434
      %v436 = vsel %vm285, %v397, 0.0
      %v437 = vadd.f32 %v435, %v436
      %v438 = vsel %vm285, %v398, 0.0
      %v439 = vadd.f32 %v437, %v438
      %v440 = vsel %vm285, %v399, 0.0
      %v441 = vadd.f32 %v439, %v440
      %v442 = vsel %vm285, %v400, 0.0
      %v443 = vadd.f32 %v441, %v442
      %v444 = vsel %vm285, %v401, 0.0
      %v445 = vadd.f32 %v443, %v444
      %v446 = vsel %vm285, %v402, 0.0
      %v447 = vadd.f32 %v445, %v446
      %v448 = vsel %vm285, %v403, 0.0
      %v449 = vadd.f32 %v447, %v448
      %v450 = vsel %vm285, %v404, 0.0
      %v451 = vadd.f32 %v449, %v450
      %v452 = vsel %vm285, %v405, 0.0
      %v453 = vadd.f32 %v451, %v452
      %v454 = vsel %vm285, %v406, 0.0
      %v455 = vadd.f32 %v453, %v454
      %v456 = vsel %vm285, %v407, 0.0
      %v457 = vadd.f32 %v455, %v456
      %v458 = vsel %vm285, %v408, 0.0
      %v459 = vadd.f32 %v457, %v458
      %v460 = vsel %vm285, %v409, 0.0
      %v461 = vadd.f32 %v459, %v460
      %v462 = vsel %vm285, %v410, 0.0
      %v463 = vadd.f32 %v461, %v462
      %v464 = vsel %vm285, %v411, 0.0
      %v465 = vadd.f32 %v463, %v464
      %v466 = vsel %vm285, %v412, 0.0
      %v467 = vadd.f32 %v465, %v466
      %v468 = vsel %vm285, %v413, 0.0
      %v469 = vadd.f32 %v467, %v468
      %v470 = vsel %vm285, %v414, 0.0
      %v471 = vadd.f32 %v469, %v470
      %v472 = vsel %vm285, %v415, 0.0
      %v473 = vadd.f32 %v471, %v472
      %v474 = vsel %vm285, %v416, 0.0
      %v475 = vadd.f32 %v473, %v474
      %v476 = vsel %vm285, %v417, 0.0
      %v477 = vadd.f32 %v475, %v476
      %v478 = vsel %vm285, %v418, 0.0
      %v479 = vadd.f32 %v477, %v478
      %v480 = vsel %vm285, %v419, 0.0
      %v481 = vadd.f32 %v479, %v480
      %v482 = vsel %vm285, %v420, 0.0
      %v483 = vadd.f32 %v481, %v482
      %v484 = vrot.slane %v483, 4
      %v485 = vadd.f32 %v483, %v484
      %v486 = vrot.slane %v485, 2
      %v487 = vadd.f32 %v485, %v486
      %v488 = vrot.slane %v487, 1
      %v489 = vadd.f32 %v487, %v488
      %v490 = vmul.f32 %v489, %v355
      %v491 = vadd.f32 %v490, 1e-05
      %v492 = vrsqrt.pop %v491
      %v493 = vmul.f32 %v357, %v492
      %v494 = vmul.f32 %v358, %v492
      %v495 = vmul.f32 %v359, %v492
      %v496 = vmul.f32 %v360, %v492
      %v497 = vmul.f32 %v361, %v492
      %v498 = vmul.f32 %v362, %v492
      %v499 = vmul.f32 %v363, %v492
      %v500 = vmul.f32 %v364, %v492
      %v501 = vmul.f32 %v365, %v492
      %v502 = vmul.f32 %v366, %v492
      %v503 = vmul.f32 %v367, %v492
      %v504 = vmul.f32 %v368, %v492
      %v505 = vmul.f32 %v369, %v492
      %v506 = vmul.f32 %v370, %v492
      %v507 = vmul.f32 %v371, %v492
      %v508 = vmul.f32 %v372, %v492
      %v509 = vmul.f32 %v373, %v492
      %v510 = vmul.f32 %v374, %v492
      %v511 = vmul.f32 %v375, %v492
      %v512 = vmul.f32 %v376, %v492
      %v513 = vmul.f32 %v377, %v492
      %v514 = vmul.f32 %v378, %v492
      %v515 = vmul.f32 %v379, %v492
      %v516 = vmul.f32 %v380, %v492
      %v517 = vmul.f32 %v381, %v492
      %v518 = vmul.f32 %v382, %v492
      %v519 = vmul.f32 %v383, %v492
      %v520 = vmul.f32 %v384, %v492
      %v521 = vmul.f32 %v385, %v492
      %v522 = vmul.f32 %v386, %v492
      %v523 = vmul.f32 %v387, %v492
      %v524 = vmul.f32 %v388, %v492
      %v525 = vmax.f32 %v493, 0.0
      %v526 = vmax.f32 %v494, 0.0
      %v527 = vmax.f32 %v495, 0.0
      %v528 = vmax.f32 %v496, 0.0
      %v529 = vmax.f32 %v497, 0.0
      %v530 = vmax.f32 %v498, 0.0
      %v531 = vmax.f32 %v499, 0.0
      %v532 = vmax.f32 %v500, 0.0
      %v533 = vmax.f32 %v501, 0.0
      %v534 = vmax.f32 %v502, 0.0
      %v535 = vmax.f32 %v503, 0.0
      %v536 = vmax.f32 %v504, 0.0
      %v537 = vmax.f32 %v505, 0.0
      %v538 = vmax.f32 %v506, 0.0
      %v539 = vmax.f32 %v507, 0.0
      %v540 = vmax.f32 %v508, 0.0
      %v541 = vmax.f32 %v509, 0.0
      %v542 = vmax.f32 %v510, 0.0
      %v543 = vmax.f32 %v511, 0.0
      %v544 = vmax.f32 %v512, 0.0
      %v545 = vmax.f32 %v513, 0.0
      %v546 = vmax.f32 %v514, 0.0
      %v547 = vmax.f32 %v515, 0.0
      %v548 = vmax.f32 %v516, 0.0
      %v549 = vmax.f32 %v517, 0.0
      %v550 = vmax.f32 %v518, 0.0
      %v551 = vmax.f32 %v519, 0.0
      %v552 = vmax.f32 %v520, 0.0
      %v553 = vmax.f32 %v521, 0.0
      %v554 = vmax.f32 %v522, 0.0
      %v555 = vmax.f32 %v523, 0.0
      %v556 = vmax.f32 %v524, 0.0
      %v557 = vpack.c.bf16 %v526, %v525
      %v558 = vpack.c.bf16 %v528, %v527
      %v559 = vpack.c.bf16 %v530, %v529
      %v560 = vpack.c.bf16 %v532, %v531
      %v561 = vpack.c.bf16 %v534, %v533
      %v562 = vpack.c.bf16 %v536, %v535
      %v563 = vpack.c.bf16 %v538, %v537
      %v564 = vpack.c.bf16 %v540, %v539
      %v565 = vpack.c.bf16 %v542, %v541
      %v566 = vpack.c.bf16 %v544, %v543
      %v567 = vpack.c.bf16 %v546, %v545
      %v568 = vpack.c.bf16 %v548, %v547
      %v569 = vpack.c.bf16 %v550, %v549
      %v570 = vpack.c.bf16 %v552, %v551
      %v571 = vpack.c.bf16 %v554, %v553
      %v572 = vpack.c.bf16 %v556, %v555
      %v573 = vld [vmem:[%s1] sm:$0xf]
      %v574 = vld [vmem:[%s1 + $0x4] sm:$0xf]
      %v577 = vunpack.c.l.b16 %v573
      %v578 = vunpack.c.l.b16 %v574
      %v579 = vpack.c.b16 %v578, %v577
      %v582 = vsel %vm285, %v557, 0
      %v585 = vsel %vm285, %v558, 0
      %v588 = vsel %vm285, %v559, 0
      %v591 = vsel %vm285, %v560, 0
      %v594 = vsel %vm285, %v561, 0
      %v597 = vsel %vm285, %v562, 0
      %v600 = vsel %vm285, %v563, 0
      %v603 = vsel %vm285, %v564, 0
      %v606 = vsel %vm285, %v565, 0
      %v609 = vsel %vm285, %v566, 0
      %v612 = vsel %vm285, %v567, 0
      %v615 = vsel %vm285, %v568, 0
      %v618 = vsel %vm285, %v569, 0
      %v621 = vsel %vm285, %v570, 0
      %v624 = vsel %vm285, %v571, 0
      %v627 = vsel %vm285, %v572, 0
      %629 = vmatprep.subr.bf16.mxu0 0
      %630 = vmatpush1.bf16.msra.mxu0 %v579
      %631 = vmatprep.subr.bf16.mxu0 0
      %632 = vmatpush1.bf16.msra.mxu0 0
      %633 = vmatprep.subr.bf16.mxu0 0
      %634 = vmatpush1.bf16.msra.mxu0 0
      %635 = vmatprep.subr.bf16.mxu0 0
      %636 = vmatpush1.bf16.msra.mxu0 0
      %637 = vmatprep.subr.bf16.mxu0 0
      %638 = vmatpush1.bf16.msra.mxu0 0
      %639 = vmatprep.subr.bf16.mxu0 0
      %640 = vmatpush1.bf16.msra.mxu0 0
      %641 = vmatprep.subr.bf16.mxu0 0
      %642 = vmatpush1.bf16.msra.mxu0 0
      %643 = vmatprep.subr.bf16.mxu0 0
      %644 = vmatpush1.bf16.msra.mxu0 0
      %645 = vmatprep.subr.bf16.mxu0 0
      %646 = vmatpush1.bf16.msra.mxu0 0
      %647 = vmatprep.subr.bf16.mxu0 0
      %648 = vmatpush1.bf16.msra.mxu0 0
      %649 = vmatprep.subr.bf16.mxu0 0
      %650 = vmatpush1.bf16.msra.mxu0 0
      %651 = vmatprep.subr.bf16.mxu0 0
      %652 = vmatpush1.bf16.msra.mxu0 0
      %653 = vmatprep.subr.bf16.mxu0 0
      %654 = vmatpush1.bf16.msra.mxu0 0
      %655 = vmatprep.subr.bf16.mxu0 0
      %656 = vmatpush1.bf16.msra.mxu0 0
      %657 = vmatprep.subr.bf16.mxu0 0
      %658 = vmatpush1.bf16.msra.mxu0 0
      %659 = vmatprep.subr.bf16.mxu0 0
      %660 = vmatpush1.bf16.msra.mxu0 0
      %661 = vmatprep.mubr.bf16.mxu0 0
      %662 = vmatmul.mubr.bf16.gmra.mrb[0].mxu0 %v582
      %v663 = vpop.f32.mrb[0].mxu0
      %v664 = vadd.f32 0.0, %v663
      %v665 = vpop.f32.mrb[0].mxu0
      %v666 = vpop.f32.mrb[0].mxu0
      %v667 = vadd.f32 0.0, %v666
      %v668 = vpop.f32.mrb[0].mxu0
      %669 = vmatprep.mubr.bf16.mxu0 0
      %670 = vmatmul.mubr.bf16.gmra.mrb[0].mxu0 %v585
      %v671 = vpop.f32.mrb[0].mxu0
      %v672 = vadd.f32 0.0, %v671
      %v673 = vpop.f32.mrb[0].mxu0
      %v674 = vpop.f32.mrb[0].mxu0
      %v675 = vadd.f32 0.0, %v674
      %v676 = vpop.f32.mrb[0].mxu0
      %677 = vmatprep.mubr.bf16.mxu0 0
      %678 = vmatmul.mubr.bf16.gmra.mrb[0].mxu0 %v588
      %v679 = vpop.f32.mrb[0].mxu0
      %v680 = vadd.f32 0.0, %v679
      %v681 = vpop.f32.mrb[0].mxu0
      %v682 = vpop.f32.mrb[0].mxu0
      %v683 = vadd.f32 0.0, %v682
      %v684 = vpop.f32.mrb[0].mxu0
      %685 = vmatprep.mubr.bf16.mxu0 0
      %686 = vmatmul.mubr.bf16.gmra.mrb[0].mxu0 %v591
      %v687 = vpop.f32.mrb[0].mxu0
      %v688 = vadd.f32 0.0, %v687
      %v689 = vpop.f32.mrb[0].mxu0
      %v690 = vpop.f32.mrb[0].mxu0
      %v691 = vadd.f32 0.0, %v690
      %v692 = vpop.f32.mrb[0].mxu0
      %693 = vmatprep.mubr.bf16.mxu0 0
      %694 = vmatmul.mubr.bf16.gmra.mrb[0].mxu0 %v594
      %v695 = vpop.f32.mrb[0].mxu0
      %v696 = vadd.f32 0.0, %v695
      %v697 = vpop.f32.mrb[0].mxu0
      %v698 = vpop.f32.mrb[0].mxu0
      %v699 = vadd.f32 0.0, %v698
      %v700 = vpop.f32.mrb[0].mxu0
      %701 = vmatprep.mubr.bf16.mxu0 0
      %702 = vmatmul.mubr.bf16.gmra.mrb[0].mxu0 %v597
      %v703 = vpop.f32.mrb[0].mxu0
      %v704 = vadd.f32 0.0, %v703
      %v705 = vpop.f32.mrb[0].mxu0
      %v706 = vpop.f32.mrb[0].mxu0
      %v707 = vadd.f32 0.0, %v706
      %v708 = vpop.f32.mrb[0].mxu0
      %709 = vmatprep.mubr.bf16.mxu0 0
      %710 = vmatmul.mubr.bf16.gmra.mrb[0].mxu0 %v600
      %v711 = vpop.f32.mrb[0].mxu0
      %v712 = vadd.f32 0.0, %v711
      %v713 = vpop.f32.mrb[0].mxu0
      %v714 = vpop.f32.mrb[0].mxu0
      %v715 = vadd.f32 0.0, %v714
      %v716 = vpop.f32.mrb[0].mxu0
      %717 = vmatprep.mubr.bf16.mxu0 0
      %718 = vmatmul.mubr.bf16.gmra.mrb[0].mxu0 %v603
      %v719 = vpop.f32.mrb[0].mxu0
      %v720 = vadd.f32 0.0, %v719
      %v721 = vpop.f32.mrb[0].mxu0
      %v722 = vpop.f32.mrb[0].mxu0
      %v723 = vadd.f32 0.0, %v722
      %v724 = vpop.f32.mrb[0].mxu0
      %725 = vmatprep.mubr.bf16.mxu0 0
      %726 = vmatmul.mubr.bf16.gmra.mrb[0].mxu0 %v606
      %v727 = vpop.f32.mrb[0].mxu0
      %v728 = vadd.f32 0.0, %v727
      %v729 = vpop.f32.mrb[0].mxu0
      %v730 = vpop.f32.mrb[0].mxu0
      %v731 = vadd.f32 0.0, %v730
      %v732 = vpop.f32.mrb[0].mxu0
      %733 = vmatprep.mubr.bf16.mxu0 0
      %734 = vmatmul.mubr.bf16.gmra.mrb[0].mxu0 %v609
      %v735 = vpop.f32.mrb[0].mxu0
      %v736 = vadd.f32 0.0, %v735
      %v737 = vpop.f32.mrb[0].mxu0
      %v738 = vpop.f32.mrb[0].mxu0
      %v739 = vadd.f32 0.0, %v738
      %v740 = vpop.f32.mrb[0].mxu0
      %741 = vmatprep.mubr.bf16.mxu0 0
      %742 = vmatmul.mubr.bf16.gmra.mrb[0].mxu0 %v612
      %v743 = vpop.f32.mrb[0].mxu0
      %v744 = vadd.f32 0.0, %v743
      %v745 = vpop.f32.mrb[0].mxu0
      %v746 = vpop.f32.mrb[0].mxu0
      %v747 = vadd.f32 0.0, %v746
      %v748 = vpop.f32.mrb[0].mxu0
      %749 = vmatprep.mubr.bf16.mxu0 0
      %750 = vmatmul.mubr.bf16.gmra.mrb[0].mxu0 %v615
      %v751 = vpop.f32.mrb[0].mxu0
      %v752 = vadd.f32 0.0, %v751
      %v753 = vpop.f32.mrb[0].mxu0
      %v754 = vpop.f32.mrb[0].mxu0
      %v755 = vadd.f32 0.0, %v754
      %v756 = vpop.f32.mrb[0].mxu0
      %757 = vmatprep.mubr.bf16.mxu0 0
      %758 = vmatmul.mubr.bf16.gmra.mrb[0].mxu0 %v618
      %v759 = vpop.f32.mrb[0].mxu0
      %v760 = vadd.f32 0.0, %v759
      %v761 = vpop.f32.mrb[0].mxu0
      %v762 = vpop.f32.mrb[0].mxu0
      %v763 = vadd.f32 0.0, %v762
      %v764 = vpop.f32.mrb[0].mxu0
      %765 = vmatprep.mubr.bf16.mxu0 0
      %766 = vmatmul.mubr.bf16.gmra.mrb[0].mxu0 %v621
      %v767 = vpop.f32.mrb[0].mxu0
      %v768 = vadd.f32 0.0, %v767
      %v769 = vpop.f32.mrb[0].mxu0
      %v770 = vpop.f32.mrb[0].mxu0
      %v771 = vadd.f32 0.0, %v770
      %v772 = vpop.f32.mrb[0].mxu0
      %773 = vmatprep.mubr.bf16.mxu0 0
      %774 = vmatmul.mubr.bf16.gmra.mrb[0].mxu0 %v624
      %v775 = vpop.f32.mrb[0].mxu0
      %v776 = vadd.f32 0.0, %v775
      %v777 = vpop.f32.mrb[0].mxu0
      %v778 = vpop.f32.mrb[0].mxu0
      %v779 = vadd.f32 0.0, %v778
      %v780 = vpop.f32.mrb[0].mxu0
      %781 = vmatprep.mubr.bf16.mxu0 0
      %782 = vmatmul.mubr.bf16.gmra.mrb[0].mxu0 %v627
      %v783 = vpop.f32.mrb[0].mxu0
      %v784 = vadd.f32 0.0, %v783
      %v785 = vpop.f32.mrb[0].mxu0
      %v786 = vpop.f32.mrb[0].mxu0
      %v787 = vadd.f32 0.0, %v786
      %v788 = vpop.f32.mrb[0].mxu0
      %789 = vdwg.mxu0
      %v790 = vpack.c.bf16 %v254, %v253
      %v791 = vpack.c.bf16 %v256, %v255
      %v792 = vpack.c.bf16 %v258, %v257
      %v793 = vpack.c.bf16 %v260, %v259
      %v794 = vpack.c.bf16 %v262, %v261
      %v795 = vpack.c.bf16 %v264, %v263
      %v796 = vpack.c.bf16 %v266, %v265
      %v797 = vpack.c.bf16 %v268, %v267
      %v798 = vpack.c.bf16 %v270, %v269
      %v799 = vpack.c.bf16 %v272, %v271
      %v800 = vpack.c.bf16 %v274, %v273
      %v801 = vpack.c.bf16 %v276, %v275
      %v802 = vpack.c.bf16 %v278, %v277
      %v803 = vpack.c.bf16 %v280, %v279
      %v804 = vpack.c.bf16 %v282, %v281
      %v805 = vpack.c.bf16 %v284, %v283
      %v806 = vld [vmem:[%s5] sm:$0xf]
      %v807 = vld [vmem:[%s5 + $0x4] sm:$0xf]
      %v810 = vunpack.c.l.b16 %v806
      %v811 = vunpack.c.l.b16 %v807
      %v812 = vpack.c.b16 %v811, %v810
      %v815 = vsel %vm285, %v790, 0
      %v818 = vsel %vm285, %v791, 0
      %v821 = vsel %vm285, %v792, 0
      %v824 = vsel %vm285, %v793, 0
      %v827 = vsel %vm285, %v794, 0
      %v830 = vsel %vm285, %v795, 0
      %v833 = vsel %vm285, %v796, 0
      %v836 = vsel %vm285, %v797, 0
      %v839 = vsel %vm285, %v798, 0
      %v842 = vsel %vm285, %v799, 0
      %v845 = vsel %vm285, %v800, 0
      %v848 = vsel %vm285, %v801, 0
      %v851 = vsel %vm285, %v802, 0
      %v854 = vsel %vm285, %v803, 0
      %v857 = vsel %vm285, %v804, 0
      %v860 = vsel %vm285, %v805, 0
      %862 = vmatprep.subr.bf16.mxu0 0
      %863 = vmatpush1.bf16.msra.mxu0 %v812
      %864 = vmatprep.subr.bf16.mxu0 0
      %865 = vmatpush1.bf16.msra.mxu0 0
      %866 = vmatprep.subr.bf16.mxu0 0
      %867 = vmatpush1.bf16.msra.mxu0 0
      %868 = vmatprep.subr.bf16.mxu0 0
      %869 = vmatpush1.bf16.msra.mxu0 0
      %870 = vmatprep.subr.bf16.mxu0 0
      %871 = vmatpush1.bf16.msra.mxu0 0
      %872 = vmatprep.subr.bf16.mxu0 0
      %873 = vmatpush1.bf16.msra.mxu0 0
      %874 = vmatprep.subr.bf16.mxu0 0
      %875 = vmatpush1.bf16.msra.mxu0 0
      %876 = vmatprep.subr.bf16.mxu0 0
      %877 = vmatpush1.bf16.msra.mxu0 0
      %878 = vmatprep.subr.bf16.mxu0 0
      %879 = vmatpush1.bf16.msra.mxu0 0
      %880 = vmatprep.subr.bf16.mxu0 0
      %881 = vmatpush1.bf16.msra.mxu0 0
      %882 = vmatprep.subr.bf16.mxu0 0
      %883 = vmatpush1.bf16.msra.mxu0 0
      %884 = vmatprep.subr.bf16.mxu0 0
      %885 = vmatpush1.bf16.msra.mxu0 0
      %886 = vmatprep.subr.bf16.mxu0 0
      %887 = vmatpush1.bf16.msra.mxu0 0
      %888 = vmatprep.subr.bf16.mxu0 0
      %889 = vmatpush1.bf16.msra.mxu0 0
      %890 = vmatprep.subr.bf16.mxu0 0
      %891 = vmatpush1.bf16.msra.mxu0 0
      %892 = vmatprep.subr.bf16.mxu0 0
      %893 = vmatpush1.bf16.msra.mxu0 0
      %894 = vmatprep.mubr.bf16.mxu0 0
      %895 = vmatmul.mubr.bf16.gmra.mrb[0].mxu0 %v815
      %v896 = vpop.f32.mrb[0].mxu0
      %v897 = vadd.f32 0.0, %v896
      %v898 = vpop.f32.mrb[0].mxu0
      %v899 = vpop.f32.mrb[0].mxu0
      %v900 = vadd.f32 0.0, %v899
      %v901 = vpop.f32.mrb[0].mxu0
      %902 = vmatprep.mubr.bf16.mxu0 0
      %903 = vmatmul.mubr.bf16.gmra.mrb[0].mxu0 %v818
      %v904 = vpop.f32.mrb[0].mxu0
      %v905 = vadd.f32 0.0, %v904
      %v906 = vpop.f32.mrb[0].mxu0
      %v907 = vpop.f32.mrb[0].mxu0
      %v908 = vadd.f32 0.0, %v907
      %v909 = vpop.f32.mrb[0].mxu0
      %910 = vmatprep.mubr.bf16.mxu0 0
      %911 = vmatmul.mubr.bf16.gmra.mrb[0].mxu0 %v821
      %v912 = vpop.f32.mrb[0].mxu0
      %v913 = vadd.f32 0.0, %v912
      %v914 = vpop.f32.mrb[0].mxu0
      %v915 = vpop.f32.mrb[0].mxu0
      %v916 = vadd.f32 0.0, %v915
      %v917 = vpop.f32.mrb[0].mxu0
      %918 = vmatprep.mubr.bf16.mxu0 0
      %919 = vmatmul.mubr.bf16.gmra.mrb[0].mxu0 %v824
      %v920 = vpop.f32.mrb[0].mxu0
      %v921 = vadd.f32 0.0, %v920
      %v922 = vpop.f32.mrb[0].mxu0
      %v923 = vpop.f32.mrb[0].mxu0
      %v924 = vadd.f32 0.0, %v923
      %v925 = vpop.f32.mrb[0].mxu0
      %926 = vmatprep.mubr.bf16.mxu0 0
      %927 = vmatmul.mubr.bf16.gmra.mrb[0].mxu0 %v827
      %v928 = vpop.f32.mrb[0].mxu0
      %v929 = vadd.f32 0.0, %v928
      %v930 = vpop.f32.mrb[0].mxu0
      %v931 = vpop.f32.mrb[0].mxu0
      %v932 = vadd.f32 0.0, %v931
      %v933 = vpop.f32.mrb[0].mxu0
      %934 = vmatprep.mubr.bf16.mxu0 0
      %935 = vmatmul.mubr.bf16.gmra.mrb[0].mxu0 %v830
      %v936 = vpop.f32.mrb[0].mxu0
      %v937 = vadd.f32 0.0, %v936
      %v938 = vpop.f32.mrb[0].mxu0
      %v939 = vpop.f32.mrb[0].mxu0
      %v940 = vadd.f32 0.0, %v939
      %v941 = vpop.f32.mrb[0].mxu0
      %942 = vmatprep.mubr.bf16.mxu0 0
      %943 = vmatmul.mubr.bf16.gmra.mrb[0].mxu0 %v833
      %v944 = vpop.f32.mrb[0].mxu0
      %v945 = vadd.f32 0.0, %v944
      %v946 = vpop.f32.mrb[0].mxu0
      %v947 = vpop.f32.mrb[0].mxu0
      %v948 = vadd.f32 0.0, %v947
      %v949 = vpop.f32.mrb[0].mxu0
      %950 = vmatprep.mubr.bf16.mxu0 0
      %951 = vmatmul.mubr.bf16.gmra.mrb[0].mxu0 %v836
      %v952 = vpop.f32.mrb[0].mxu0
      %v953 = vadd.f32 0.0, %v952
      %v954 = vpop.f32.mrb[0].mxu0
      %v955 = vpop.f32.mrb[0].mxu0
      %v956 = vadd.f32 0.0, %v955
      %v957 = vpop.f32.mrb[0].mxu0
      %958 = vmatprep.mubr.bf16.mxu0 0
      %959 = vmatmul.mubr.bf16.gmra.mrb[0].mxu0 %v839
      %v960 = vpop.f32.mrb[0].mxu0
      %v961 = vadd.f32 0.0, %v960
      %v962 = vpop.f32.mrb[0].mxu0
      %v963 = vpop.f32.mrb[0].mxu0
      %v964 = vadd.f32 0.0, %v963
      %v965 = vpop.f32.mrb[0].mxu0
      %966 = vmatprep.mubr.bf16.mxu0 0
      %967 = vmatmul.mubr.bf16.gmra.mrb[0].mxu0 %v842
      %v968 = vpop.f32.mrb[0].mxu0
      %v969 = vadd.f32 0.0, %v968
      %v970 = vpop.f32.mrb[0].mxu0
      %v971 = vpop.f32.mrb[0].mxu0
      %v972 = vadd.f32 0.0, %v971
      %v973 = vpop.f32.mrb[0].mxu0
      %974 = vmatprep.mubr.bf16.mxu0 0
      %975 = vmatmul.mubr.bf16.gmra.mrb[0].mxu0 %v845
      %v976 = vpop.f32.mrb[0].mxu0
      %v977 = vadd.f32 0.0, %v976
      %v978 = vpop.f32.mrb[0].mxu0
      %v979 = vpop.f32.mrb[0].mxu0
      %v980 = vadd.f32 0.0, %v979
      %v981 = vpop.f32.mrb[0].mxu0
      %982 = vmatprep.mubr.bf16.mxu0 0
      %983 = vmatmul.mubr.bf16.gmra.mrb[0].mxu0 %v848
      %v984 = vpop.f32.mrb[0].mxu0
      %v985 = vadd.f32 0.0, %v984
      %v986 = vpop.f32.mrb[0].mxu0
      %v987 = vpop.f32.mrb[0].mxu0
      %v988 = vadd.f32 0.0, %v987
      %v989 = vpop.f32.mrb[0].mxu0
      %990 = vmatprep.mubr.bf16.mxu0 0
      %991 = vmatmul.mubr.bf16.gmra.mrb[0].mxu0 %v851
      %v992 = vpop.f32.mrb[0].mxu0
      %v993 = vadd.f32 0.0, %v992
      %v994 = vpop.f32.mrb[0].mxu0
      %v995 = vpop.f32.mrb[0].mxu0
      %v996 = vadd.f32 0.0, %v995
      %v997 = vpop.f32.mrb[0].mxu0
      %998 = vmatprep.mubr.bf16.mxu0 0
      %999 = vmatmul.mubr.bf16.gmra.mrb[0].mxu0 %v854
      %v1000 = vpop.f32.mrb[0].mxu0
      %v1001 = vadd.f32 0.0, %v1000
      %v1002 = vpop.f32.mrb[0].mxu0
      %v1003 = vpop.f32.mrb[0].mxu0
      %v1004 = vadd.f32 0.0, %v1003
      %v1005 = vpop.f32.mrb[0].mxu0
      %1006 = vmatprep.mubr.bf16.mxu0 0
      %1007 = vmatmul.mubr.bf16.gmra.mrb[0].mxu0 %v857
      %v1008 = vpop.f32.mrb[0].mxu0
      %v1009 = vadd.f32 0.0, %v1008
      %v1010 = vpop.f32.mrb[0].mxu0
      %v1011 = vpop.f32.mrb[0].mxu0
      %v1012 = vadd.f32 0.0, %v1011
      %v1013 = vpop.f32.mrb[0].mxu0
      %1014 = vmatprep.mubr.bf16.mxu0 0
      %1015 = vmatmul.mubr.bf16.gmra.mrb[0].mxu0 %v860
      %v1016 = vpop.f32.mrb[0].mxu0
      %v1017 = vadd.f32 0.0, %v1016
      %v1018 = vpop.f32.mrb[0].mxu0
      %v1019 = vpop.f32.mrb[0].mxu0
      %v1020 = vadd.f32 0.0, %v1019
      %v1021 = vpop.f32.mrb[0].mxu0
      %1022 = vdwg.mxu0
      %vm1023 = vcmask 392192
      %v1024 = vsel %vm1023, %v664, 0.0
      %v1025 = vsel %vm1023, %v667, 0.0
      %v1026 = vadd.f32 %v1024, %v1025
      %v1027 = vsel %vm1023, %v672, 0.0
      %v1028 = vadd.f32 %v1026, %v1027
      %v1029 = vsel %vm1023, %v675, 0.0
      %v1030 = vadd.f32 %v1028, %v1029
      %v1031 = vsel %vm1023, %v680, 0.0
      %v1032 = vadd.f32 %v1030, %v1031
      %v1033 = vsel %vm1023, %v683, 0.0
      %v1034 = vadd.f32 %v1032, %v1033
      %v1035 = vsel %vm1023, %v688, 0.0
      %v1036 = vadd.f32 %v1034, %v1035
      %v1037 = vsel %vm1023, %v691, 0.0
      %v1038 = vadd.f32 %v1036, %v1037
      %v1039 = vsel %vm1023, %v696, 0.0
      %v1040 = vadd.f32 %v1038, %v1039
      %v1041 = vsel %vm1023, %v699, 0.0
      %v1042 = vadd.f32 %v1040, %v1041
      %v1043 = vsel %vm1023, %v704, 0.0
      %v1044 = vadd.f32 %v1042, %v1043
      %v1045 = vsel %vm1023, %v707, 0.0
      %v1046 = vadd.f32 %v1044, %v1045
      %v1047 = vsel %vm1023, %v712, 0.0
      %v1048 = vadd.f32 %v1046, %v1047
      %v1049 = vsel %vm1023, %v715, 0.0
      %v1050 = vadd.f32 %v1048, %v1049
      %v1051 = vsel %vm1023, %v720, 0.0
      %v1052 = vadd.f32 %v1050, %v1051
      %v1053 = vsel %vm1023, %v723, 0.0
      %v1054 = vadd.f32 %v1052, %v1053
      %v1055 = vsel %vm1023, %v728, 0.0
      %v1056 = vadd.f32 %v1054, %v1055
      %v1057 = vsel %vm1023, %v731, 0.0
      %v1058 = vadd.f32 %v1056, %v1057
      %v1059 = vsel %vm1023, %v736, 0.0
      %v1060 = vadd.f32 %v1058, %v1059
      %v1061 = vsel %vm1023, %v739, 0.0
      %v1062 = vadd.f32 %v1060, %v1061
      %v1063 = vsel %vm1023, %v744, 0.0
      %v1064 = vadd.f32 %v1062, %v1063
      %v1065 = vsel %vm1023, %v747, 0.0
      %v1066 = vadd.f32 %v1064, %v1065
      %v1067 = vsel %vm1023, %v752, 0.0
      %v1068 = vadd.f32 %v1066, %v1067
      %v1069 = vsel %vm1023, %v755, 0.0
      %v1070 = vadd.f32 %v1068, %v1069
      %v1071 = vsel %vm1023, %v760, 0.0
      %v1072 = vadd.f32 %v1070, %v1071
      %v1073 = vsel %vm1023, %v763, 0.0
      %v1074 = vadd.f32 %v1072, %v1073
      %v1075 = vsel %vm1023, %v768, 0.0
      %v1076 = vadd.f32 %v1074, %v1075
      %v1077 = vsel %vm1023, %v771, 0.0
      %v1078 = vadd.f32 %v1076, %v1077
      %v1079 = vsel %vm1023, %v776, 0.0
      %v1080 = vadd.f32 %v1078, %v1079
      %v1081 = vsel %vm1023, %v779, 0.0
      %v1082 = vadd.f32 %v1080, %v1081
      %v1083 = vsel %vm1023, %v784, 0.0
      %v1084 = vadd.f32 %v1082, %v1083
      %v1085 = vsel %vm1023, %v787, 0.0
      %v1086 = vadd.f32 %v1084, %v1085
      %v1087 = vrot.slane %v1086, 4
      %v1088 = vadd.f32 %v1086, %v1087
      %v1089 = vrot.slane %v1088, 2
      %v1090 = vadd.f32 %v1088, %v1089
      %v1091 = vrot.slane %v1090, 1
      %v1092 = vadd.f32 %v1090, %v1091
      %v1093 = vmul.f32 %v1092, %v355
      %v1094 = vsub.f32 %v664, %v1093
      %v1095 = vsub.f32 %v667, %v1093
      %v1096 = vsub.f32 %v672, %v1093
      %v1097 = vsub.f32 %v675, %v1093
      %v1098 = vsub.f32 %v680, %v1093
      %v1099 = vsub.f32 %v683, %v1093
      %v1100 = vsub.f32 %v688, %v1093
      %v1101 = vsub.f32 %v691, %v1093
      %v1102 = vsub.f32 %v696, %v1093
      %v1103 = vsub.f32 %v699, %v1093
      %v1104 = vsub.f32 %v704, %v1093
      %v1105 = vsub.f32 %v707, %v1093
      %v1106 = vsub.f32 %v712, %v1093
      %v1107 = vsub.f32 %v715, %v1093
      %v1108 = vsub.f32 %v720, %v1093
      %v1109 = vsub.f32 %v723, %v1093
      %v1110 = vsub.f32 %v728, %v1093
      %v1111 = vsub.f32 %v731, %v1093
      %v1112 = vsub.f32 %v736, %v1093
      %v1113 = vsub.f32 %v739, %v1093
      %v1114 = vsub.f32 %v744, %v1093
      %v1115 = vsub.f32 %v747, %v1093
      %v1116 = vsub.f32 %v752, %v1093
      %v1117 = vsub.f32 %v755, %v1093
      %v1118 = vsub.f32 %v760, %v1093
      %v1119 = vsub.f32 %v763, %v1093
      %v1120 = vsub.f32 %v768, %v1093
      %v1121 = vsub.f32 %v771, %v1093
      %v1122 = vsub.f32 %v776, %v1093
      %v1123 = vsub.f32 %v779, %v1093
      %v1124 = vsub.f32 %v784, %v1093
      %v1125 = vsub.f32 %v787, %v1093
      %v1126 = vmul.f32 %v1094, %v1094
      %v1127 = vmul.f32 %v1095, %v1095
      %v1128 = vmul.f32 %v1096, %v1096
      %v1129 = vmul.f32 %v1097, %v1097
      %v1130 = vmul.f32 %v1098, %v1098
      %v1131 = vmul.f32 %v1099, %v1099
      %v1132 = vmul.f32 %v1100, %v1100
      %v1133 = vmul.f32 %v1101, %v1101
      %v1134 = vmul.f32 %v1102, %v1102
      %v1135 = vmul.f32 %v1103, %v1103
      %v1136 = vmul.f32 %v1104, %v1104
      %v1137 = vmul.f32 %v1105, %v1105
      %v1138 = vmul.f32 %v1106, %v1106
      %v1139 = vmul.f32 %v1107, %v1107
      %v1140 = vmul.f32 %v1108, %v1108
      %v1141 = vmul.f32 %v1109, %v1109
      %v1142 = vmul.f32 %v1110, %v1110
      %v1143 = vmul.f32 %v1111, %v1111
      %v1144 = vmul.f32 %v1112, %v1112
      %v1145 = vmul.f32 %v1113, %v1113
      %v1146 = vmul.f32 %v1114, %v1114
      %v1147 = vmul.f32 %v1115, %v1115
      %v1148 = vmul.f32 %v1116, %v1116
      %v1149 = vmul.f32 %v1117, %v1117
      %v1150 = vmul.f32 %v1118, %v1118
      %v1151 = vmul.f32 %v1119, %v1119
      %v1152 = vmul.f32 %v1120, %v1120
      %v1153 = vmul.f32 %v1121, %v1121
      %v1154 = vmul.f32 %v1122, %v1122
      %v1155 = vmul.f32 %v1123, %v1123
      %v1156 = vmul.f32 %v1124, %v1124
      %v1157 = vmul.f32 %v1125, %v1125
      %v1158 = vsel %vm1023, %v1126, 0.0
      %v1159 = vsel %vm1023, %v1127, 0.0
      %v1160 = vadd.f32 %v1158, %v1159
      %v1161 = vsel %vm1023, %v1128, 0.0
      %v1162 = vadd.f32 %v1160, %v1161
      %v1163 = vsel %vm1023, %v1129, 0.0
      %v1164 = vadd.f32 %v1162, %v1163
      %v1165 = vsel %vm1023, %v1130, 0.0
      %v1166 = vadd.f32 %v1164, %v1165
      %v1167 = vsel %vm1023, %v1131, 0.0
      %v1168 = vadd.f32 %v1166, %v1167
      %v1169 = vsel %vm1023, %v1132, 0.0
      %v1170 = vadd.f32 %v1168, %v1169
      %v1171 = vsel %vm1023, %v1133, 0.0
      %v1172 = vadd.f32 %v1170, %v1171
      %v1173 = vsel %vm1023, %v1134, 0.0
      %v1174 = vadd.f32 %v1172, %v1173
      %v1175 = vsel %vm1023, %v1135, 0.0
      %v1176 = vadd.f32 %v1174, %v1175
      %v1177 = vsel %vm1023, %v1136, 0.0
      %v1178 = vadd.f32 %v1176, %v1177
      %v1179 = vsel %vm1023, %v1137, 0.0
      %v1180 = vadd.f32 %v1178, %v1179
      %v1181 = vsel %vm1023, %v1138, 0.0
      %v1182 = vadd.f32 %v1180, %v1181
      %v1183 = vsel %vm1023, %v1139, 0.0
      %v1184 = vadd.f32 %v1182, %v1183
      %v1185 = vsel %vm1023, %v1140, 0.0
      %v1186 = vadd.f32 %v1184, %v1185
      %v1187 = vsel %vm1023, %v1141, 0.0
      %v1188 = vadd.f32 %v1186, %v1187
      %v1189 = vsel %vm1023, %v1142, 0.0
      %v1190 = vadd.f32 %v1188, %v1189
      %v1191 = vsel %vm1023, %v1143, 0.0
      %v1192 = vadd.f32 %v1190, %v1191
      %v1193 = vsel %vm1023, %v1144, 0.0
      %v1194 = vadd.f32 %v1192, %v1193
      %v1195 = vsel %vm1023, %v1145, 0.0
      %v1196 = vadd.f32 %v1194, %v1195
      %v1197 = vsel %vm1023, %v1146, 0.0
      %v1198 = vadd.f32 %v1196, %v1197
      %v1199 = vsel %vm1023, %v1147, 0.0
      %v1200 = vadd.f32 %v1198, %v1199
      %v1201 = vsel %vm1023, %v1148, 0.0
      %v1202 = vadd.f32 %v1200, %v1201
      %v1203 = vsel %vm1023, %v1149, 0.0
      %v1204 = vadd.f32 %v1202, %v1203
      %v1205 = vsel %vm1023, %v1150, 0.0
      %v1206 = vadd.f32 %v1204, %v1205
      %v1207 = vsel %vm1023, %v1151, 0.0
      %v1208 = vadd.f32 %v1206, %v1207
      %v1209 = vsel %vm1023, %v1152, 0.0
      %v1210 = vadd.f32 %v1208, %v1209
      %v1211 = vsel %vm1023, %v1153, 0.0
      %v1212 = vadd.f32 %v1210, %v1211
      %v1213 = vsel %vm1023, %v1154, 0.0
      %v1214 = vadd.f32 %v1212, %v1213
      %v1215 = vsel %vm1023, %v1155, 0.0
      %v1216 = vadd.f32 %v1214, %v1215
      %v1217 = vsel %vm1023, %v1156, 0.0
      %v1218 = vadd.f32 %v1216, %v1217
      %v1219 = vsel %vm1023, %v1157, 0.0
      %v1220 = vadd.f32 %v1218, %v1219
      %v1221 = vrot.slane %v1220, 4
      %v1222 = vadd.f32 %v1220, %v1221
      %v1223 = vrot.slane %v1222, 2
      %v1224 = vadd.f32 %v1222, %v1223
      %v1225 = vrot.slane %v1224, 1
      %v1226 = vadd.f32 %v1224, %v1225
      %v1227 = vmul.f32 %v1226, %v355
      %v1228 = vadd.f32 %v1227, 1e-05
      %v1229 = vrsqrt.pop %v1228
      %v1230 = vmul.f32 %v1094, %v1229
      %v1231 = vmul.f32 %v1095, %v1229
      %v1232 = vmul.f32 %v1096, %v1229
      %v1233 = vmul.f32 %v1097, %v1229
      %v1234 = vmul.f32 %v1098, %v1229
      %v1235 = vmul.f32 %v1099, %v1229
      %v1236 = vmul.f32 %v1100, %v1229
      %v1237 = vmul.f32 %v1101, %v1229
      %v1238 = vmul.f32 %v1102, %v1229
      %v1239 = vmul.f32 %v1103, %v1229
      %v1240 = vmul.f32 %v1104, %v1229
      %v1241 = vmul.f32 %v1105, %v1229
      %v1242 = vmul.f32 %v1106, %v1229
      %v1243 = vmul.f32 %v1107, %v1229
      %v1244 = vmul.f32 %v1108, %v1229
      %v1245 = vmul.f32 %v1109, %v1229
      %v1246 = vmul.f32 %v1110, %v1229
      %v1247 = vmul.f32 %v1111, %v1229
      %v1248 = vmul.f32 %v1112, %v1229
      %v1249 = vmul.f32 %v1113, %v1229
      %v1250 = vmul.f32 %v1114, %v1229
      %v1251 = vmul.f32 %v1115, %v1229
      %v1252 = vmul.f32 %v1116, %v1229
      %v1253 = vmul.f32 %v1117, %v1229
      %v1254 = vmul.f32 %v1118, %v1229
      %v1255 = vmul.f32 %v1119, %v1229
      %v1256 = vmul.f32 %v1120, %v1229
      %v1257 = vmul.f32 %v1121, %v1229
      %v1258 = vmul.f32 %v1122, %v1229
      %v1259 = vmul.f32 %v1123, %v1229
      %v1260 = vmul.f32 %v1124, %v1229
      %v1261 = vmul.f32 %v1125, %v1229
      %v1262 = vmax.f32 %v1230, 0.0
      %v1263 = vmax.f32 %v1231, 0.0
      %v1264 = vmax.f32 %v1232, 0.0
      %v1265 = vmax.f32 %v1233, 0.0
      %v1266 = vmax.f32 %v1234, 0.0
      %v1267 = vmax.f32 %v1235, 0.0
      %v1268 = vmax.f32 %v1236, 0.0
      %v1269 = vmax.f32 %v1237, 0.0
      %v1270 = vmax.f32 %v1238, 0.0
      %v1271 = vmax.f32 %v1239, 0.0
      %v1272 = vmax.f32 %v1240, 0.0
      %v1273 = vmax.f32 %v1241, 0.0
      %v1274 = vmax.f32 %v1242, 0.0
      %v1275 = vmax.f32 %v1243, 0.0
      %v1276 = vmax.f32 %v1244, 0.0
      %v1277 = vmax.f32 %v1245, 0.0
      %v1278 = vmax.f32 %v1246, 0.0
      %v1279 = vmax.f32 %v1247, 0.0
      %v1280 = vmax.f32 %v1248, 0.0
      %v1281 = vmax.f32 %v1249, 0.0
      %v1282 = vmax.f32 %v1250, 0.0
      %v1283 = vmax.f32 %v1251, 0.0
      %v1284 = vmax.f32 %v1252, 0.0
      %v1285 = vmax.f32 %v1253, 0.0
      %v1286 = vmax.f32 %v1254, 0.0
      %v1287 = vmax.f32 %v1255, 0.0
      %v1288 = vmax.f32 %v1256, 0.0
      %v1289 = vmax.f32 %v1257, 0.0
      %v1290 = vmax.f32 %v1258, 0.0
      %v1291 = vmax.f32 %v1259, 0.0
      %v1292 = vmax.f32 %v1260, 0.0
      %v1293 = vmax.f32 %v1261, 0.0
      %v1294 = vpack.c.bf16 %v1263, %v1262
      %v1295 = vpack.c.bf16 %v1265, %v1264
      %v1296 = vpack.c.bf16 %v1267, %v1266
      %v1297 = vpack.c.bf16 %v1269, %v1268
      %v1298 = vpack.c.bf16 %v1271, %v1270
      %v1299 = vpack.c.bf16 %v1273, %v1272
      %v1300 = vpack.c.bf16 %v1275, %v1274
      %v1301 = vpack.c.bf16 %v1277, %v1276
      %v1302 = vpack.c.bf16 %v1279, %v1278
      %v1303 = vpack.c.bf16 %v1281, %v1280
      %v1304 = vpack.c.bf16 %v1283, %v1282
      %v1305 = vpack.c.bf16 %v1285, %v1284
      %v1306 = vpack.c.bf16 %v1287, %v1286
      %v1307 = vpack.c.bf16 %v1289, %v1288
      %v1308 = vpack.c.bf16 %v1291, %v1290
      %v1309 = vpack.c.bf16 %v1293, %v1292
      %v1311 = vshrl.u32 0, 16
      %v1313 = vrot.slane %v1311, 7
      %v1314 = vshll.u32 0, 16
      %v1316 = vor.u32 %v1313, %v1314
      %v1318 = vshrl.u32 %v1294, 16
      %v1320 = vrot.slane %v1318, 7
      %v1321 = vshll.u32 %v1294, 16
      %v1323 = vor.u32 %v1320, %v1321
      %v1325 = vshrl.u32 %v1295, 16
      %v1327 = vrot.slane %v1325, 7
      %v1328 = vshll.u32 %v1295, 16
      %v1330 = vor.u32 %v1327, %v1328
      %v1332 = vshrl.u32 %v1296, 16
      %v1334 = vrot.slane %v1332, 7
      %v1335 = vshll.u32 %v1296, 16
      %v1337 = vor.u32 %v1334, %v1335
      %v1339 = vshrl.u32 %v1297, 16
      %v1341 = vrot.slane %v1339, 7
      %v1342 = vshll.u32 %v1297, 16
      %v1344 = vor.u32 %v1341, %v1342
      %v1346 = vshrl.u32 %v1298, 16
      %v1348 = vrot.slane %v1346, 7
      %v1349 = vshll.u32 %v1298, 16
      %v1351 = vor.u32 %v1348, %v1349
      %v1353 = vshrl.u32 %v1299, 16
      %v1355 = vrot.slane %v1353, 7
      %v1356 = vshll.u32 %v1299, 16
      %v1358 = vor.u32 %v1355, %v1356
      %v1360 = vshrl.u32 %v1300, 16
      %v1362 = vrot.slane %v1360, 7
      %v1363 = vshll.u32 %v1300, 16
      %v1365 = vor.u32 %v1362, %v1363
      %v1367 = vshrl.u32 %v1301, 16
      %v1369 = vrot.slane %v1367, 7
      %v1370 = vshll.u32 %v1301, 16
      %v1372 = vor.u32 %v1369, %v1370
      %v1374 = vshrl.u32 %v1302, 16
      %v1376 = vrot.slane %v1374, 7
      %v1377 = vshll.u32 %v1302, 16
      %v1379 = vor.u32 %v1376, %v1377
      %v1381 = vshrl.u32 %v1303, 16
      %v1383 = vrot.slane %v1381, 7
      %v1384 = vshll.u32 %v1303, 16
      %v1386 = vor.u32 %v1383, %v1384
      %v1388 = vshrl.u32 %v1304, 16
      %v1390 = vrot.slane %v1388, 7
      %v1391 = vshll.u32 %v1304, 16
      %v1393 = vor.u32 %v1390, %v1391
      %v1395 = vshrl.u32 %v1305, 16
      %v1397 = vrot.slane %v1395, 7
      %v1398 = vshll.u32 %v1305, 16
      %v1400 = vor.u32 %v1397, %v1398
      %v1402 = vshrl.u32 %v1306, 16
      %v1404 = vrot.slane %v1402, 7
      %v1405 = vshll.u32 %v1306, 16
      %v1407 = vor.u32 %v1404, %v1405
      %v1409 = vshrl.u32 %v1307, 16
      %v1411 = vrot.slane %v1409, 7
      %v1412 = vshll.u32 %v1307, 16
      %v1414 = vor.u32 %v1411, %v1412
      %v1416 = vshrl.u32 %v1308, 16
      %v1418 = vrot.slane %v1416, 7
      %v1419 = vshll.u32 %v1308, 16
      %v1421 = vor.u32 %v1418, %v1419
      %v1423 = vshrl.u32 %v1309, 16
      %v1425 = vrot.slane %v1423, 7
      %v1426 = vshll.u32 %v1309, 16
      %v1428 = vor.u32 %v1425, %v1426
      %vm1463 = vcmask 1040384
      %vm1464 = vsmask.f32 256
      %vm1465 = vmand %vm1463, %vm1464
      %v1466 = vsel %vm1465, 0, %v1316
      %v1467 = vsel %vm1465, 0, %v1323
      %v1468 = vsel %vm1465, 0, %v1330
      %v1469 = vsel %vm1465, 0, %v1337
      %v1470 = vsel %vm1465, 0, %v1344
      %v1471 = vsel %vm1465, 0, %v1351
      %v1472 = vsel %vm1465, 0, %v1358
      %v1473 = vsel %vm1465, 0, %v1365
      %v1474 = vsel %vm1465, 0, %v1372
      %v1475 = vsel %vm1465, 0, %v1379
      %v1476 = vsel %vm1465, 0, %v1386
      %v1477 = vsel %vm1465, 0, %v1393
      %v1478 = vsel %vm1465, 0, %v1400
      %v1479 = vsel %vm1465, 0, %v1407
      %v1480 = vsel %vm1465, 0, %v1414
      %v1481 = vsel %vm1465, 0, %v1421
      %v1482 = vsel %vm1465, 0, %v1428
      %v1483 = vsel %vm1465, %v1313, 0
      %v1484 = vsel %vm1465, %v1320, 0
      %v1485 = vsel %vm1465, %v1327, 0
      %v1486 = vsel %vm1465, %v1334, 0
      %v1487 = vsel %vm1465, %v1341, 0
      %v1488 = vsel %vm1465, %v1348, 0
      %v1489 = vsel %vm1465, %v1355, 0
      %v1490 = vsel %vm1465, %v1362, 0
      %v1491 = vsel %vm1465, %v1369, 0
      %v1492 = vsel %vm1465, %v1376, 0
      %v1493 = vsel %vm1465, %v1383, 0
      %v1494 = vsel %vm1465, %v1390, 0
      %v1495 = vsel %vm1465, %v1397, 0
      %v1496 = vsel %vm1465, %v1404, 0
      %v1497 = vsel %vm1465, %v1411, 0
      %v1498 = vsel %vm1465, %v1418, 0
      %v1499 = vsel %vm1465, %v1425, 0
      %vm1500 = vsmask.f32 7424
      %v1502 = vshrl.u32 %v1466, 16
      %v1504 = vshll.u32 %v1466, 16
      %v1506 = vrot.slane %v1504, 1
      %v1507 = vor.u32 %v1502, %v1506
      %v1509 = vshll.u32 %v1483, 16
      %v1511 = vrot.slane %v1509, 1
      %v1512 = vsel %vm1500, %v1507, %v1511
      %v1514 = vshrl.u32 %v1467, 16
      %v1516 = vshll.u32 %v1467, 16
      %v1518 = vrot.slane %v1516, 1
      %v1519 = vor.u32 %v1514, %v1518
      %v1521 = vshll.u32 %v1484, 16
      %v1523 = vrot.slane %v1521, 1
      %v1524 = vsel %vm1500, %v1519, %v1523
      %v1526 = vshrl.u32 %v1468, 16
      %v1528 = vshll.u32 %v1468, 16
      %v1530 = vrot.slane %v1528, 1
      %v1531 = vor.u32 %v1526, %v1530
      %v1533 = vshll.u32 %v1485, 16
      %v1535 = vrot.slane %v1533, 1
      %v1536 = vsel %vm1500, %v1531, %v1535
      %v1538 = vshrl.u32 %v1469, 16
      %v1540 = vshll.u32 %v1469, 16
      %v1542 = vrot.slane %v1540, 1
      %v1543 = vor.u32 %v1538, %v1542
      %v1545 = vshll.u32 %v1486, 16
      %v1547 = vrot.slane %v1545, 1
      %v1548 = vsel %vm1500, %v1543, %v1547
      %v1550 = vshrl.u32 %v1470, 16
      %v1552 = vshll.u32 %v1470, 16
      %v1554 = vrot.slane %v1552, 1
      %v1555 = vor.u32 %v1550, %v1554
      %v1557 = vshll.u32 %v1487, 16
      %v1559 = vrot.slane %v1557, 1
      %v1560 = vsel %vm1500, %v1555, %v1559
      %v1562 = vshrl.u32 %v1471, 16
      %v1564 = vshll.u32 %v1471, 16
      %v1566 = vrot.slane %v1564, 1
      %v1567 = vor.u32 %v1562, %v1566
      %v1569 = vshll.u32 %v1488, 16
      %v1571 = vrot.slane %v1569, 1
      %v1572 = vsel %vm1500, %v1567, %v1571
      %v1574 = vshrl.u32 %v1472, 16
      %v1576 = vshll.u32 %v1472, 16
      %v1578 = vrot.slane %v1576, 1
      %v1579 = vor.u32 %v1574, %v1578
      %v1581 = vshll.u32 %v1489, 16
      %v1583 = vrot.slane %v1581, 1
      %v1584 = vsel %vm1500, %v1579, %v1583
      %v1586 = vshrl.u32 %v1473, 16
      %v1588 = vshll.u32 %v1473, 16
      %v1590 = vrot.slane %v1588, 1
      %v1591 = vor.u32 %v1586, %v1590
      %v1593 = vshll.u32 %v1490, 16
      %v1595 = vrot.slane %v1593, 1
      %v1596 = vsel %vm1500, %v1591, %v1595
      %v1598 = vshrl.u32 %v1474, 16
      %v1600 = vshll.u32 %v1474, 16
      %v1602 = vrot.slane %v1600, 1
      %v1603 = vor.u32 %v1598, %v1602
      %v1605 = vshll.u32 %v1491, 16
      %v1607 = vrot.slane %v1605, 1
      %v1608 = vsel %vm1500, %v1603, %v1607
      %v1610 = vshrl.u32 %v1475, 16
      %v1612 = vshll.u32 %v1475, 16
      %v1614 = vrot.slane %v1612, 1
      %v1615 = vor.u32 %v1610, %v1614
      %v1617 = vshll.u32 %v1492, 16
      %v1619 = vrot.slane %v1617, 1
      %v1620 = vsel %vm1500, %v1615, %v1619
      %v1622 = vshrl.u32 %v1476, 16
      %v1624 = vshll.u32 %v1476, 16
      %v1626 = vrot.slane %v1624, 1
      %v1627 = vor.u32 %v1622, %v1626
      %v1629 = vshll.u32 %v1493, 16
      %v1631 = vrot.slane %v1629, 1
      %v1632 = vsel %vm1500, %v1627, %v1631
      %v1634 = vshrl.u32 %v1477, 16
      %v1636 = vshll.u32 %v1477, 16
      %v1638 = vrot.slane %v1636, 1
      %v1639 = vor.u32 %v1634, %v1638
      %v1641 = vshll.u32 %v1494, 16
      %v1643 = vrot.slane %v1641, 1
      %v1644 = vsel %vm1500, %v1639, %v1643
      %v1646 = vshrl.u32 %v1478, 16
      %v1648 = vshll.u32 %v1478, 16
      %v1650 = vrot.slane %v1648, 1
      %v1651 = vor.u32 %v1646, %v1650
      %v1653 = vshll.u32 %v1495, 16
      %v1655 = vrot.slane %v1653, 1
      %v1656 = vsel %vm1500, %v1651, %v1655
      %v1658 = vshrl.u32 %v1479, 16
      %v1660 = vshll.u32 %v1479, 16
      %v1662 = vrot.slane %v1660, 1
      %v1663 = vor.u32 %v1658, %v1662
      %v1665 = vshll.u32 %v1496, 16
      %v1667 = vrot.slane %v1665, 1
      %v1668 = vsel %vm1500, %v1663, %v1667
      %v1670 = vshrl.u32 %v1480, 16
      %v1672 = vshll.u32 %v1480, 16
      %v1674 = vrot.slane %v1672, 1
      %v1675 = vor.u32 %v1670, %v1674
      %v1677 = vshll.u32 %v1497, 16
      %v1679 = vrot.slane %v1677, 1
      %v1680 = vsel %vm1500, %v1675, %v1679
      %v1682 = vshrl.u32 %v1481, 16
      %v1684 = vshll.u32 %v1481, 16
      %v1686 = vrot.slane %v1684, 1
      %v1687 = vor.u32 %v1682, %v1686
      %v1689 = vshll.u32 %v1498, 16
      %v1691 = vrot.slane %v1689, 1
      %v1692 = vsel %vm1500, %v1687, %v1691
      %vm1725 = vcmask 1046528
      %v1726 = vrot.slane %v1466, 1
      %v1727 = vrot.slane %v1483, 1
      %v1728 = vsel %vm1725, %v1726, %v1727
      %v1729 = vrot.slane %v1467, 1
      %v1730 = vrot.slane %v1484, 1
      %v1731 = vsel %vm1725, %v1729, %v1730
      %v1732 = vrot.slane %v1468, 1
      %v1733 = vrot.slane %v1485, 1
      %v1734 = vsel %vm1725, %v1732, %v1733
      %v1735 = vrot.slane %v1469, 1
      %v1736 = vrot.slane %v1486, 1
      %v1737 = vsel %vm1725, %v1735, %v1736
      %v1738 = vrot.slane %v1470, 1
      %v1739 = vrot.slane %v1487, 1
      %v1740 = vsel %vm1725, %v1738, %v1739
      %v1741 = vrot.slane %v1471, 1
      %v1742 = vrot.slane %v1488, 1
      %v1743 = vsel %vm1725, %v1741, %v1742
      %v1744 = vrot.slane %v1472, 1
      %v1745 = vrot.slane %v1489, 1
      %v1746 = vsel %vm1725, %v1744, %v1745
      %v1747 = vrot.slane %v1473, 1
      %v1748 = vrot.slane %v1490, 1
      %v1749 = vsel %vm1725, %v1747, %v1748
      %v1750 = vrot.slane %v1474, 1
      %v1751 = vrot.slane %v1491, 1
      %v1752 = vsel %vm1725, %v1750, %v1751
      %v1753 = vrot.slane %v1475, 1
      %v1754 = vrot.slane %v1492, 1
      %v1755 = vsel %vm1725, %v1753, %v1754
      %v1756 = vrot.slane %v1476, 1
      %v1757 = vrot.slane %v1493, 1
      %v1758 = vsel %vm1725, %v1756, %v1757
      %v1759 = vrot.slane %v1477, 1
      %v1760 = vrot.slane %v1494, 1
      %v1761 = vsel %vm1725, %v1759, %v1760
      %v1762 = vrot.slane %v1478, 1
      %v1763 = vrot.slane %v1495, 1
      %v1764 = vsel %vm1725, %v1762, %v1763
      %v1765 = vrot.slane %v1479, 1
      %v1766 = vrot.slane %v1496, 1
      %v1767 = vsel %vm1725, %v1765, %v1766
      %v1768 = vrot.slane %v1480, 1
      %v1769 = vrot.slane %v1497, 1
      %v1770 = vsel %vm1725, %v1768, %v1769
      %v1771 = vrot.slane %v1481, 1
      %v1772 = vrot.slane %v1498, 1
      %v1773 = vsel %vm1725, %v1771, %v1772
      %v1775 = vshrl.u32 %v1482, 16
      %v1777 = vshll.u32 %v1482, 16
      %v1779 = vrot.slane %v1777, 1
      %v1780 = vor.u32 %v1775, %v1779
      %v1782 = vshll.u32 %v1499, 16
      %v1784 = vrot.slane %v1782, 1
      %v1785 = vsel %vm1500, %v1780, %v1784
      %v1788 = vrot.slane %v1482, 1
      %v1789 = vrot.slane %v1499, 1
      %v1790 = vsel %vm1725, %v1788, %v1789
      %1791 = vrot.lane.b32.xlu0 %v1512, 48
      %v1792 = vpop.permute.xlu0 %1791
      %1793 = vrot.lane.b32.xlu0 %v1524, 48
      %v1794 = vpop.permute.xlu0 %1793
      %1795 = vrot.lane.b32.xlu0 %v1536, 48
      %v1796 = vpop.permute.xlu0 %1795
      %1797 = vrot.lane.b32.xlu0 %v1548, 48
      %v1798 = vpop.permute.xlu0 %1797
      %1799 = vrot.lane.b32.xlu0 %v1560, 48
      %v1800 = vpop.permute.xlu0 %1799
      %1801 = vrot.lane.b32.xlu0 %v1572, 48
      %v1802 = vpop.permute.xlu0 %1801
      %1803 = vrot.lane.b32.xlu0 %v1584, 48
      %v1804 = vpop.permute.xlu0 %1803
      %1805 = vrot.lane.b32.xlu0 %v1596, 48
      %v1806 = vpop.permute.xlu0 %1805
      %1807 = vrot.lane.b32.xlu0 %v1608, 48
      %v1808 = vpop.permute.xlu0 %1807
      %1809 = vrot.lane.b32.xlu0 %v1620, 48
      %v1810 = vpop.permute.xlu0 %1809
      %1811 = vrot.lane.b32.xlu0 %v1632, 48
      %v1812 = vpop.permute.xlu0 %1811
      %1813 = vrot.lane.b32.xlu0 %v1644, 48
      %v1814 = vpop.permute.xlu0 %1813
      %1815 = vrot.lane.b32.xlu0 %v1656, 48
      %v1816 = vpop.permute.xlu0 %1815
      %1817 = vrot.lane.b32.xlu0 %v1668, 48
      %v1818 = vpop.permute.xlu0 %1817
      %1819 = vrot.lane.b32.xlu0 %v1680, 48
      %v1820 = vpop.permute.xlu0 %1819
      %1821 = vrot.lane.b32.xlu0 %v1692, 48
      %v1822 = vpop.permute.xlu0 %1821
      %1823 = vrot.lane.b32.xlu0 %v1728, 96
      %v1824 = vpop.permute.xlu0 %1823
      %1825 = vrot.lane.b32.xlu0 %v1731, 96
      %v1826 = vpop.permute.xlu0 %1825
      %1827 = vrot.lane.b32.xlu0 %v1734, 96
      %v1828 = vpop.permute.xlu0 %1827
      %1829 = vrot.lane.b32.xlu0 %v1737, 96
      %v1830 = vpop.permute.xlu0 %1829
      %1831 = vrot.lane.b32.xlu0 %v1740, 96
      %v1832 = vpop.permute.xlu0 %1831
      %1833 = vrot.lane.b32.xlu0 %v1743, 96
      %v1834 = vpop.permute.xlu0 %1833
      %1835 = vrot.lane.b32.xlu0 %v1746, 96
      %v1836 = vpop.permute.xlu0 %1835
      %1837 = vrot.lane.b32.xlu0 %v1749, 96
      %v1838 = vpop.permute.xlu0 %1837
      %1839 = vrot.lane.b32.xlu0 %v1752, 96
      %v1840 = vpop.permute.xlu0 %1839
      %1841 = vrot.lane.b32.xlu0 %v1755, 96
      %v1842 = vpop.permute.xlu0 %1841
      %1843 = vrot.lane.b32.xlu0 %v1758, 96
      %v1844 = vpop.permute.xlu0 %1843
      %1845 = vrot.lane.b32.xlu0 %v1761, 96
      %v1846 = vpop.permute.xlu0 %1845
      %1847 = vrot.lane.b32.xlu0 %v1764, 96
      %v1848 = vpop.permute.xlu0 %1847
      %1849 = vrot.lane.b32.xlu0 %v1767, 96
      %v1850 = vpop.permute.xlu0 %1849
      %1851 = vrot.lane.b32.xlu0 %v1770, 96
      %v1852 = vpop.permute.xlu0 %1851
      %1853 = vrot.lane.b32.xlu0 %v1773, 96
      %v1854 = vpop.permute.xlu0 %1853
      %1855 = vrot.lane.b32.xlu0 %v1467, 16
      %v1856 = vpop.permute.xlu0 %1855
      %1857 = vrot.lane.b32.xlu0 %v1468, 16
      %v1858 = vpop.permute.xlu0 %1857
      %1859 = vrot.lane.b32.xlu0 %v1469, 16
      %v1860 = vpop.permute.xlu0 %1859
      %1861 = vrot.lane.b32.xlu0 %v1470, 16
      %v1862 = vpop.permute.xlu0 %1861
      %1863 = vrot.lane.b32.xlu0 %v1471, 16
      %v1864 = vpop.permute.xlu0 %1863
      %1865 = vrot.lane.b32.xlu0 %v1472, 16
      %v1866 = vpop.permute.xlu0 %1865
      %1867 = vrot.lane.b32.xlu0 %v1473, 16
      %v1868 = vpop.permute.xlu0 %1867
      %1869 = vrot.lane.b32.xlu0 %v1474, 16
      %v1870 = vpop.permute.xlu0 %1869
      %1871 = vrot.lane.b32.xlu0 %v1475, 16
      %v1872 = vpop.permute.xlu0 %1871
      %1873 = vrot.lane.b32.xlu0 %v1476, 16
      %v1874 = vpop.permute.xlu0 %1873
      %1875 = vrot.lane.b32.xlu0 %v1477, 16
      %v1876 = vpop.permute.xlu0 %1875
      %1877 = vrot.lane.b32.xlu0 %v1478, 16
      %v1878 = vpop.permute.xlu0 %1877
      %1879 = vrot.lane.b32.xlu0 %v1479, 16
      %v1880 = vpop.permute.xlu0 %1879
      %1881 = vrot.lane.b32.xlu0 %v1480, 16
      %v1882 = vpop.permute.xlu0 %1881
      %1883 = vrot.lane.b32.xlu0 %v1481, 16
      %v1884 = vpop.permute.xlu0 %1883
      %1885 = vrot.lane.b32.xlu0 %v1482, 16
      %v1886 = vpop.permute.xlu0 %1885
      %1887 = vrot.lane.b32.xlu0 %v1524, 64
      %v1888 = vpop.permute.xlu0 %1887
      %1889 = vrot.lane.b32.xlu0 %v1536, 64
      %v1890 = vpop.permute.xlu0 %1889
      %1891 = vrot.lane.b32.xlu0 %v1548, 64
      %v1892 = vpop.permute.xlu0 %1891
      %1893 = vrot.lane.b32.xlu0 %v1560, 64
      %v1894 = vpop.permute.xlu0 %1893
      %1895 = vrot.lane.b32.xlu0 %v1572, 64
      %v1896 = vpop.permute.xlu0 %1895
      %1897 = vrot.lane.b32.xlu0 %v1584, 64
      %v1898 = vpop.permute.xlu0 %1897
      %1899 = vrot.lane.b32.xlu0 %v1596, 64
      %v1900 = vpop.permute.xlu0 %1899
      %1901 = vrot.lane.b32.xlu0 %v1608, 64
      %v1902 = vpop.permute.xlu0 %1901
      %1903 = vrot.lane.b32.xlu0 %v1620, 64
      %v1904 = vpop.permute.xlu0 %1903
      %1905 = vrot.lane.b32.xlu0 %v1632, 64
      %v1906 = vpop.permute.xlu0 %1905
      %1907 = vrot.lane.b32.xlu0 %v1644, 64
      %v1908 = vpop.permute.xlu0 %1907
      %1909 = vrot.lane.b32.xlu0 %v1656, 64
      %v1910 = vpop.permute.xlu0 %1909
      %1911 = vrot.lane.b32.xlu0 %v1668, 64
      %v1912 = vpop.permute.xlu0 %1911
      %1913 = vrot.lane.b32.xlu0 %v1680, 64
      %v1914 = vpop.permute.xlu0 %1913
      %1915 = vrot.lane.b32.xlu0 %v1692, 64
      %v1916 = vpop.permute.xlu0 %1915
      %1917 = vrot.lane.b32.xlu0 %v1785, 64
      %v1918 = vpop.permute.xlu0 %1917
      %1919 = vrot.lane.b32.xlu0 %v1731, 112
      %v1920 = vpop.permute.xlu0 %1919
      %1921 = vrot.lane.b32.xlu0 %v1734, 112
      %v1922 = vpop.permute.xlu0 %1921
      %1923 = vrot.lane.b32.xlu0 %v1737, 112
      %v1924 = vpop.permute.xlu0 %1923
      %1925 = vrot.lane.b32.xlu0 %v1740, 112
      %v1926 = vpop.permute.xlu0 %1925
      %1927 = vrot.lane.b32.xlu0 %v1743, 112
      %v1928 = vpop.permute.xlu0 %1927
      %1929 = vrot.lane.b32.xlu0 %v1746, 112
      %v1930 = vpop.permute.xlu0 %1929
      %1931 = vrot.lane.b32.xlu0 %v1749, 112
      %v1932 = vpop.permute.xlu0 %1931
      %1933 = vrot.lane.b32.xlu0 %v1752, 112
      %v1934 = vpop.permute.xlu0 %1933
      %1935 = vrot.lane.b32.xlu0 %v1755, 112
      %v1936 = vpop.permute.xlu0 %1935
      %1937 = vrot.lane.b32.xlu0 %v1758, 112
      %v1938 = vpop.permute.xlu0 %1937
      %1939 = vrot.lane.b32.xlu0 %v1761, 112
      %v1940 = vpop.permute.xlu0 %1939
      %1941 = vrot.lane.b32.xlu0 %v1764, 112
      %v1942 = vpop.permute.xlu0 %1941
      %1943 = vrot.lane.b32.xlu0 %v1767, 112
      %v1944 = vpop.permute.xlu0 %1943
      %1945 = vrot.lane.b32.xlu0 %v1770, 112
      %v1946 = vpop.permute.xlu0 %1945
      %1947 = vrot.lane.b32.xlu0 %v1773, 112
      %v1948 = vpop.permute.xlu0 %1947
      %1949 = vrot.lane.b32.xlu0 %v1790, 112
      %v1950 = vpop.permute.xlu0 %1949
      %1951 = vrot.lane.b32.xlu0 %v1468, 32
      %v1952 = vpop.permute.xlu0 %1951
      %1953 = vrot.lane.b32.xlu0 %v1469, 32
      %v1954 = vpop.permute.xlu0 %1953
      %1955 = vrot.lane.b32.xlu0 %v1470, 32
      %v1956 = vpop.permute.xlu0 %1955
      %1957 = vrot.lane.b32.xlu0 %v1471, 32
      %v1958 = vpop.permute.xlu0 %1957
      %1959 = vrot.lane.b32.xlu0 %v1472, 32
      %v1960 = vpop.permute.xlu0 %1959
      %1961 = vrot.lane.b32.xlu0 %v1473, 32
      %v1962 = vpop.permute.xlu0 %1961
      %1963 = vrot.lane.b32.xlu0 %v1474, 32
      %v1964 = vpop.permute.xlu0 %1963
      %1965 = vrot.lane.b32.xlu0 %v1475, 32
      %v1966 = vpop.permute.xlu0 %1965
      %1967 = vrot.lane.b32.xlu0 %v1476, 32
      %v1968 = vpop.permute.xlu0 %1967
      %1969 = vrot.lane.b32.xlu0 %v1477, 32
      %v1970 = vpop.permute.xlu0 %1969
      %1971 = vrot.lane.b32.xlu0 %v1478, 32
      %v1972 = vpop.permute.xlu0 %1971
      %1973 = vrot.lane.b32.xlu0 %v1479, 32
      %v1974 = vpop.permute.xlu0 %1973
      %1975 = vrot.lane.b32.xlu0 %v1480, 32
      %v1976 = vpop.permute.xlu0 %1975
      %1977 = vrot.lane.b32.xlu0 %v1481, 32
      %v1978 = vpop.permute.xlu0 %1977
      %1979 = vrot.lane.b32.xlu0 %v1482, 32
      %v1980 = vpop.permute.xlu0 %1979
      %1981 = vrot.lane.b32.xlu0 %v1466, 32
      %v1982 = vpop.permute.xlu0 %1981
      %1983 = vrot.lane.b32.xlu0 %v1536, 80
      %v1984 = vpop.permute.xlu0 %1983
      %1985 = vrot.lane.b32.xlu0 %v1548, 80
      %v1986 = vpop.permute.xlu0 %1985
      %1987 = vrot.lane.b32.xlu0 %v1560, 80
      %v1988 = vpop.permute.xlu0 %1987
      %1989 = vrot.lane.b32.xlu0 %v1572, 80
      %v1990 = vpop.permute.xlu0 %1989
      %1991 = vrot.lane.b32.xlu0 %v1584, 80
      %v1992 = vpop.permute.xlu0 %1991
      %1993 = vrot.lane.b32.xlu0 %v1596, 80
      %v1994 = vpop.permute.xlu0 %1993
      %1995 = vrot.lane.b32.xlu0 %v1608, 80
      %v1996 = vpop.permute.xlu0 %1995
      %1997 = vrot.lane.b32.xlu0 %v1620, 80
      %v1998 = vpop.permute.xlu0 %1997
      %1999 = vrot.lane.b32.xlu0 %v1632, 80
      %v2000 = vpop.permute.xlu0 %1999
      %2001 = vrot.lane.b32.xlu0 %v1644, 80
      %v2002 = vpop.permute.xlu0 %2001
      %2003 = vrot.lane.b32.xlu0 %v1656, 80
      %v2004 = vpop.permute.xlu0 %2003
      %2005 = vrot.lane.b32.xlu0 %v1668, 80
      %v2006 = vpop.permute.xlu0 %2005
      %2007 = vrot.lane.b32.xlu0 %v1680, 80
      %v2008 = vpop.permute.xlu0 %2007
      %2009 = vrot.lane.b32.xlu0 %v1692, 80
      %v2010 = vpop.permute.xlu0 %2009
      %2011 = vrot.lane.b32.xlu0 %v1785, 80
      %v2012 = vpop.permute.xlu0 %2011
      %2013 = vrot.lane.b32.xlu0 %v1512, 80
      %v2014 = vpop.permute.xlu0 %2013
      %v2016 = vsel %vm1023, %v1466, %v1792
      %v2018 = vsel %vm1023, %v1467, %v1794
      %v2020 = vsel %vm1023, %v1468, %v1796
      %v2022 = vsel %vm1023, %v1469, %v1798
      %v2024 = vsel %vm1023, %v1470, %v1800
      %v2026 = vsel %vm1023, %v1471, %v1802
      %v2028 = vsel %vm1023, %v1472, %v1804
      %v2030 = vsel %vm1023, %v1473, %v1806
      %v2032 = vsel %vm1023, %v1474, %v1808
      %v2034 = vsel %vm1023, %v1475, %v1810
      %v2036 = vsel %vm1023, %v1476, %v1812
      %v2038 = vsel %vm1023, %v1477, %v1814
      %v2040 = vsel %vm1023, %v1478, %v1816
      %v2042 = vsel %vm1023, %v1479, %v1818
      %v2044 = vsel %vm1023, %v1480, %v1820
      %v2046 = vsel %vm1023, %v1481, %v1822
      %vm2047 = vcmask 785408
      %v2049 = vsel %vm2047, %v2016, %v1824
      %v2052 = vsel %vm2047, %v2018, %v1826
      %v2055 = vsel %vm2047, %v2020, %v1828
      %v2058 = vsel %vm2047, %v2022, %v1830
      %v2061 = vsel %vm2047, %v2024, %v1832
      %v2064 = vsel %vm2047, %v2026, %v1834
      %v2067 = vsel %vm2047, %v2028, %v1836
      %v2070 = vsel %vm2047, %v2030, %v1838
      %v2073 = vsel %vm2047, %v2032, %v1840
      %v2076 = vsel %vm2047, %v2034, %v1842
      %v2079 = vsel %vm2047, %v2036, %v1844
      %v2082 = vsel %vm2047, %v2038, %v1846
      %v2085 = vsel %vm2047, %v2040, %v1848
      %v2088 = vsel %vm2047, %v2042, %v1850
      %v2091 = vsel %vm2047, %v2044, %v1852
      %v2094 = vsel %vm2047, %v2046, %v1854
      %v2097 = vsel %vm285, %v1824, %v1856
      %v2099 = vsel %vm285, %v1826, %v1858
      %v2101 = vsel %vm285, %v1828, %v1860
      %v2103 = vsel %vm285, %v1830, %v1862
      %v2105 = vsel %vm285, %v1832, %v1864
      %v2107 = vsel %vm285, %v1834, %v1866
      %v2109 = vsel %vm285, %v1836, %v1868
      %v2111 = vsel %vm285, %v1838, %v1870
      %v2113 = vsel %vm285, %v1840, %v1872
      %v2115 = vsel %vm285, %v1842, %v1874
      %v2117 = vsel %vm285, %v1844, %v1876
      %v2119 = vsel %vm285, %v1846, %v1878
      %v2121 = vsel %vm285, %v1848, %v1880
      %v2123 = vsel %vm285, %v1850, %v1882
      %v2125 = vsel %vm285, %v1852, %v1884
      %v2127 = vsel %vm285, %v1854, %v1886
      %vm2128 = vcmask 523264
      %v2130 = vsel %vm2128, %v2097, %v1888
      %v2132 = vsel %vm2128, %v2099, %v1890
      %v2134 = vsel %vm2128, %v2101, %v1892
      %v2136 = vsel %vm2128, %v2103, %v1894
      %v2138 = vsel %vm2128, %v2105, %v1896
      %v2140 = vsel %vm2128, %v2107, %v1898
      %v2142 = vsel %vm2128, %v2109, %v1900
      %v2144 = vsel %vm2128, %v2111, %v1902
      %v2146 = vsel %vm2128, %v2113, %v1904
      %v2148 = vsel %vm2128, %v2115, %v1906
      %v2150 = vsel %vm2128, %v2117, %v1908
      %v2152 = vsel %vm2128, %v2119, %v1910
      %v2154 = vsel %vm2128, %v2121, %v1912
      %v2156 = vsel %vm2128, %v2123, %v1914
      %v2158 = vsel %vm2128, %v2125, %v1916
      %v2160 = vsel %vm2128, %v2127, %v1918
      %vm2161 = vcmask 916480
      %v2163 = vsel %vm2161, %v2130, %v1920
      %v2166 = vsel %vm2161, %v2132, %v1922
      %v2169 = vsel %vm2161, %v2134, %v1924
      %v2172 = vsel %vm2161, %v2136, %v1926
      %v2175 = vsel %vm2161, %v2138, %v1928
      %v2178 = vsel %vm2161, %v2140, %v1930
      %v2181 = vsel %vm2161, %v2142, %v1932
      %v2184 = vsel %vm2161, %v2144, %v1934
      %v2187 = vsel %vm2161, %v2146, %v1936
      %v2190 = vsel %vm2161, %v2148, %v1938
      %v2193 = vsel %vm2161, %v2150, %v1940
      %v2196 = vsel %vm2161, %v2152, %v1942
      %v2199 = vsel %vm2161, %v2154, %v1944
      %v2202 = vsel %vm2161, %v2156, %v1946
      %v2205 = vsel %vm2161, %v2158, %v1948
      %v2208 = vsel %vm2161, %v2160, %v1950
      %vm2210 = vcmask 261120
      %v2212 = vsel %vm2210, %v1920, %v1952
      %v2214 = vsel %vm2210, %v1922, %v1954
      %v2216 = vsel %vm2210, %v1924, %v1956
      %v2218 = vsel %vm2210, %v1926, %v1958
      %v2220 = vsel %vm2210, %v1928, %v1960
      %v2222 = vsel %vm2210, %v1930, %v1962
      %v2224 = vsel %vm2210, %v1932, %v1964
      %v2226 = vsel %vm2210, %v1934, %v1966
      %v2228 = vsel %vm2210, %v1936, %v1968
      %v2230 = vsel %vm2210, %v1938, %v1970
      %v2232 = vsel %vm2210, %v1940, %v1972
      %v2234 = vsel %vm2210, %v1942, %v1974
      %v2236 = vsel %vm2210, %v1944, %v1976
      %v2238 = vsel %vm2210, %v1946, %v1978
      %v2240 = vsel %vm2210, %v1948, %v1980
      %v2242 = vsel %vm2210, %v1950, %v1982
      %vm2243 = vcmask 654336
      %v2245 = vsel %vm2243, %v2212, %v1984
      %v2248 = vsel %vm2243, %v2214, %v1986
      %v2251 = vsel %vm2243, %v2216, %v1988
      %v2254 = vsel %vm2243, %v2218, %v1990
      %v2257 = vsel %vm2243, %v2220, %v1992
      %v2260 = vsel %vm2243, %v2222, %v1994
      %v2263 = vsel %vm2243, %v2224, %v1996
      %v2266 = vsel %vm2243, %v2226, %v1998
      %v2269 = vsel %vm2243, %v2228, %v2000
      %v2272 = vsel %vm2243, %v2230, %v2002
      %v2275 = vsel %vm2243, %v2232, %v2004
      %v2278 = vsel %vm2243, %v2234, %v2006
      %v2281 = vsel %vm2243, %v2236, %v2008
      %v2284 = vsel %vm2243, %v2238, %v2010
      %v2287 = vsel %vm2243, %v2240, %v2012
      %v2290 = vsel %vm2243, %v2242, %v2014
      %v2292 = vld [vmem:[%s2] sm:$0xf]
      %v2293 = vld [vmem:[%s2 + $0x4] sm:$0xf]
      %v2294 = vld [vmem:[%s2 + $0x8] sm:$0xf]
      %v2295 = vld [vmem:[%s2 + $0xc] sm:$0xf]
      %v2296 = vld [vmem:[%s2 + $0x10] sm:$0xf]
      %v2297 = vld [vmem:[%s2 + $0x14] sm:$0xf]
      %v2298 = vld [vmem:[%s2 + $0x18] sm:$0xf]
      %v2299 = vld [vmem:[%s2 + $0x1c] sm:$0xf]
      %v2300 = vld [vmem:[%s2 + $0x20] sm:$0xf]
      %v2301 = vld [vmem:[%s2 + $0x24] sm:$0xf]
      %v2302 = vld [vmem:[%s2 + $0x28] sm:$0xf]
      %v2303 = vld [vmem:[%s2 + $0x2c] sm:$0xf]
      %v2304 = vld [vmem:[%s2 + $0x30] sm:$0xf]
      %v2305 = vld [vmem:[%s2 + $0x34] sm:$0xf]
      %v2306 = vld [vmem:[%s2 + $0x38] sm:$0xf]
      %v2307 = vld [vmem:[%s2 + $0x3c] sm:$0xf]
      %v2308 = vld [vmem:[%s2 + $0x40] sm:$0xf]
      %v2309 = vld [vmem:[%s2 + $0x44] sm:$0xf]
      %v2310 = vld [vmem:[%s2 + $0x48] sm:$0xf]
      %v2311 = vld [vmem:[%s2 + $0x4c] sm:$0xf]
      %v2312 = vld [vmem:[%s2 + $0x50] sm:$0xf]
      %v2313 = vld [vmem:[%s2 + $0x54] sm:$0xf]
      %v2314 = vld [vmem:[%s2 + $0x58] sm:$0xf]
      %v2315 = vld [vmem:[%s2 + $0x5c] sm:$0xf]
      %v2316 = vld [vmem:[%s2 + $0x60] sm:$0xf]
      %v2317 = vld [vmem:[%s2 + $0x64] sm:$0xf]
      %v2318 = vld [vmem:[%s2 + $0x68] sm:$0xf]
      %v2319 = vld [vmem:[%s2 + $0x6c] sm:$0xf]
      %v2320 = vld [vmem:[%s2 + $0x70] sm:$0xf]
      %v2321 = vld [vmem:[%s2 + $0x74] sm:$0xf]
      %v2322 = vld [vmem:[%s2 + $0x78] sm:$0xf]
      %v2323 = vld [vmem:[%s2 + $0x7c] sm:$0xf]
      %v2324 = vld [vmem:[%s2 + $0x80] sm:$0xf]
      %v2325 = vld [vmem:[%s2 + $0x84] sm:$0xf]
      %v2326 = vld [vmem:[%s2 + $0x88] sm:$0xf]
      %v2327 = vld [vmem:[%s2 + $0x8c] sm:$0xf]
      %v2328 = vld [vmem:[%s2 + $0x90] sm:$0xf]
      %v2329 = vld [vmem:[%s2 + $0x94] sm:$0xf]
      %v2330 = vld [vmem:[%s2 + $0x98] sm:$0xf]
      %v2331 = vld [vmem:[%s2 + $0x9c] sm:$0xf]
      %v2332 = vld [vmem:[%s2 + $0xa0] sm:$0xf]
      %v2333 = vld [vmem:[%s2 + $0xa4] sm:$0xf]
      %v2334 = vld [vmem:[%s2 + $0xa8] sm:$0xf]
      %v2335 = vld [vmem:[%s2 + $0xac] sm:$0xf]
      %v2336 = vld [vmem:[%s2 + $0xb0] sm:$0xf]
      %v2337 = vld [vmem:[%s2 + $0xb4] sm:$0xf]
      %v2338 = vld [vmem:[%s2 + $0xb8] sm:$0xf]
      %v2339 = vld [vmem:[%s2 + $0xbc] sm:$0xf]
      %v2340 = vld [vmem:[%s2 + $0xc0] sm:$0xf]
      %v2341 = vld [vmem:[%s2 + $0xc4] sm:$0xf]
      %v2342 = vld [vmem:[%s2 + $0xc8] sm:$0xf]
      %v2343 = vld [vmem:[%s2 + $0xcc] sm:$0xf]
      %v2344 = vld [vmem:[%s2 + $0xd0] sm:$0xf]
      %v2345 = vld [vmem:[%s2 + $0xd4] sm:$0xf]
      %v2400 = vunpack.c.l.b16 %v2292
      %v2401 = vunpack.c.l.b16 %v2293
      %v2402 = vunpack.c.l.b16 %v2294
      %v2403 = vunpack.c.l.b16 %v2295
      %v2404 = vunpack.c.l.b16 %v2296
      %v2405 = vunpack.c.l.b16 %v2297
      %v2406 = vunpack.c.l.b16 %v2298
      %v2407 = vunpack.c.l.b16 %v2299
      %v2408 = vunpack.c.l.b16 %v2300
      %v2409 = vunpack.c.l.b16 %v2301
      %v2410 = vunpack.c.l.b16 %v2302
      %v2411 = vunpack.c.l.b16 %v2303
      %v2412 = vunpack.c.l.b16 %v2304
      %v2413 = vunpack.c.l.b16 %v2305
      %v2414 = vunpack.c.l.b16 %v2306
      %v2415 = vunpack.c.l.b16 %v2307
      %v2416 = vunpack.c.l.b16 %v2308
      %v2417 = vunpack.c.l.b16 %v2309
      %v2418 = vunpack.c.l.b16 %v2310
      %v2419 = vunpack.c.l.b16 %v2311
      %v2420 = vunpack.c.l.b16 %v2312
      %v2421 = vunpack.c.l.b16 %v2313
      %v2422 = vunpack.c.l.b16 %v2314
      %v2423 = vunpack.c.l.b16 %v2315
      %v2424 = vunpack.c.l.b16 %v2316
      %v2425 = vunpack.c.l.b16 %v2317
      %v2426 = vunpack.c.l.b16 %v2318
      %v2427 = vunpack.c.l.b16 %v2319
      %v2428 = vunpack.c.l.b16 %v2320
      %v2429 = vunpack.c.l.b16 %v2321
      %v2430 = vunpack.c.l.b16 %v2322
      %v2431 = vunpack.c.l.b16 %v2323
      %v2432 = vunpack.c.l.b16 %v2324
      %v2433 = vunpack.c.l.b16 %v2325
      %v2434 = vunpack.c.l.b16 %v2326
      %v2435 = vunpack.c.l.b16 %v2327
      %v2436 = vunpack.c.l.b16 %v2328
      %v2437 = vunpack.c.l.b16 %v2329
      %v2438 = vunpack.c.l.b16 %v2330
      %v2439 = vunpack.c.l.b16 %v2331
      %v2440 = vunpack.c.l.b16 %v2332
      %v2441 = vunpack.c.l.b16 %v2333
      %v2442 = vunpack.c.l.b16 %v2334
      %v2443 = vunpack.c.l.b16 %v2335
      %v2444 = vunpack.c.l.b16 %v2336
      %v2445 = vunpack.c.l.b16 %v2337
      %v2446 = vunpack.c.l.b16 %v2338
      %v2447 = vunpack.c.l.b16 %v2339
      %v2448 = vunpack.c.l.b16 %v2340
      %v2449 = vunpack.c.l.b16 %v2341
      %v2450 = vunpack.c.l.b16 %v2342
      %v2451 = vunpack.c.l.b16 %v2343
      %v2452 = vunpack.c.l.b16 %v2344
      %v2453 = vunpack.c.l.b16 %v2345
      %v2454 = vpack.c.b16 %v2401, %v2400
      %v2455 = vpack.c.b16 %v2403, %v2402
      %v2456 = vpack.c.b16 %v2405, %v2404
      %v2457 = vpack.c.b16 %v2407, %v2406
      %v2458 = vpack.c.b16 %v2409, %v2408
      %v2459 = vpack.c.b16 %v2411, %v2410
      %v2460 = vpack.c.b16 %v2413, %v2412
      %v2461 = vpack.c.b16 %v2415, %v2414
      %v2462 = vpack.c.b16 %v2417, %v2416
      %v2463 = vpack.c.b16 %v2419, %v2418
      %v2464 = vpack.c.b16 %v2421, %v2420
      %v2465 = vpack.c.b16 %v2423, %v2422
      %v2466 = vpack.c.b16 %v2425, %v2424
      %v2467 = vpack.c.b16 %v2427, %v2426
      %v2468 = vpack.c.b16 %v2429, %v2428
      %v2469 = vpack.c.b16 %v2431, %v2430
      %v2470 = vpack.c.b16 %v2433, %v2432
      %v2471 = vpack.c.b16 %v2435, %v2434
      %v2472 = vpack.c.b16 %v2437, %v2436
      %v2473 = vpack.c.b16 %v2439, %v2438
      %v2474 = vpack.c.b16 %v2441, %v2440
      %v2475 = vpack.c.b16 %v2443, %v2442
      %v2476 = vpack.c.b16 %v2445, %v2444
      %v2477 = vpack.c.b16 %v2447, %v2446
      %v2478 = vpack.c.b16 %v2449, %v2448
      %v2479 = vpack.c.b16 %v2451, %v2450
      %v2480 = vpack.c.b16 %v2453, %v2452
      %v2509 = vsel %vm1023, %v1734, 0
      %v2512 = vsel %vm1023, %v1737, 0
      %v2515 = vsel %vm1023, %v1740, 0
      %v2518 = vsel %vm1023, %v1743, 0
      %v2521 = vsel %vm1023, %v1746, 0
      %v2524 = vsel %vm1023, %v1749, 0
      %v2527 = vsel %vm1023, %v1752, 0
      %v2530 = vsel %vm1023, %v1755, 0
      %v2533 = vsel %vm1023, %v1758, 0
      %v2536 = vsel %vm1023, %v1761, 0
      %v2539 = vsel %vm1023, %v1764, 0
      %v2542 = vsel %vm1023, %v1767, 0
      %v2545 = vsel %vm1023, %v1770, 0
      %v2548 = vsel %vm1023, %v1773, 0
      %v2551 = vsel %vm1023, %v1790, 0
      %v2554 = vsel %vm1023, %v1728, 0
      %2556 = vmatprep.subr.bf16.mxu0 0
      %2557 = vmatpush1.bf16.msra.mxu0 %v2454
      %2558 = vmatprep.subr.bf16.mxu0 0
      %2559 = vmatpush1.bf16.msra.mxu0 %v2455
      %2560 = vmatprep.subr.bf16.mxu0 0
      %2561 = vmatpush1.bf16.msra.mxu0 %v2456
      %2562 = vmatprep.subr.bf16.mxu0 0
      %2563 = vmatpush1.bf16.msra.mxu0 %v2457
      %2564 = vmatprep.subr.bf16.mxu0 0
      %2565 = vmatpush1.bf16.msra.mxu0 %v2458
      %2566 = vmatprep.subr.bf16.mxu0 0
      %2567 = vmatpush1.bf16.msra.mxu0 %v2459
      %2568 = vmatprep.subr.bf16.mxu0 0
      %2569 = vmatpush1.bf16.msra.mxu0 %v2460
      %2570 = vmatprep.subr.bf16.mxu0 0
      %2571 = vmatpush1.bf16.msra.mxu0 %v2461
      %2572 = vmatprep.subr.bf16.mxu0 0
      %2573 = vmatpush1.bf16.msra.mxu0 %v2462
      %2574 = vmatprep.subr.bf16.mxu0 0
      %2575 = vmatpush1.bf16.msra.mxu0 %v2463
      %2576 = vmatprep.subr.bf16.mxu0 0
      %2577 = vmatpush1.bf16.msra.mxu0 %v2464
      %2578 = vmatprep.subr.bf16.mxu0 0
      %2579 = vmatpush1.bf16.msra.mxu0 %v2465
      %2580 = vmatprep.subr.bf16.mxu0 0
      %2581 = vmatpush1.bf16.msra.mxu0 %v2466
      %2582 = vmatprep.subr.bf16.mxu0 0
      %2583 = vmatpush1.bf16.msra.mxu0 %v2467
      %2584 = vmatprep.subr.bf16.mxu0 0
      %2585 = vmatpush1.bf16.msra.mxu0 %v2468
      %2586 = vmatprep.subr.bf16.mxu0 0
      %2587 = vmatpush1.bf16.msra.mxu0 %v2469
      %2588 = vmatprep.mubr.bf16.mxu0 %v2163
      %2589 = vmatmul.mubr.bf16.gmra.mrb[0].mxu0 %v2049
      %v2590 = vpop.f32.mrb[0].mxu0
      %v2591 = vadd.f32 0.0, %v2590
      %v2592 = vpop.f32.mrb[0].mxu0
      %v2593 = vpop.f32.mrb[0].mxu0
      %v2594 = vadd.f32 0.0, %v2593
      %v2595 = vpop.f32.mrb[0].mxu0
      %2596 = vmatprep.mubr.bf16.mxu0 %v2166
      %2597 = vmatmul.mubr.bf16.gmra.mrb[0].mxu0 %v2052
      %v2598 = vpop.f32.mrb[0].mxu0
      %v2599 = vadd.f32 0.0, %v2598
      %v2600 = vpop.f32.mrb[0].mxu0
      %v2601 = vpop.f32.mrb[0].mxu0
      %v2602 = vadd.f32 0.0, %v2601
      %v2603 = vpop.f32.mrb[0].mxu0
      %2604 = vmatprep.mubr.bf16.mxu0 %v2169
      %2605 = vmatmul.mubr.bf16.gmra.mrb[0].mxu0 %v2055
      %v2606 = vpop.f32.mrb[0].mxu0
      %v2607 = vadd.f32 0.0, %v2606
      %v2608 = vpop.f32.mrb[0].mxu0
      %v2609 = vpop.f32.mrb[0].mxu0
      %v2610 = vadd.f32 0.0, %v2609
      %v2611 = vpop.f32.mrb[0].mxu0
      %2612 = vmatprep.mubr.bf16.mxu0 %v2172
      %2613 = vmatmul.mubr.bf16.gmra.mrb[0].mxu0 %v2058
      %v2614 = vpop.f32.mrb[0].mxu0
      %v2615 = vadd.f32 0.0, %v2614
      %v2616 = vpop.f32.mrb[0].mxu0
      %v2617 = vpop.f32.mrb[0].mxu0
      %v2618 = vadd.f32 0.0, %v2617
      %v2619 = vpop.f32.mrb[0].mxu0
      %2620 = vmatprep.mubr.bf16.mxu0 %v2175
      %2621 = vmatmul.mubr.bf16.gmra.mrb[0].mxu0 %v2061
      %v2622 = vpop.f32.mrb[0].mxu0
      %v2623 = vadd.f32 0.0, %v2622
      %v2624 = vpop.f32.mrb[0].mxu0
      %v2625 = vpop.f32.mrb[0].mxu0
      %v2626 = vadd.f32 0.0, %v2625
      %v2627 = vpop.f32.mrb[0].mxu0
      %2628 = vmatprep.mubr.bf16.mxu0 %v2178
      %2629 = vmatmul.mubr.bf16.gmra.mrb[0].mxu0 %v2064
      %v2630 = vpop.f32.mrb[0].mxu0
      %v2631 = vadd.f32 0.0, %v2630
      %v2632 = vpop.f32.mrb[0].mxu0
      %v2633 = vpop.f32.mrb[0].mxu0
      %v2634 = vadd.f32 0.0, %v2633
      %v2635 = vpop.f32.mrb[0].mxu0
      %2636 = vmatprep.mubr.bf16.mxu0 %v2181
      %2637 = vmatmul.mubr.bf16.gmra.mrb[0].mxu0 %v2067
      %v2638 = vpop.f32.mrb[0].mxu0
      %v2639 = vadd.f32 0.0, %v2638
      %v2640 = vpop.f32.mrb[0].mxu0
      %v2641 = vpop.f32.mrb[0].mxu0
      %v2642 = vadd.f32 0.0, %v2641
      %v2643 = vpop.f32.mrb[0].mxu0
      %2644 = vmatprep.mubr.bf16.mxu0 %v2184
      %2645 = vmatmul.mubr.bf16.gmra.mrb[0].mxu0 %v2070
      %v2646 = vpop.f32.mrb[0].mxu0
      %v2647 = vadd.f32 0.0, %v2646
      %v2648 = vpop.f32.mrb[0].mxu0
      %v2649 = vpop.f32.mrb[0].mxu0
      %v2650 = vadd.f32 0.0, %v2649
      %v2651 = vpop.f32.mrb[0].mxu0
      %2652 = vmatprep.mubr.bf16.mxu0 %v2187
      %2653 = vmatmul.mubr.bf16.gmra.mrb[0].mxu0 %v2073
      %v2654 = vpop.f32.mrb[0].mxu0
      %v2655 = vadd.f32 0.0, %v2654
      %v2656 = vpop.f32.mrb[0].mxu0
      %v2657 = vpop.f32.mrb[0].mxu0
      %v2658 = vadd.f32 0.0, %v2657
      %v2659 = vpop.f32.mrb[0].mxu0
      %2660 = vmatprep.mubr.bf16.mxu0 %v2190
      %2661 = vmatmul.mubr.bf16.gmra.mrb[0].mxu0 %v2076
      %v2662 = vpop.f32.mrb[0].mxu0
      %v2663 = vadd.f32 0.0, %v2662
      %v2664 = vpop.f32.mrb[0].mxu0
      %v2665 = vpop.f32.mrb[0].mxu0
      %v2666 = vadd.f32 0.0, %v2665
      %v2667 = vpop.f32.mrb[0].mxu0
      %2668 = vmatprep.mubr.bf16.mxu0 %v2193
      %2669 = vmatmul.mubr.bf16.gmra.mrb[0].mxu0 %v2079
      %v2670 = vpop.f32.mrb[0].mxu0
      %v2671 = vadd.f32 0.0, %v2670
      %v2672 = vpop.f32.mrb[0].mxu0
      %v2673 = vpop.f32.mrb[0].mxu0
      %v2674 = vadd.f32 0.0, %v2673
      %v2675 = vpop.f32.mrb[0].mxu0
      %2676 = vmatprep.mubr.bf16.mxu0 %v2196
      %2677 = vmatmul.mubr.bf16.gmra.mrb[0].mxu0 %v2082
      %v2678 = vpop.f32.mrb[0].mxu0
      %v2679 = vadd.f32 0.0, %v2678
      %v2680 = vpop.f32.mrb[0].mxu0
      %v2681 = vpop.f32.mrb[0].mxu0
      %v2682 = vadd.f32 0.0, %v2681
      %v2683 = vpop.f32.mrb[0].mxu0
      %2684 = vmatprep.mubr.bf16.mxu0 %v2199
      %2685 = vmatmul.mubr.bf16.gmra.mrb[0].mxu0 %v2085
      %v2686 = vpop.f32.mrb[0].mxu0
      %v2687 = vadd.f32 0.0, %v2686
      %v2688 = vpop.f32.mrb[0].mxu0
      %v2689 = vpop.f32.mrb[0].mxu0
      %v2690 = vadd.f32 0.0, %v2689
      %v2691 = vpop.f32.mrb[0].mxu0
      %2692 = vmatprep.mubr.bf16.mxu0 %v2202
      %2693 = vmatmul.mubr.bf16.gmra.mrb[0].mxu0 %v2088
      %v2694 = vpop.f32.mrb[0].mxu0
      %v2695 = vadd.f32 0.0, %v2694
      %v2696 = vpop.f32.mrb[0].mxu0
      %v2697 = vpop.f32.mrb[0].mxu0
      %v2698 = vadd.f32 0.0, %v2697
      %v2699 = vpop.f32.mrb[0].mxu0
      %2700 = vmatprep.mubr.bf16.mxu0 %v2205
      %2701 = vmatmul.mubr.bf16.gmra.mrb[0].mxu0 %v2091
      %v2702 = vpop.f32.mrb[0].mxu0
      %v2703 = vadd.f32 0.0, %v2702
      %v2704 = vpop.f32.mrb[0].mxu0
      %v2705 = vpop.f32.mrb[0].mxu0
      %v2706 = vadd.f32 0.0, %v2705
      %v2707 = vpop.f32.mrb[0].mxu0
      %2708 = vmatprep.mubr.bf16.mxu0 %v2208
      %2709 = vmatmul.mubr.bf16.gmra.mrb[0].mxu0 %v2094
      %v2710 = vpop.f32.mrb[0].mxu0
      %v2711 = vadd.f32 0.0, %v2710
      %v2712 = vpop.f32.mrb[0].mxu0
      %v2713 = vpop.f32.mrb[0].mxu0
      %v2714 = vadd.f32 0.0, %v2713
      %v2715 = vpop.f32.mrb[0].mxu0
      %2716 = vdwg.mxu0
      %2717 = vmatprep.subr.bf16.mxu0 0
      %2718 = vmatpush1.bf16.msra.mxu0 %v2470
      %2719 = vmatprep.subr.bf16.mxu0 0
      %2720 = vmatpush1.bf16.msra.mxu0 %v2471
      %2721 = vmatprep.subr.bf16.mxu0 0
      %2722 = vmatpush1.bf16.msra.mxu0 %v2472
      %2723 = vmatprep.subr.bf16.mxu0 0
      %2724 = vmatpush1.bf16.msra.mxu0 %v2473
      %2725 = vmatprep.subr.bf16.mxu0 0
      %2726 = vmatpush1.bf16.msra.mxu0 %v2474
      %2727 = vmatprep.subr.bf16.mxu0 0
      %2728 = vmatpush1.bf16.msra.mxu0 %v2475
      %2729 = vmatprep.subr.bf16.mxu0 0
      %2730 = vmatpush1.bf16.msra.mxu0 %v2476
      %2731 = vmatprep.subr.bf16.mxu0 0
      %2732 = vmatpush1.bf16.msra.mxu0 %v2477
      %2733 = vmatprep.subr.bf16.mxu0 0
      %2734 = vmatpush1.bf16.msra.mxu0 %v2478
      %2735 = vmatprep.subr.bf16.mxu0 0
      %2736 = vmatpush1.bf16.msra.mxu0 %v2479
      %2737 = vmatprep.subr.bf16.mxu0 0
      %2738 = vmatpush1.bf16.msra.mxu0 %v2480
      %2739 = vmatprep.subr.bf16.mxu0 0
      %2740 = vmatpush1.bf16.msra.mxu0 0
      %2741 = vmatprep.subr.bf16.mxu0 0
      %2742 = vmatpush1.bf16.msra.mxu0 0
      %2743 = vmatprep.subr.bf16.mxu0 0
      %2744 = vmatpush1.bf16.msra.mxu0 0
      %2745 = vmatprep.subr.bf16.mxu0 0
      %2746 = vmatpush1.bf16.msra.mxu0 0
      %2747 = vmatprep.subr.bf16.mxu0 0
      %2748 = vmatpush1.bf16.msra.mxu0 0
      %2749 = vmatprep.mubr.bf16.mxu0 %v2509
      %2750 = vmatmul.mubr.bf16.gmra.mrb[0].mxu0 %v2245
      %v2751 = vpop.f32.mrb[0].mxu0
      %v2752 = vadd.f32 %v2591, %v2751
      %v2753 = vpop.f32.mrb[0].mxu0
      %v2754 = vpop.f32.mrb[0].mxu0
      %v2755 = vadd.f32 %v2594, %v2754
      %v2756 = vpop.f32.mrb[0].mxu0
      %2757 = vmatprep.mubr.bf16.mxu0 %v2512
      %2758 = vmatmul.mubr.bf16.gmra.mrb[0].mxu0 %v2248
      %v2759 = vpop.f32.mrb[0].mxu0
      %v2760 = vadd.f32 %v2599, %v2759
      %v2761 = vpop.f32.mrb[0].mxu0
      %v2762 = vpop.f32.mrb[0].mxu0
      %v2763 = vadd.f32 %v2602, %v2762
      %v2764 = vpop.f32.mrb[0].mxu0
      %2765 = vmatprep.mubr.bf16.mxu0 %v2515
      %2766 = vmatmul.mubr.bf16.gmra.mrb[0].mxu0 %v2251
      %v2767 = vpop.f32.mrb[0].mxu0
      %v2768 = vadd.f32 %v2607, %v2767
      %v2769 = vpop.f32.mrb[0].mxu0
      %v2770 = vpop.f32.mrb[0].mxu0
      %v2771 = vadd.f32 %v2610, %v2770
      %v2772 = vpop.f32.mrb[0].mxu0
      %2773 = vmatprep.mubr.bf16.mxu0 %v2518
      %2774 = vmatmul.mubr.bf16.gmra.mrb[0].mxu0 %v2254
      %v2775 = vpop.f32.mrb[0].mxu0
      %v2776 = vadd.f32 %v2615, %v2775
      %v2777 = vpop.f32.mrb[0].mxu0
      %v2778 = vpop.f32.mrb[0].mxu0
      %v2779 = vadd.f32 %v2618, %v2778
      %v2780 = vpop.f32.mrb[0].mxu0
      %2781 = vmatprep.mubr.bf16.mxu0 %v2521
      %2782 = vmatmul.mubr.bf16.gmra.mrb[0].mxu0 %v2257
      %v2783 = vpop.f32.mrb[0].mxu0
      %v2784 = vadd.f32 %v2623, %v2783
      %v2785 = vpop.f32.mrb[0].mxu0
      %v2786 = vpop.f32.mrb[0].mxu0
      %v2787 = vadd.f32 %v2626, %v2786
      %v2788 = vpop.f32.mrb[0].mxu0
      %2789 = vmatprep.mubr.bf16.mxu0 %v2524
      %2790 = vmatmul.mubr.bf16.gmra.mrb[0].mxu0 %v2260
      %v2791 = vpop.f32.mrb[0].mxu0
      %v2792 = vadd.f32 %v2631, %v2791
      %v2793 = vpop.f32.mrb[0].mxu0
      %v2794 = vpop.f32.mrb[0].mxu0
      %v2795 = vadd.f32 %v2634, %v2794
      %v2796 = vpop.f32.mrb[0].mxu0
      %2797 = vmatprep.mubr.bf16.mxu0 %v2527
      %2798 = vmatmul.mubr.bf16.gmra.mrb[0].mxu0 %v2263
      %v2799 = vpop.f32.mrb[0].mxu0
      %v2800 = vadd.f32 %v2639, %v2799
      %v2801 = vpop.f32.mrb[0].mxu0
      %v2802 = vpop.f32.mrb[0].mxu0
      %v2803 = vadd.f32 %v2642, %v2802
      %v2804 = vpop.f32.mrb[0].mxu0
      %2805 = vmatprep.mubr.bf16.mxu0 %v2530
      %2806 = vmatmul.mubr.bf16.gmra.mrb[0].mxu0 %v2266
      %v2807 = vpop.f32.mrb[0].mxu0
      %v2808 = vadd.f32 %v2647, %v2807
      %v2809 = vpop.f32.mrb[0].mxu0
      %v2810 = vpop.f32.mrb[0].mxu0
      %v2811 = vadd.f32 %v2650, %v2810
      %v2812 = vpop.f32.mrb[0].mxu0
      %2813 = vmatprep.mubr.bf16.mxu0 %v2533
      %2814 = vmatmul.mubr.bf16.gmra.mrb[0].mxu0 %v2269
      %v2815 = vpop.f32.mrb[0].mxu0
      %v2816 = vadd.f32 %v2655, %v2815
      %v2817 = vpop.f32.mrb[0].mxu0
      %v2818 = vpop.f32.mrb[0].mxu0
      %v2819 = vadd.f32 %v2658, %v2818
      %v2820 = vpop.f32.mrb[0].mxu0
      %2821 = vmatprep.mubr.bf16.mxu0 %v2536
      %2822 = vmatmul.mubr.bf16.gmra.mrb[0].mxu0 %v2272
      %v2823 = vpop.f32.mrb[0].mxu0
      %v2824 = vadd.f32 %v2663, %v2823
      %v2825 = vpop.f32.mrb[0].mxu0
      %v2826 = vpop.f32.mrb[0].mxu0
      %v2827 = vadd.f32 %v2666, %v2826
      %v2828 = vpop.f32.mrb[0].mxu0
      %2829 = vmatprep.mubr.bf16.mxu0 %v2539
      %2830 = vmatmul.mubr.bf16.gmra.mrb[0].mxu0 %v2275
      %v2831 = vpop.f32.mrb[0].mxu0
      %v2832 = vadd.f32 %v2671, %v2831
      %v2833 = vpop.f32.mrb[0].mxu0
      %v2834 = vpop.f32.mrb[0].mxu0
      %v2835 = vadd.f32 %v2674, %v2834
      %v2836 = vpop.f32.mrb[0].mxu0
      %2837 = vmatprep.mubr.bf16.mxu0 %v2542
      %2838 = vmatmul.mubr.bf16.gmra.mrb[0].mxu0 %v2278
      %v2839 = vpop.f32.mrb[0].mxu0
      %v2840 = vadd.f32 %v2679, %v2839
      %v2841 = vpop.f32.mrb[0].mxu0
      %v2842 = vpop.f32.mrb[0].mxu0
      %v2843 = vadd.f32 %v2682, %v2842
      %v2844 = vpop.f32.mrb[0].mxu0
      %2845 = vmatprep.mubr.bf16.mxu0 %v2545
      %2846 = vmatmul.mubr.bf16.gmra.mrb[0].mxu0 %v2281
      %v2847 = vpop.f32.mrb[0].mxu0
      %v2848 = vadd.f32 %v2687, %v2847
      %v2849 = vpop.f32.mrb[0].mxu0
      %v2850 = vpop.f32.mrb[0].mxu0
      %v2851 = vadd.f32 %v2690, %v2850
      %v2852 = vpop.f32.mrb[0].mxu0
      %2853 = vmatprep.mubr.bf16.mxu0 %v2548
      %2854 = vmatmul.mubr.bf16.gmra.mrb[0].mxu0 %v2284
      %v2855 = vpop.f32.mrb[0].mxu0
      %v2856 = vadd.f32 %v2695, %v2855
      %v2857 = vpop.f32.mrb[0].mxu0
      %v2858 = vpop.f32.mrb[0].mxu0
      %v2859 = vadd.f32 %v2698, %v2858
      %v2860 = vpop.f32.mrb[0].mxu0
      %2861 = vmatprep.mubr.bf16.mxu0 %v2551
      %2862 = vmatmul.mubr.bf16.gmra.mrb[0].mxu0 %v2287
      %v2863 = vpop.f32.mrb[0].mxu0
      %v2864 = vadd.f32 %v2703, %v2863
      %v2865 = vpop.f32.mrb[0].mxu0
      %v2866 = vpop.f32.mrb[0].mxu0
      %v2867 = vadd.f32 %v2706, %v2866
      %v2868 = vpop.f32.mrb[0].mxu0
      %2869 = vmatprep.mubr.bf16.mxu0 %v2554
      %2870 = vmatmul.mubr.bf16.gmra.mrb[0].mxu0 %v2290
      %v2871 = vpop.f32.mrb[0].mxu0
      %v2872 = vadd.f32 %v2711, %v2871
      %v2873 = vpop.f32.mrb[0].mxu0
      %v2874 = vpop.f32.mrb[0].mxu0
      %v2875 = vadd.f32 %v2714, %v2874
      %v2876 = vpop.f32.mrb[0].mxu0
      %2877 = vdwg.mxu0
      %v2878 = vsel %vm1023, %v2752, 0.0
      %v2879 = vsel %vm1023, %v2755, 0.0
      %v2880 = vadd.f32 %v2878, %v2879
      %v2881 = vsel %vm1023, %v2760, 0.0
      %v2882 = vadd.f32 %v2880, %v2881
      %v2883 = vsel %vm1023, %v2763, 0.0
      %v2884 = vadd.f32 %v2882, %v2883
      %v2885 = vsel %vm1023, %v2768, 0.0
      %v2886 = vadd.f32 %v2884, %v2885
      %v2887 = vsel %vm1023, %v2771, 0.0
      %v2888 = vadd.f32 %v2886, %v2887
      %v2889 = vsel %vm1023, %v2776, 0.0
      %v2890 = vadd.f32 %v2888, %v2889
      %v2891 = vsel %vm1023, %v2779, 0.0
      %v2892 = vadd.f32 %v2890, %v2891
      %v2893 = vsel %vm1023, %v2784, 0.0
      %v2894 = vadd.f32 %v2892, %v2893
      %v2895 = vsel %vm1023, %v2787, 0.0
      %v2896 = vadd.f32 %v2894, %v2895
      %v2897 = vsel %vm1023, %v2792, 0.0
      %v2898 = vadd.f32 %v2896, %v2897
      %v2899 = vsel %vm1023, %v2795, 0.0
      %v2900 = vadd.f32 %v2898, %v2899
      %v2901 = vsel %vm1023, %v2800, 0.0
      %v2902 = vadd.f32 %v2900, %v2901
      %v2903 = vsel %vm1023, %v2803, 0.0
      %v2904 = vadd.f32 %v2902, %v2903
      %v2905 = vsel %vm1023, %v2808, 0.0
      %v2906 = vadd.f32 %v2904, %v2905
      %v2907 = vsel %vm1023, %v2811, 0.0
      %v2908 = vadd.f32 %v2906, %v2907
      %v2909 = vsel %vm1023, %v2816, 0.0
      %v2910 = vadd.f32 %v2908, %v2909
      %v2911 = vsel %vm1023, %v2819, 0.0
      %v2912 = vadd.f32 %v2910, %v2911
      %v2913 = vsel %vm1023, %v2824, 0.0
      %v2914 = vadd.f32 %v2912, %v2913
      %v2915 = vsel %vm1023, %v2827, 0.0
      %v2916 = vadd.f32 %v2914, %v2915
      %v2917 = vsel %vm1023, %v2832, 0.0
      %v2918 = vadd.f32 %v2916, %v2917
      %v2919 = vsel %vm1023, %v2835, 0.0
      %v2920 = vadd.f32 %v2918, %v2919
      %v2921 = vsel %vm1023, %v2840, 0.0
      %v2922 = vadd.f32 %v2920, %v2921
      %v2923 = vsel %vm1023, %v2843, 0.0
      %v2924 = vadd.f32 %v2922, %v2923
      %v2925 = vsel %vm1023, %v2848, 0.0
      %v2926 = vadd.f32 %v2924, %v2925
      %v2927 = vsel %vm1023, %v2851, 0.0
      %v2928 = vadd.f32 %v2926, %v2927
      %v2929 = vsel %vm1023, %v2856, 0.0
      %v2930 = vadd.f32 %v2928, %v2929
      %v2931 = vsel %vm1023, %v2859, 0.0
      %v2932 = vadd.f32 %v2930, %v2931
      %v2933 = vsel %vm1023, %v2864, 0.0
      %v2934 = vadd.f32 %v2932, %v2933
      %v2935 = vsel %vm1023, %v2867, 0.0
      %v2936 = vadd.f32 %v2934, %v2935
      %v2937 = vsel %vm1023, %v2872, 0.0
      %v2938 = vadd.f32 %v2936, %v2937
      %v2939 = vsel %vm1023, %v2875, 0.0
      %v2940 = vadd.f32 %v2938, %v2939
      %v2941 = vrot.slane %v2940, 4
      %v2942 = vadd.f32 %v2940, %v2941
      %v2943 = vrot.slane %v2942, 2
      %v2944 = vadd.f32 %v2942, %v2943
      %v2945 = vrot.slane %v2944, 1
      %v2946 = vadd.f32 %v2944, %v2945
      %v2947 = vmul.f32 %v2946, %v355
      %v2948 = vsub.f32 %v2752, %v2947
      %v2949 = vsub.f32 %v2755, %v2947
      %v2950 = vsub.f32 %v2760, %v2947
      %v2951 = vsub.f32 %v2763, %v2947
      %v2952 = vsub.f32 %v2768, %v2947
      %v2953 = vsub.f32 %v2771, %v2947
      %v2954 = vsub.f32 %v2776, %v2947
      %v2955 = vsub.f32 %v2779, %v2947
      %v2956 = vsub.f32 %v2784, %v2947
      %v2957 = vsub.f32 %v2787, %v2947
      %v2958 = vsub.f32 %v2792, %v2947
      %v2959 = vsub.f32 %v2795, %v2947
      %v2960 = vsub.f32 %v2800, %v2947
      %v2961 = vsub.f32 %v2803, %v2947
      %v2962 = vsub.f32 %v2808, %v2947
      %v2963 = vsub.f32 %v2811, %v2947
      %v2964 = vsub.f32 %v2816, %v2947
      %v2965 = vsub.f32 %v2819, %v2947
      %v2966 = vsub.f32 %v2824, %v2947
      %v2967 = vsub.f32 %v2827, %v2947
      %v2968 = vsub.f32 %v2832, %v2947
      %v2969 = vsub.f32 %v2835, %v2947
      %v2970 = vsub.f32 %v2840, %v2947
      %v2971 = vsub.f32 %v2843, %v2947
      %v2972 = vsub.f32 %v2848, %v2947
      %v2973 = vsub.f32 %v2851, %v2947
      %v2974 = vsub.f32 %v2856, %v2947
      %v2975 = vsub.f32 %v2859, %v2947
      %v2976 = vsub.f32 %v2864, %v2947
      %v2977 = vsub.f32 %v2867, %v2947
      %v2978 = vsub.f32 %v2872, %v2947
      %v2979 = vsub.f32 %v2875, %v2947
      %v2980 = vmul.f32 %v2948, %v2948
      %v2981 = vmul.f32 %v2949, %v2949
      %v2982 = vmul.f32 %v2950, %v2950
      %v2983 = vmul.f32 %v2951, %v2951
      %v2984 = vmul.f32 %v2952, %v2952
      %v2985 = vmul.f32 %v2953, %v2953
      %v2986 = vmul.f32 %v2954, %v2954
      %v2987 = vmul.f32 %v2955, %v2955
      %v2988 = vmul.f32 %v2956, %v2956
      %v2989 = vmul.f32 %v2957, %v2957
      %v2990 = vmul.f32 %v2958, %v2958
      %v2991 = vmul.f32 %v2959, %v2959
      %v2992 = vmul.f32 %v2960, %v2960
      %v2993 = vmul.f32 %v2961, %v2961
      %v2994 = vmul.f32 %v2962, %v2962
      %v2995 = vmul.f32 %v2963, %v2963
      %v2996 = vmul.f32 %v2964, %v2964
      %v2997 = vmul.f32 %v2965, %v2965
      %v2998 = vmul.f32 %v2966, %v2966
      %v2999 = vmul.f32 %v2967, %v2967
      %v3000 = vmul.f32 %v2968, %v2968
      %v3001 = vmul.f32 %v2969, %v2969
      %v3002 = vmul.f32 %v2970, %v2970
      %v3003 = vmul.f32 %v2971, %v2971
      %v3004 = vmul.f32 %v2972, %v2972
      %v3005 = vmul.f32 %v2973, %v2973
      %v3006 = vmul.f32 %v2974, %v2974
      %v3007 = vmul.f32 %v2975, %v2975
      %v3008 = vmul.f32 %v2976, %v2976
      %v3009 = vmul.f32 %v2977, %v2977
      %v3010 = vmul.f32 %v2978, %v2978
      %v3011 = vmul.f32 %v2979, %v2979
      %v3012 = vsel %vm1023, %v2980, 0.0
      %v3013 = vsel %vm1023, %v2981, 0.0
      %v3014 = vadd.f32 %v3012, %v3013
      %v3015 = vsel %vm1023, %v2982, 0.0
      %v3016 = vadd.f32 %v3014, %v3015
      %v3017 = vsel %vm1023, %v2983, 0.0
      %v3018 = vadd.f32 %v3016, %v3017
      %v3019 = vsel %vm1023, %v2984, 0.0
      %v3020 = vadd.f32 %v3018, %v3019
      %v3021 = vsel %vm1023, %v2985, 0.0
      %v3022 = vadd.f32 %v3020, %v3021
      %v3023 = vsel %vm1023, %v2986, 0.0
      %v3024 = vadd.f32 %v3022, %v3023
      %v3025 = vsel %vm1023, %v2987, 0.0
      %v3026 = vadd.f32 %v3024, %v3025
      %v3027 = vsel %vm1023, %v2988, 0.0
      %v3028 = vadd.f32 %v3026, %v3027
      %v3029 = vsel %vm1023, %v2989, 0.0
      %v3030 = vadd.f32 %v3028, %v3029
      %v3031 = vsel %vm1023, %v2990, 0.0
      %v3032 = vadd.f32 %v3030, %v3031
      %v3033 = vsel %vm1023, %v2991, 0.0
      %v3034 = vadd.f32 %v3032, %v3033
      %v3035 = vsel %vm1023, %v2992, 0.0
      %v3036 = vadd.f32 %v3034, %v3035
      %v3037 = vsel %vm1023, %v2993, 0.0
      %v3038 = vadd.f32 %v3036, %v3037
      %v3039 = vsel %vm1023, %v2994, 0.0
      %v3040 = vadd.f32 %v3038, %v3039
      %v3041 = vsel %vm1023, %v2995, 0.0
      %v3042 = vadd.f32 %v3040, %v3041
      %v3043 = vsel %vm1023, %v2996, 0.0
      %v3044 = vadd.f32 %v3042, %v3043
      %v3045 = vsel %vm1023, %v2997, 0.0
      %v3046 = vadd.f32 %v3044, %v3045
      %v3047 = vsel %vm1023, %v2998, 0.0
      %v3048 = vadd.f32 %v3046, %v3047
      %v3049 = vsel %vm1023, %v2999, 0.0
      %v3050 = vadd.f32 %v3048, %v3049
      %v3051 = vsel %vm1023, %v3000, 0.0
      %v3052 = vadd.f32 %v3050, %v3051
      %v3053 = vsel %vm1023, %v3001, 0.0
      %v3054 = vadd.f32 %v3052, %v3053
      %v3055 = vsel %vm1023, %v3002, 0.0
      %v3056 = vadd.f32 %v3054, %v3055
      %v3057 = vsel %vm1023, %v3003, 0.0
      %v3058 = vadd.f32 %v3056, %v3057
      %v3059 = vsel %vm1023, %v3004, 0.0
      %v3060 = vadd.f32 %v3058, %v3059
      %v3061 = vsel %vm1023, %v3005, 0.0
      %v3062 = vadd.f32 %v3060, %v3061
      %v3063 = vsel %vm1023, %v3006, 0.0
      %v3064 = vadd.f32 %v3062, %v3063
      %v3065 = vsel %vm1023, %v3007, 0.0
      %v3066 = vadd.f32 %v3064, %v3065
      %v3067 = vsel %vm1023, %v3008, 0.0
      %v3068 = vadd.f32 %v3066, %v3067
      %v3069 = vsel %vm1023, %v3009, 0.0
      %v3070 = vadd.f32 %v3068, %v3069
      %v3071 = vsel %vm1023, %v3010, 0.0
      %v3072 = vadd.f32 %v3070, %v3071
      %v3073 = vsel %vm1023, %v3011, 0.0
      %v3074 = vadd.f32 %v3072, %v3073
      %v3075 = vrot.slane %v3074, 4
      %v3076 = vadd.f32 %v3074, %v3075
      %v3077 = vrot.slane %v3076, 2
      %v3078 = vadd.f32 %v3076, %v3077
      %v3079 = vrot.slane %v3078, 1
      %v3080 = vadd.f32 %v3078, %v3079
      %v3081 = vmul.f32 %v3080, %v355
      %v3082 = vadd.f32 %v3081, 1e-05
      %v3083 = vrsqrt.pop %v3082
      %v3084 = vmul.f32 %v2948, %v3083
      %v3085 = vmul.f32 %v2949, %v3083
      %v3086 = vmul.f32 %v2950, %v3083
      %v3087 = vmul.f32 %v2951, %v3083
      %v3088 = vmul.f32 %v2952, %v3083
      %v3089 = vmul.f32 %v2953, %v3083
      %v3090 = vmul.f32 %v2954, %v3083
      %v3091 = vmul.f32 %v2955, %v3083
      %v3092 = vmul.f32 %v2956, %v3083
      %v3093 = vmul.f32 %v2957, %v3083
      %v3094 = vmul.f32 %v2958, %v3083
      %v3095 = vmul.f32 %v2959, %v3083
      %v3096 = vmul.f32 %v2960, %v3083
      %v3097 = vmul.f32 %v2961, %v3083
      %v3098 = vmul.f32 %v2962, %v3083
      %v3099 = vmul.f32 %v2963, %v3083
      %v3100 = vmul.f32 %v2964, %v3083
      %v3101 = vmul.f32 %v2965, %v3083
      %v3102 = vmul.f32 %v2966, %v3083
      %v3103 = vmul.f32 %v2967, %v3083
      %v3104 = vmul.f32 %v2968, %v3083
      %v3105 = vmul.f32 %v2969, %v3083
      %v3106 = vmul.f32 %v2970, %v3083
      %v3107 = vmul.f32 %v2971, %v3083
      %v3108 = vmul.f32 %v2972, %v3083
      %v3109 = vmul.f32 %v2973, %v3083
      %v3110 = vmul.f32 %v2974, %v3083
      %v3111 = vmul.f32 %v2975, %v3083
      %v3112 = vmul.f32 %v2976, %v3083
      %v3113 = vmul.f32 %v2977, %v3083
      %v3114 = vmul.f32 %v2978, %v3083
      %v3115 = vmul.f32 %v2979, %v3083
      %v3116 = vmax.f32 %v3084, 0.0
      %v3117 = vmax.f32 %v3085, 0.0
      %v3118 = vmax.f32 %v3086, 0.0
      %v3119 = vmax.f32 %v3087, 0.0
      %v3120 = vmax.f32 %v3088, 0.0
      %v3121 = vmax.f32 %v3089, 0.0
      %v3122 = vmax.f32 %v3090, 0.0
      %v3123 = vmax.f32 %v3091, 0.0
      %v3124 = vmax.f32 %v3092, 0.0
      %v3125 = vmax.f32 %v3093, 0.0
      %v3126 = vmax.f32 %v3094, 0.0
      %v3127 = vmax.f32 %v3095, 0.0
      %v3128 = vmax.f32 %v3096, 0.0
      %v3129 = vmax.f32 %v3097, 0.0
      %v3130 = vmax.f32 %v3098, 0.0
      %v3131 = vmax.f32 %v3099, 0.0
      %v3132 = vmax.f32 %v3100, 0.0
      %v3133 = vmax.f32 %v3101, 0.0
      %v3134 = vmax.f32 %v3102, 0.0
      %v3135 = vmax.f32 %v3103, 0.0
      %v3136 = vmax.f32 %v3104, 0.0
      %v3137 = vmax.f32 %v3105, 0.0
      %v3138 = vmax.f32 %v3106, 0.0
      %v3139 = vmax.f32 %v3107, 0.0
      %v3140 = vmax.f32 %v3108, 0.0
      %v3141 = vmax.f32 %v3109, 0.0
      %v3142 = vmax.f32 %v3110, 0.0
      %v3143 = vmax.f32 %v3111, 0.0
      %v3144 = vmax.f32 %v3112, 0.0
      %v3145 = vmax.f32 %v3113, 0.0
      %v3146 = vmax.f32 %v3114, 0.0
      %v3147 = vmax.f32 %v3115, 0.0
      %v3148 = vpack.c.bf16 %v3117, %v3116
      %v3149 = vpack.c.bf16 %v3119, %v3118
      %v3150 = vpack.c.bf16 %v3121, %v3120
      %v3151 = vpack.c.bf16 %v3123, %v3122
      %v3152 = vpack.c.bf16 %v3125, %v3124
      %v3153 = vpack.c.bf16 %v3127, %v3126
      %v3154 = vpack.c.bf16 %v3129, %v3128
      %v3155 = vpack.c.bf16 %v3131, %v3130
      %v3156 = vpack.c.bf16 %v3133, %v3132
      %v3157 = vpack.c.bf16 %v3135, %v3134
      %v3158 = vpack.c.bf16 %v3137, %v3136
      %v3159 = vpack.c.bf16 %v3139, %v3138
      %v3160 = vpack.c.bf16 %v3141, %v3140
      %v3161 = vpack.c.bf16 %v3143, %v3142
      %v3162 = vpack.c.bf16 %v3145, %v3144
      %v3163 = vpack.c.bf16 %v3147, %v3146
      %v3181 = vrot.slane 0, 7
      %v3182 = vrot.slane %v3148, 7
      %v3183 = vrot.slane %v3149, 7
      %v3184 = vrot.slane %v3150, 7
      %v3185 = vrot.slane %v3151, 7
      %v3186 = vrot.slane %v3152, 7
      %v3187 = vrot.slane %v3153, 7
      %v3188 = vrot.slane %v3154, 7
      %v3189 = vrot.slane %v3155, 7
      %v3190 = vrot.slane %v3156, 7
      %v3191 = vrot.slane %v3157, 7
      %v3192 = vrot.slane %v3158, 7
      %v3193 = vrot.slane %v3159, 7
      %v3194 = vrot.slane %v3160, 7
      %v3195 = vrot.slane %v3161, 7
      %v3196 = vrot.slane %v3162, 7
      %v3197 = vrot.slane %v3163, 7
      %vm3198 = vcmask 1040384
      %v3200 = vsel %vm3198, 0, %v3181
      %v3202 = vsel %vm3198, 0, %v3182
      %v3204 = vsel %vm3198, 0, %v3183
      %v3206 = vsel %vm3198, 0, %v3184
      %v3208 = vsel %vm3198, 0, %v3185
      %v3210 = vsel %vm3198, 0, %v3186
      %v3212 = vsel %vm3198, 0, %v3187
      %v3214 = vsel %vm3198, 0, %v3188
      %v3216 = vsel %vm3198, 0, %v3189
      %v3218 = vsel %vm3198, 0, %v3190
      %v3220 = vsel %vm3198, 0, %v3191
      %v3222 = vsel %vm3198, 0, %v3192
      %v3224 = vsel %vm3198, 0, %v3193
      %v3226 = vsel %vm3198, 0, %v3194
      %v3228 = vsel %vm3198, 0, %v3195
      %v3230 = vsel %vm3198, 0, %v3196
      %v3232 = vsel %vm3198, 0, %v3197
      %v3233 = vsel %vm3198, %v3181, 0
      %v3234 = vsel %vm3198, %v3182, 0
      %v3235 = vsel %vm3198, %v3183, 0
      %v3236 = vsel %vm3198, %v3184, 0
      %v3237 = vsel %vm3198, %v3185, 0
      %v3238 = vsel %vm3198, %v3186, 0
      %v3239 = vsel %vm3198, %v3187, 0
      %v3240 = vsel %vm3198, %v3188, 0
      %v3241 = vsel %vm3198, %v3189, 0
      %v3242 = vsel %vm3198, %v3190, 0
      %v3243 = vsel %vm3198, %v3191, 0
      %v3244 = vsel %vm3198, %v3192, 0
      %v3245 = vsel %vm3198, %v3193, 0
      %v3246 = vsel %vm3198, %v3194, 0
      %v3247 = vsel %vm3198, %v3195, 0
      %v3248 = vsel %vm3198, %v3196, 0
      %v3249 = vsel %vm3198, %v3197, 0
      %v3280 = vrot.slane %v3200, 1
      %v3281 = vrot.slane %v3233, 1
      %v3282 = vsel %vm1725, %v3280, %v3281
      %v3283 = vrot.slane %v3202, 1
      %v3284 = vrot.slane %v3234, 1
      %v3285 = vsel %vm1725, %v3283, %v3284
      %v3286 = vrot.slane %v3204, 1
      %v3287 = vrot.slane %v3235, 1
      %v3288 = vsel %vm1725, %v3286, %v3287
      %v3289 = vrot.slane %v3206, 1
      %v3290 = vrot.slane %v3236, 1
      %v3291 = vsel %vm1725, %v3289, %v3290
      %v3292 = vrot.slane %v3208, 1
      %v3293 = vrot.slane %v3237, 1
      %v3294 = vsel %vm1725, %v3292, %v3293
      %v3295 = vrot.slane %v3210, 1
      %v3296 = vrot.slane %v3238, 1
      %v3297 = vsel %vm1725, %v3295, %v3296
      %v3298 = vrot.slane %v3212, 1
      %v3299 = vrot.slane %v3239, 1
      %v3300 = vsel %vm1725, %v3298, %v3299
      %v3301 = vrot.slane %v3214, 1
      %v3302 = vrot.slane %v3240, 1
      %v3303 = vsel %vm1725, %v3301, %v3302
      %v3304 = vrot.slane %v3216, 1
      %v3305 = vrot.slane %v3241, 1
      %v3306 = vsel %vm1725, %v3304, %v3305
      %v3307 = vrot.slane %v3218, 1
      %v3308 = vrot.slane %v3242, 1
      %v3309 = vsel %vm1725, %v3307, %v3308
      %v3310 = vrot.slane %v3220, 1
      %v3311 = vrot.slane %v3243, 1
      %v3312 = vsel %vm1725, %v3310, %v3311
      %v3313 = vrot.slane %v3222, 1
      %v3314 = vrot.slane %v3244, 1
      %v3315 = vsel %vm1725, %v3313, %v3314
      %v3316 = vrot.slane %v3224, 1
      %v3317 = vrot.slane %v3245, 1
      %v3318 = vsel %vm1725, %v3316, %v3317
      %v3319 = vrot.slane %v3226, 1
      %v3320 = vrot.slane %v3246, 1
      %v3321 = vsel %vm1725, %v3319, %v3320
      %v3322 = vrot.slane %v3228, 1
      %v3323 = vrot.slane %v3247, 1
      %v3324 = vsel %vm1725, %v3322, %v3323
      %vm3325 = vcmask 1045504
      %v3326 = vrot.slane %v3200, 2
      %v3327 = vrot.slane %v3233, 2
      %v3328 = vsel %vm3325, %v3326, %v3327
      %v3329 = vrot.slane %v3202, 2
      %v3330 = vrot.slane %v3234, 2
      %v3331 = vsel %vm3325, %v3329, %v3330
      %v3332 = vrot.slane %v3204, 2
      %v3333 = vrot.slane %v3235, 2
      %v3334 = vsel %vm3325, %v3332, %v3333
      %v3335 = vrot.slane %v3206, 2
      %v3336 = vrot.slane %v3236, 2
      %v3337 = vsel %vm3325, %v3335, %v3336
      %v3338 = vrot.slane %v3208, 2
      %v3339 = vrot.slane %v3237, 2
      %v3340 = vsel %vm3325, %v3338, %v3339
      %v3341 = vrot.slane %v3210, 2
      %v3342 = vrot.slane %v3238, 2
      %v3343 = vsel %vm3325, %v3341, %v3342
      %v3344 = vrot.slane %v3212, 2
      %v3345 = vrot.slane %v3239, 2
      %v3346 = vsel %vm3325, %v3344, %v3345
      %v3347 = vrot.slane %v3214, 2
      %v3348 = vrot.slane %v3240, 2
      %v3349 = vsel %vm3325, %v3347, %v3348
      %v3350 = vrot.slane %v3216, 2
      %v3351 = vrot.slane %v3241, 2
      %v3352 = vsel %vm3325, %v3350, %v3351
      %v3353 = vrot.slane %v3218, 2
      %v3354 = vrot.slane %v3242, 2
      %v3355 = vsel %vm3325, %v3353, %v3354
      %v3356 = vrot.slane %v3220, 2
      %v3357 = vrot.slane %v3243, 2
      %v3358 = vsel %vm3325, %v3356, %v3357
      %v3359 = vrot.slane %v3222, 2
      %v3360 = vrot.slane %v3244, 2
      %v3361 = vsel %vm3325, %v3359, %v3360
      %v3362 = vrot.slane %v3224, 2
      %v3363 = vrot.slane %v3245, 2
      %v3364 = vsel %vm3325, %v3362, %v3363
      %v3365 = vrot.slane %v3226, 2
      %v3366 = vrot.slane %v3246, 2
      %v3367 = vsel %vm3325, %v3365, %v3366
      %v3368 = vrot.slane %v3228, 2
      %v3369 = vrot.slane %v3247, 2
      %v3370 = vsel %vm3325, %v3368, %v3369
      %v3375 = vrot.slane %v3230, 1
      %v3376 = vrot.slane %v3248, 1
      %v3377 = vsel %vm1725, %v3375, %v3376
      %v3378 = vrot.slane %v3232, 1
      %v3379 = vrot.slane %v3249, 1
      %v3380 = vsel %vm1725, %v3378, %v3379
      %v3381 = vrot.slane %v3230, 2
      %v3382 = vrot.slane %v3248, 2
      %v3383 = vsel %vm3325, %v3381, %v3382
      %v3384 = vrot.slane %v3232, 2
      %v3385 = vrot.slane %v3249, 2
      %v3386 = vsel %vm3325, %v3384, %v3385
      %3387 = vrot.lane.b32.xlu0 %v3282, 48
      %v3388 = vpop.permute.xlu0 %3387
      %3389 = vrot.lane.b32.xlu0 %v3285, 48
      %v3390 = vpop.permute.xlu0 %3389
      %3391 = vrot.lane.b32.xlu0 %v3288, 48
      %v3392 = vpop.permute.xlu0 %3391
      %3393 = vrot.lane.b32.xlu0 %v3291, 48
      %v3394 = vpop.permute.xlu0 %3393
      %3395 = vrot.lane.b32.xlu0 %v3294, 48
      %v3396 = vpop.permute.xlu0 %3395
      %3397 = vrot.lane.b32.xlu0 %v3297, 48
      %v3398 = vpop.permute.xlu0 %3397
      %3399 = vrot.lane.b32.xlu0 %v3300, 48
      %v3400 = vpop.permute.xlu0 %3399
      %3401 = vrot.lane.b32.xlu0 %v3303, 48
      %v3402 = vpop.permute.xlu0 %3401
      %3403 = vrot.lane.b32.xlu0 %v3306, 48
      %v3404 = vpop.permute.xlu0 %3403
      %3405 = vrot.lane.b32.xlu0 %v3309, 48
      %v3406 = vpop.permute.xlu0 %3405
      %3407 = vrot.lane.b32.xlu0 %v3312, 48
      %v3408 = vpop.permute.xlu0 %3407
      %3409 = vrot.lane.b32.xlu0 %v3315, 48
      %v3410 = vpop.permute.xlu0 %3409
      %3411 = vrot.lane.b32.xlu0 %v3318, 48
      %v3412 = vpop.permute.xlu0 %3411
      %3413 = vrot.lane.b32.xlu0 %v3321, 48
      %v3414 = vpop.permute.xlu0 %3413
      %3415 = vrot.lane.b32.xlu0 %v3324, 48
      %v3416 = vpop.permute.xlu0 %3415
      %3417 = vrot.lane.b32.xlu0 %v3328, 96
      %v3418 = vpop.permute.xlu0 %3417
      %3419 = vrot.lane.b32.xlu0 %v3331, 96
      %v3420 = vpop.permute.xlu0 %3419
      %3421 = vrot.lane.b32.xlu0 %v3334, 96
      %v3422 = vpop.permute.xlu0 %3421
      %3423 = vrot.lane.b32.xlu0 %v3337, 96
      %v3424 = vpop.permute.xlu0 %3423
      %3425 = vrot.lane.b32.xlu0 %v3340, 96
      %v3426 = vpop.permute.xlu0 %3425
      %3427 = vrot.lane.b32.xlu0 %v3343, 96
      %v3428 = vpop.permute.xlu0 %3427
      %3429 = vrot.lane.b32.xlu0 %v3346, 96
      %v3430 = vpop.permute.xlu0 %3429
      %3431 = vrot.lane.b32.xlu0 %v3349, 96
      %v3432 = vpop.permute.xlu0 %3431
      %3433 = vrot.lane.b32.xlu0 %v3352, 96
      %v3434 = vpop.permute.xlu0 %3433
      %3435 = vrot.lane.b32.xlu0 %v3355, 96
      %v3436 = vpop.permute.xlu0 %3435
      %3437 = vrot.lane.b32.xlu0 %v3358, 96
      %v3438 = vpop.permute.xlu0 %3437
      %3439 = vrot.lane.b32.xlu0 %v3361, 96
      %v3440 = vpop.permute.xlu0 %3439
      %3441 = vrot.lane.b32.xlu0 %v3364, 96
      %v3442 = vpop.permute.xlu0 %3441
      %3443 = vrot.lane.b32.xlu0 %v3367, 96
      %v3444 = vpop.permute.xlu0 %3443
      %3445 = vrot.lane.b32.xlu0 %v3370, 96
      %v3446 = vpop.permute.xlu0 %3445
      %3447 = vrot.lane.b32.xlu0 %v3202, 16
      %v3448 = vpop.permute.xlu0 %3447
      %3449 = vrot.lane.b32.xlu0 %v3204, 16
      %v3450 = vpop.permute.xlu0 %3449
      %3451 = vrot.lane.b32.xlu0 %v3206, 16
      %v3452 = vpop.permute.xlu0 %3451
      %3453 = vrot.lane.b32.xlu0 %v3208, 16
      %v3454 = vpop.permute.xlu0 %3453
      %3455 = vrot.lane.b32.xlu0 %v3210, 16
      %v3456 = vpop.permute.xlu0 %3455
      %3457 = vrot.lane.b32.xlu0 %v3212, 16
      %v3458 = vpop.permute.xlu0 %3457
      %3459 = vrot.lane.b32.xlu0 %v3214, 16
      %v3460 = vpop.permute.xlu0 %3459
      %3461 = vrot.lane.b32.xlu0 %v3216, 16
      %v3462 = vpop.permute.xlu0 %3461
      %3463 = vrot.lane.b32.xlu0 %v3218, 16
      %v3464 = vpop.permute.xlu0 %3463
      %3465 = vrot.lane.b32.xlu0 %v3220, 16
      %v3466 = vpop.permute.xlu0 %3465
      %3467 = vrot.lane.b32.xlu0 %v3222, 16
      %v3468 = vpop.permute.xlu0 %3467
      %3469 = vrot.lane.b32.xlu0 %v3224, 16
      %v3470 = vpop.permute.xlu0 %3469
      %3471 = vrot.lane.b32.xlu0 %v3226, 16
      %v3472 = vpop.permute.xlu0 %3471
      %3473 = vrot.lane.b32.xlu0 %v3228, 16
      %v3474 = vpop.permute.xlu0 %3473
      %3475 = vrot.lane.b32.xlu0 %v3230, 16
      %v3476 = vpop.permute.xlu0 %3475
      %3477 = vrot.lane.b32.xlu0 %v3232, 16
      %v3478 = vpop.permute.xlu0 %3477
      %3479 = vrot.lane.b32.xlu0 %v3285, 64
      %v3480 = vpop.permute.xlu0 %3479
      %3481 = vrot.lane.b32.xlu0 %v3288, 64
      %v3482 = vpop.permute.xlu0 %3481
      %3483 = vrot.lane.b32.xlu0 %v3291, 64
      %v3484 = vpop.permute.xlu0 %3483
      %3485 = vrot.lane.b32.xlu0 %v3294, 64
      %v3486 = vpop.permute.xlu0 %3485
      %3487 = vrot.lane.b32.xlu0 %v3297, 64
      %v3488 = vpop.permute.xlu0 %3487
      %3489 = vrot.lane.b32.xlu0 %v3300, 64
      %v3490 = vpop.permute.xlu0 %3489
      %3491 = vrot.lane.b32.xlu0 %v3303, 64
      %v3492 = vpop.permute.xlu0 %3491
      %3493 = vrot.lane.b32.xlu0 %v3306, 64
      %v3494 = vpop.permute.xlu0 %3493
      %3495 = vrot.lane.b32.xlu0 %v3309, 64
      %v3496 = vpop.permute.xlu0 %3495
      %3497 = vrot.lane.b32.xlu0 %v3312, 64
      %v3498 = vpop.permute.xlu0 %3497
      %3499 = vrot.lane.b32.xlu0 %v3315, 64
      %v3500 = vpop.permute.xlu0 %3499
      %3501 = vrot.lane.b32.xlu0 %v3318, 64
      %v3502 = vpop.permute.xlu0 %3501
      %3503 = vrot.lane.b32.xlu0 %v3321, 64
      %v3504 = vpop.permute.xlu0 %3503
      %3505 = vrot.lane.b32.xlu0 %v3324, 64
      %v3506 = vpop.permute.xlu0 %3505
      %3507 = vrot.lane.b32.xlu0 %v3377, 64
      %v3508 = vpop.permute.xlu0 %3507
      %3509 = vrot.lane.b32.xlu0 %v3380, 64
      %v3510 = vpop.permute.xlu0 %3509
      %3511 = vrot.lane.b32.xlu0 %v3331, 112
      %v3512 = vpop.permute.xlu0 %3511
      %3513 = vrot.lane.b32.xlu0 %v3334, 112
      %v3514 = vpop.permute.xlu0 %3513
      %3515 = vrot.lane.b32.xlu0 %v3337, 112
      %v3516 = vpop.permute.xlu0 %3515
      %3517 = vrot.lane.b32.xlu0 %v3340, 112
      %v3518 = vpop.permute.xlu0 %3517
      %3519 = vrot.lane.b32.xlu0 %v3343, 112
      %v3520 = vpop.permute.xlu0 %3519
      %3521 = vrot.lane.b32.xlu0 %v3346, 112
      %v3522 = vpop.permute.xlu0 %3521
      %3523 = vrot.lane.b32.xlu0 %v3349, 112
      %v3524 = vpop.permute.xlu0 %3523
      %3525 = vrot.lane.b32.xlu0 %v3352, 112
      %v3526 = vpop.permute.xlu0 %3525
      %3527 = vrot.lane.b32.xlu0 %v3355, 112
      %v3528 = vpop.permute.xlu0 %3527
      %3529 = vrot.lane.b32.xlu0 %v3358, 112
      %v3530 = vpop.permute.xlu0 %3529
      %3531 = vrot.lane.b32.xlu0 %v3361, 112
      %v3532 = vpop.permute.xlu0 %3531
      %3533 = vrot.lane.b32.xlu0 %v3364, 112
      %v3534 = vpop.permute.xlu0 %3533
      %3535 = vrot.lane.b32.xlu0 %v3367, 112
      %v3536 = vpop.permute.xlu0 %3535
      %3537 = vrot.lane.b32.xlu0 %v3370, 112
      %v3538 = vpop.permute.xlu0 %3537
      %3539 = vrot.lane.b32.xlu0 %v3383, 112
      %v3540 = vpop.permute.xlu0 %3539
      %3541 = vrot.lane.b32.xlu0 %v3386, 112
      %v3542 = vpop.permute.xlu0 %3541
      %3543 = vrot.lane.b32.xlu0 %v3206, 32
      %v3544 = vpop.permute.xlu0 %3543
      %3545 = vrot.lane.b32.xlu0 %v3208, 32
      %v3546 = vpop.permute.xlu0 %3545
      %3547 = vrot.lane.b32.xlu0 %v3210, 32
      %v3548 = vpop.permute.xlu0 %3547
      %3549 = vrot.lane.b32.xlu0 %v3212, 32
      %v3550 = vpop.permute.xlu0 %3549
      %3551 = vrot.lane.b32.xlu0 %v3214, 32
      %v3552 = vpop.permute.xlu0 %3551
      %3553 = vrot.lane.b32.xlu0 %v3216, 32
      %v3554 = vpop.permute.xlu0 %3553
      %3555 = vrot.lane.b32.xlu0 %v3218, 32
      %v3556 = vpop.permute.xlu0 %3555
      %3557 = vrot.lane.b32.xlu0 %v3220, 32
      %v3558 = vpop.permute.xlu0 %3557
      %3559 = vrot.lane.b32.xlu0 %v3222, 32
      %v3560 = vpop.permute.xlu0 %3559
      %3561 = vrot.lane.b32.xlu0 %v3224, 32
      %v3562 = vpop.permute.xlu0 %3561
      %3563 = vrot.lane.b32.xlu0 %v3226, 32
      %v3564 = vpop.permute.xlu0 %3563
      %3565 = vrot.lane.b32.xlu0 %v3228, 32
      %v3566 = vpop.permute.xlu0 %3565
      %3567 = vrot.lane.b32.xlu0 %v3230, 32
      %v3568 = vpop.permute.xlu0 %3567
      %3569 = vrot.lane.b32.xlu0 %v3232, 32
      %v3570 = vpop.permute.xlu0 %3569
      %3571 = vrot.lane.b32.xlu0 %v3200, 32
      %v3572 = vpop.permute.xlu0 %3571
      %3573 = vrot.lane.b32.xlu0 %v3291, 80
      %v3574 = vpop.permute.xlu0 %3573
      %3575 = vrot.lane.b32.xlu0 %v3294, 80
      %v3576 = vpop.permute.xlu0 %3575
      %3577 = vrot.lane.b32.xlu0 %v3297, 80
      %v3578 = vpop.permute.xlu0 %3577
      %3579 = vrot.lane.b32.xlu0 %v3300, 80
      %v3580 = vpop.permute.xlu0 %3579
      %3581 = vrot.lane.b32.xlu0 %v3303, 80
      %v3582 = vpop.permute.xlu0 %3581
      %3583 = vrot.lane.b32.xlu0 %v3306, 80
      %v3584 = vpop.permute.xlu0 %3583
      %3585 = vrot.lane.b32.xlu0 %v3309, 80
      %v3586 = vpop.permute.xlu0 %3585
      %3587 = vrot.lane.b32.xlu0 %v3312, 80
      %v3588 = vpop.permute.xlu0 %3587
      %3589 = vrot.lane.b32.xlu0 %v3315, 80
      %v3590 = vpop.permute.xlu0 %3589
      %3591 = vrot.lane.b32.xlu0 %v3318, 80
      %v3592 = vpop.permute.xlu0 %3591
      %3593 = vrot.lane.b32.xlu0 %v3321, 80
      %v3594 = vpop.permute.xlu0 %3593
      %3595 = vrot.lane.b32.xlu0 %v3324, 80
      %v3596 = vpop.permute.xlu0 %3595
      %3597 = vrot.lane.b32.xlu0 %v3377, 80
      %v3598 = vpop.permute.xlu0 %3597
      %3599 = vrot.lane.b32.xlu0 %v3380, 80
      %v3600 = vpop.permute.xlu0 %3599
      %3601 = vrot.lane.b32.xlu0 %v3282, 80
      %v3602 = vpop.permute.xlu0 %3601
      %v3604 = vsel %vm1023, %v3200, %v3388
      %v3606 = vsel %vm1023, %v3202, %v3390
      %v3608 = vsel %vm1023, %v3204, %v3392
      %v3610 = vsel %vm1023, %v3206, %v3394
      %v3612 = vsel %vm1023, %v3208, %v3396
      %v3614 = vsel %vm1023, %v3210, %v3398
      %v3616 = vsel %vm1023, %v3212, %v3400
      %v3618 = vsel %vm1023, %v3214, %v3402
      %v3620 = vsel %vm1023, %v3216, %v3404
      %v3622 = vsel %vm1023, %v3218, %v3406
      %v3624 = vsel %vm1023, %v3220, %v3408
      %v3626 = vsel %vm1023, %v3222, %v3410
      %v3628 = vsel %vm1023, %v3224, %v3412
      %v3630 = vsel %vm1023, %v3226, %v3414
      %v3632 = vsel %vm1023, %v3228, %v3416
      %v3634 = vsel %vm2047, %v3604, %v3418
      %v3637 = vsel %vm2047, %v3606, %v3420
      %v3640 = vsel %vm2047, %v3608, %v3422
      %v3643 = vsel %vm2047, %v3610, %v3424
      %v3646 = vsel %vm2047, %v3612, %v3426
      %v3649 = vsel %vm2047, %v3614, %v3428
      %v3652 = vsel %vm2047, %v3616, %v3430
      %v3655 = vsel %vm2047, %v3618, %v3432
      %v3658 = vsel %vm2047, %v3620, %v3434
      %v3661 = vsel %vm2047, %v3622, %v3436
      %v3664 = vsel %vm2047, %v3624, %v3438
      %v3667 = vsel %vm2047, %v3626, %v3440
      %v3670 = vsel %vm2047, %v3628, %v3442
      %v3673 = vsel %vm2047, %v3630, %v3444
      %v3676 = vsel %vm2047, %v3632, %v3446
      %v3679 = vsel %vm285, %v3418, %v3448
      %v3681 = vsel %vm285, %v3418, %v3450
      %v3683 = vsel %vm285, %v3420, %v3452
      %v3685 = vsel %vm285, %v3422, %v3454
      %v3687 = vsel %vm285, %v3424, %v3456
      %v3689 = vsel %vm285, %v3426, %v3458
      %v3691 = vsel %vm285, %v3428, %v3460
      %v3693 = vsel %vm285, %v3430, %v3462
      %v3695 = vsel %vm285, %v3432, %v3464
      %v3697 = vsel %vm285, %v3434, %v3466
      %v3699 = vsel %vm285, %v3436, %v3468
      %v3701 = vsel %vm285, %v3438, %v3470
      %v3703 = vsel %vm285, %v3440, %v3472
      %v3705 = vsel %vm285, %v3442, %v3474
      %v3707 = vsel %vm285, %v3444, %v3476
      %v3709 = vsel %vm285, %v3446, %v3478
      %v3711 = vsel %vm2128, %v3679, %v3480
      %v3713 = vsel %vm2128, %v3681, %v3482
      %v3715 = vsel %vm2128, %v3683, %v3484
      %v3717 = vsel %vm2128, %v3685, %v3486
      %v3719 = vsel %vm2128, %v3687, %v3488
      %v3721 = vsel %vm2128, %v3689, %v3490
      %v3723 = vsel %vm2128, %v3691, %v3492
      %v3725 = vsel %vm2128, %v3693, %v3494
      %v3727 = vsel %vm2128, %v3695, %v3496
      %v3729 = vsel %vm2128, %v3697, %v3498
      %v3731 = vsel %vm2128, %v3699, %v3500
      %v3733 = vsel %vm2128, %v3701, %v3502
      %v3735 = vsel %vm2128, %v3703, %v3504
      %v3737 = vsel %vm2128, %v3705, %v3506
      %v3739 = vsel %vm2128, %v3707, %v3508
      %v3741 = vsel %vm2128, %v3709, %v3510
      %v3743 = vsel %vm2161, %v3711, %v3512
      %v3746 = vsel %vm2161, %v3713, %v3514
      %v3749 = vsel %vm2161, %v3715, %v3516
      %v3752 = vsel %vm2161, %v3717, %v3518
      %v3755 = vsel %vm2161, %v3719, %v3520
      %v3758 = vsel %vm2161, %v3721, %v3522
      %v3761 = vsel %vm2161, %v3723, %v3524
      %v3764 = vsel %vm2161, %v3725, %v3526
      %v3767 = vsel %vm2161, %v3727, %v3528
      %v3770 = vsel %vm2161, %v3729, %v3530
      %v3773 = vsel %vm2161, %v3731, %v3532
      %v3776 = vsel %vm2161, %v3733, %v3534
      %v3779 = vsel %vm2161, %v3735, %v3536
      %v3782 = vsel %vm2161, %v3737, %v3538
      %v3785 = vsel %vm2161, %v3739, %v3540
      %v3788 = vsel %vm2161, %v3741, %v3542
      %v3791 = vsel %vm2210, %v3512, %v3544
      %v3793 = vsel %vm2210, %v3514, %v3546
      %v3795 = vsel %vm2210, %v3516, %v3548
      %v3797 = vsel %vm2210, %v3518, %v3550
      %v3799 = vsel %vm2210, %v3520, %v3552
      %v3801 = vsel %vm2210, %v3522, %v3554
      %v3803 = vsel %vm2210, %v3524, %v3556
      %v3805 = vsel %vm2210, %v3526, %v3558
      %v3807 = vsel %vm2210, %v3528, %v3560
      %v3809 = vsel %vm2210, %v3530, %v3562
      %v3811 = vsel %vm2210, %v3532, %v3564
      %v3813 = vsel %vm2210, %v3534, %v3566
      %v3815 = vsel %vm2210, %v3536, %v3568
      %v3817 = vsel %vm2210, %v3538, %v3570
      %v3819 = vsel %vm2210, %v3540, %v3572
      %v3820 = vsel %vm2210, %v3542, %v3572
      %v3822 = vsel %vm2243, %v3791, %v3574
      %v3825 = vsel %vm2243, %v3793, %v3576
      %v3828 = vsel %vm2243, %v3795, %v3578
      %v3831 = vsel %vm2243, %v3797, %v3580
      %v3834 = vsel %vm2243, %v3799, %v3582
      %v3837 = vsel %vm2243, %v3801, %v3584
      %v3840 = vsel %vm2243, %v3803, %v3586
      %v3843 = vsel %vm2243, %v3805, %v3588
      %v3846 = vsel %vm2243, %v3807, %v3590
      %v3849 = vsel %vm2243, %v3809, %v3592
      %v3852 = vsel %vm2243, %v3811, %v3594
      %v3855 = vsel %vm2243, %v3813, %v3596
      %v3858 = vsel %vm2243, %v3815, %v3598
      %v3861 = vsel %vm2243, %v3817, %v3600
      %v3864 = vsel %vm2243, %v3819, %v3602
      %v3866 = vsel %vm2243, %v3820, %v3602
      %v3868 = vld [vmem:[%s3] sm:$0xf]
      %v3869 = vld [vmem:[%s3 + $0x4] sm:$0xf]
      %v3870 = vld [vmem:[%s3 + $0x8] sm:$0xf]
      %v3871 = vld [vmem:[%s3 + $0xc] sm:$0xf]
      %v3872 = vld [vmem:[%s3 + $0x10] sm:$0xf]
      %v3873 = vld [vmem:[%s3 + $0x14] sm:$0xf]
      %v3874 = vld [vmem:[%s3 + $0x18] sm:$0xf]
      %v3875 = vld [vmem:[%s3 + $0x1c] sm:$0xf]
      %v3876 = vld [vmem:[%s3 + $0x20] sm:$0xf]
      %v3877 = vld [vmem:[%s3 + $0x24] sm:$0xf]
      %v3878 = vld [vmem:[%s3 + $0x28] sm:$0xf]
      %v3879 = vld [vmem:[%s3 + $0x2c] sm:$0xf]
      %v3880 = vld [vmem:[%s3 + $0x30] sm:$0xf]
      %v3881 = vld [vmem:[%s3 + $0x34] sm:$0xf]
      %v3882 = vld [vmem:[%s3 + $0x38] sm:$0xf]
      %v3883 = vld [vmem:[%s3 + $0x3c] sm:$0xf]
      %v3884 = vld [vmem:[%s3 + $0x40] sm:$0xf]
      %v3885 = vld [vmem:[%s3 + $0x44] sm:$0xf]
      %v3886 = vld [vmem:[%s3 + $0x48] sm:$0xf]
      %v3887 = vld [vmem:[%s3 + $0x4c] sm:$0xf]
      %v3888 = vld [vmem:[%s3 + $0x50] sm:$0xf]
      %v3889 = vld [vmem:[%s3 + $0x54] sm:$0xf]
      %v3890 = vld [vmem:[%s3 + $0x58] sm:$0xf]
      %v3891 = vld [vmem:[%s3 + $0x5c] sm:$0xf]
      %v3892 = vld [vmem:[%s3 + $0x60] sm:$0xf]
      %v3893 = vld [vmem:[%s3 + $0x64] sm:$0xf]
      %v3894 = vld [vmem:[%s3 + $0x68] sm:$0xf]
      %v3895 = vld [vmem:[%s3 + $0x6c] sm:$0xf]
      %v3896 = vld [vmem:[%s3 + $0x70] sm:$0xf]
      %v3897 = vld [vmem:[%s3 + $0x74] sm:$0xf]
      %v3898 = vld [vmem:[%s3 + $0x78] sm:$0xf]
      %v3899 = vld [vmem:[%s3 + $0x7c] sm:$0xf]
      %v3900 = vld [vmem:[%s3 + $0x80] sm:$0xf]
      %v3901 = vld [vmem:[%s3 + $0x84] sm:$0xf]
      %v3902 = vld [vmem:[%s3 + $0x88] sm:$0xf]
      %v3903 = vld [vmem:[%s3 + $0x8c] sm:$0xf]
      %v3904 = vld [vmem:[%s3 + $0x90] sm:$0xf]
      %v3905 = vld [vmem:[%s3 + $0x94] sm:$0xf]
      %v3906 = vld [vmem:[%s3 + $0x98] sm:$0xf]
      %v3907 = vld [vmem:[%s3 + $0x9c] sm:$0xf]
      %v3908 = vld [vmem:[%s3 + $0xa0] sm:$0xf]
      %v3909 = vld [vmem:[%s3 + $0xa4] sm:$0xf]
      %v3910 = vld [vmem:[%s3 + $0xa8] sm:$0xf]
      %v3911 = vld [vmem:[%s3 + $0xac] sm:$0xf]
      %v3912 = vld [vmem:[%s3 + $0xb0] sm:$0xf]
      %v3913 = vld [vmem:[%s3 + $0xb4] sm:$0xf]
      %v3914 = vld [vmem:[%s3 + $0xb8] sm:$0xf]
      %v3915 = vld [vmem:[%s3 + $0xbc] sm:$0xf]
      %v3916 = vld [vmem:[%s3 + $0xc0] sm:$0xf]
      %v3917 = vld [vmem:[%s3 + $0xc4] sm:$0xf]
      %v3918 = vld [vmem:[%s3 + $0xc8] sm:$0xf]
      %v3919 = vld [vmem:[%s3 + $0xcc] sm:$0xf]
      %v3920 = vld [vmem:[%s3 + $0xd0] sm:$0xf]
      %v3921 = vld [vmem:[%s3 + $0xd4] sm:$0xf]
      %v3976 = vunpack.c.l.b16 %v3868
      %v3977 = vunpack.c.l.b16 %v3869
      %v3978 = vunpack.c.l.b16 %v3870
      %v3979 = vunpack.c.l.b16 %v3871
      %v3980 = vunpack.c.l.b16 %v3872
      %v3981 = vunpack.c.l.b16 %v3873
      %v3982 = vunpack.c.l.b16 %v3874
      %v3983 = vunpack.c.l.b16 %v3875
      %v3984 = vunpack.c.l.b16 %v3876
      %v3985 = vunpack.c.l.b16 %v3877
      %v3986 = vunpack.c.l.b16 %v3878
      %v3987 = vunpack.c.l.b16 %v3879
      %v3988 = vunpack.c.l.b16 %v3880
      %v3989 = vunpack.c.l.b16 %v3881
      %v3990 = vunpack.c.l.b16 %v3882
      %v3991 = vunpack.c.l.b16 %v3883
      %v3992 = vunpack.c.l.b16 %v3884
      %v3993 = vunpack.c.l.b16 %v3885
      %v3994 = vunpack.c.l.b16 %v3886
      %v3995 = vunpack.c.l.b16 %v3887
      %v3996 = vunpack.c.l.b16 %v3888
      %v3997 = vunpack.c.l.b16 %v3889
      %v3998 = vunpack.c.l.b16 %v3890
      %v3999 = vunpack.c.l.b16 %v3891
      %v4000 = vunpack.c.l.b16 %v3892
      %v4001 = vunpack.c.l.b16 %v3893
      %v4002 = vunpack.c.l.b16 %v3894
      %v4003 = vunpack.c.l.b16 %v3895
      %v4004 = vunpack.c.l.b16 %v3896
      %v4005 = vunpack.c.l.b16 %v3897
      %v4006 = vunpack.c.l.b16 %v3898
      %v4007 = vunpack.c.l.b16 %v3899
      %v4008 = vunpack.c.l.b16 %v3900
      %v4009 = vunpack.c.l.b16 %v3901
      %v4010 = vunpack.c.l.b16 %v3902
      %v4011 = vunpack.c.l.b16 %v3903
      %v4012 = vunpack.c.l.b16 %v3904
      %v4013 = vunpack.c.l.b16 %v3905
      %v4014 = vunpack.c.l.b16 %v3906
      %v4015 = vunpack.c.l.b16 %v3907
      %v4016 = vunpack.c.l.b16 %v3908
      %v4017 = vunpack.c.l.b16 %v3909
      %v4018 = vunpack.c.l.b16 %v3910
      %v4019 = vunpack.c.l.b16 %v3911
      %v4020 = vunpack.c.l.b16 %v3912
      %v4021 = vunpack.c.l.b16 %v3913
      %v4022 = vunpack.c.l.b16 %v3914
      %v4023 = vunpack.c.l.b16 %v3915
      %v4024 = vunpack.c.l.b16 %v3916
      %v4025 = vunpack.c.l.b16 %v3917
      %v4026 = vunpack.c.l.b16 %v3918
      %v4027 = vunpack.c.l.b16 %v3919
      %v4028 = vunpack.c.l.b16 %v3920
      %v4029 = vunpack.c.l.b16 %v3921
      %v4030 = vpack.c.b16 %v3977, %v3976
      %v4031 = vpack.c.b16 %v3979, %v3978
      %v4032 = vpack.c.b16 %v3981, %v3980
      %v4033 = vpack.c.b16 %v3983, %v3982
      %v4034 = vpack.c.b16 %v3985, %v3984
      %v4035 = vpack.c.b16 %v3987, %v3986
      %v4036 = vpack.c.b16 %v3989, %v3988
      %v4037 = vpack.c.b16 %v3991, %v3990
      %v4038 = vpack.c.b16 %v3993, %v3992
      %v4039 = vpack.c.b16 %v3995, %v3994
      %v4040 = vpack.c.b16 %v3997, %v3996
      %v4041 = vpack.c.b16 %v3999, %v3998
      %v4042 = vpack.c.b16 %v4001, %v4000
      %v4043 = vpack.c.b16 %v4003, %v4002
      %v4044 = vpack.c.b16 %v4005, %v4004
      %v4045 = vpack.c.b16 %v4007, %v4006
      %v4046 = vpack.c.b16 %v4009, %v4008
      %v4047 = vpack.c.b16 %v4011, %v4010
      %v4048 = vpack.c.b16 %v4013, %v4012
      %v4049 = vpack.c.b16 %v4015, %v4014
      %v4050 = vpack.c.b16 %v4017, %v4016
      %v4051 = vpack.c.b16 %v4019, %v4018
      %v4052 = vpack.c.b16 %v4021, %v4020
      %v4053 = vpack.c.b16 %v4023, %v4022
      %v4054 = vpack.c.b16 %v4025, %v4024
      %v4055 = vpack.c.b16 %v4027, %v4026
      %v4056 = vpack.c.b16 %v4029, %v4028
      %v4085 = vsel %vm1023, %v3337, 0
      %v4088 = vsel %vm1023, %v3340, 0
      %v4091 = vsel %vm1023, %v3343, 0
      %v4094 = vsel %vm1023, %v3346, 0
      %v4097 = vsel %vm1023, %v3349, 0
      %v4100 = vsel %vm1023, %v3352, 0
      %v4103 = vsel %vm1023, %v3355, 0
      %v4106 = vsel %vm1023, %v3358, 0
      %v4109 = vsel %vm1023, %v3361, 0
      %v4112 = vsel %vm1023, %v3364, 0
      %v4115 = vsel %vm1023, %v3367, 0
      %v4118 = vsel %vm1023, %v3370, 0
      %v4121 = vsel %vm1023, %v3383, 0
      %v4124 = vsel %vm1023, %v3386, 0
      %v4127 = vsel %vm1023, %v3328, 0
      %4129 = vmatprep.subr.bf16.mxu0 0
      %4130 = vmatpush1.bf16.msra.mxu0 %v4030
      %4131 = vmatprep.subr.bf16.mxu0 0
      %4132 = vmatpush1.bf16.msra.mxu0 %v4031
      %4133 = vmatprep.subr.bf16.mxu0 0
      %4134 = vmatpush1.bf16.msra.mxu0 %v4032
      %4135 = vmatprep.subr.bf16.mxu0 0
      %4136 = vmatpush1.bf16.msra.mxu0 %v4033
      %4137 = vmatprep.subr.bf16.mxu0 0
      %4138 = vmatpush1.bf16.msra.mxu0 %v4034
      %4139 = vmatprep.subr.bf16.mxu0 0
      %4140 = vmatpush1.bf16.msra.mxu0 %v4035
      %4141 = vmatprep.subr.bf16.mxu0 0
      %4142 = vmatpush1.bf16.msra.mxu0 %v4036
      %4143 = vmatprep.subr.bf16.mxu0 0
      %4144 = vmatpush1.bf16.msra.mxu0 %v4037
      %4145 = vmatprep.subr.bf16.mxu0 0
      %4146 = vmatpush1.bf16.msra.mxu0 %v4038
      %4147 = vmatprep.subr.bf16.mxu0 0
      %4148 = vmatpush1.bf16.msra.mxu0 %v4039
      %4149 = vmatprep.subr.bf16.mxu0 0
      %4150 = vmatpush1.bf16.msra.mxu0 %v4040
      %4151 = vmatprep.subr.bf16.mxu0 0
      %4152 = vmatpush1.bf16.msra.mxu0 %v4041
      %4153 = vmatprep.subr.bf16.mxu0 0
      %4154 = vmatpush1.bf16.msra.mxu0 %v4042
      %4155 = vmatprep.subr.bf16.mxu0 0
      %4156 = vmatpush1.bf16.msra.mxu0 %v4043
      %4157 = vmatprep.subr.bf16.mxu0 0
      %4158 = vmatpush1.bf16.msra.mxu0 %v4044
      %4159 = vmatprep.subr.bf16.mxu0 0
      %4160 = vmatpush1.bf16.msra.mxu0 %v4045
      %4161 = vmatprep.mubr.bf16.mxu0 %v3743
      %4162 = vmatmul.mubr.bf16.gmra.mrb[0].mxu0 %v3634
      %v4163 = vpop.f32.mrb[0].mxu0
      %v4164 = vadd.f32 0.0, %v4163
      %v4165 = vpop.f32.mrb[0].mxu0
      %v4166 = vpop.f32.mrb[0].mxu0
      %v4167 = vadd.f32 0.0, %v4166
      %v4168 = vpop.f32.mrb[0].mxu0
      %4169 = vmatprep.mubr.bf16.mxu0 %v3746
      %4170 = vmatmul.mubr.bf16.gmra.mrb[0].mxu0 %v3634
      %v4171 = vpop.f32.mrb[0].mxu0
      %v4172 = vadd.f32 0.0, %v4171
      %v4173 = vpop.f32.mrb[0].mxu0
      %v4174 = vpop.f32.mrb[0].mxu0
      %v4175 = vadd.f32 0.0, %v4174
      %v4176 = vpop.f32.mrb[0].mxu0
      %4177 = vmatprep.mubr.bf16.mxu0 %v3749
      %4178 = vmatmul.mubr.bf16.gmra.mrb[0].mxu0 %v3637
      %v4179 = vpop.f32.mrb[0].mxu0
      %v4180 = vadd.f32 0.0, %v4179
      %v4181 = vpop.f32.mrb[0].mxu0
      %v4182 = vpop.f32.mrb[0].mxu0
      %v4183 = vadd.f32 0.0, %v4182
      %v4184 = vpop.f32.mrb[0].mxu0
      %4185 = vmatprep.mubr.bf16.mxu0 %v3752
      %4186 = vmatmul.mubr.bf16.gmra.mrb[0].mxu0 %v3640
      %v4187 = vpop.f32.mrb[0].mxu0
      %v4188 = vadd.f32 0.0, %v4187
      %v4189 = vpop.f32.mrb[0].mxu0
      %v4190 = vpop.f32.mrb[0].mxu0
      %v4191 = vadd.f32 0.0, %v4190
      %v4192 = vpop.f32.mrb[0].mxu0
      %4193 = vmatprep.mubr.bf16.mxu0 %v3755
      %4194 = vmatmul.mubr.bf16.gmra.mrb[0].mxu0 %v3643
      %v4195 = vpop.f32.mrb[0].mxu0
      %v4196 = vadd.f32 0.0, %v4195
      %v4197 = vpop.f32.mrb[0].mxu0
      %v4198 = vpop.f32.mrb[0].mxu0
      %v4199 = vadd.f32 0.0, %v4198
      %v4200 = vpop.f32.mrb[0].mxu0
      %4201 = vmatprep.mubr.bf16.mxu0 %v3758
      %4202 = vmatmul.mubr.bf16.gmra.mrb[0].mxu0 %v3646
      %v4203 = vpop.f32.mrb[0].mxu0
      %v4204 = vadd.f32 0.0, %v4203
      %v4205 = vpop.f32.mrb[0].mxu0
      %v4206 = vpop.f32.mrb[0].mxu0
      %v4207 = vadd.f32 0.0, %v4206
      %v4208 = vpop.f32.mrb[0].mxu0
      %4209 = vmatprep.mubr.bf16.mxu0 %v3761
      %4210 = vmatmul.mubr.bf16.gmra.mrb[0].mxu0 %v3649
      %v4211 = vpop.f32.mrb[0].mxu0
      %v4212 = vadd.f32 0.0, %v4211
      %v4213 = vpop.f32.mrb[0].mxu0
      %v4214 = vpop.f32.mrb[0].mxu0
      %v4215 = vadd.f32 0.0, %v4214
      %v4216 = vpop.f32.mrb[0].mxu0
      %4217 = vmatprep.mubr.bf16.mxu0 %v3764
      %4218 = vmatmul.mubr.bf16.gmra.mrb[0].mxu0 %v3652
      %v4219 = vpop.f32.mrb[0].mxu0
      %v4220 = vadd.f32 0.0, %v4219
      %v4221 = vpop.f32.mrb[0].mxu0
      %v4222 = vpop.f32.mrb[0].mxu0
      %v4223 = vadd.f32 0.0, %v4222
      %v4224 = vpop.f32.mrb[0].mxu0
      %4225 = vmatprep.mubr.bf16.mxu0 %v3767
      %4226 = vmatmul.mubr.bf16.gmra.mrb[0].mxu0 %v3655
      %v4227 = vpop.f32.mrb[0].mxu0
      %v4228 = vadd.f32 0.0, %v4227
      %v4229 = vpop.f32.mrb[0].mxu0
      %v4230 = vpop.f32.mrb[0].mxu0
      %v4231 = vadd.f32 0.0, %v4230
      %v4232 = vpop.f32.mrb[0].mxu0
      %4233 = vmatprep.mubr.bf16.mxu0 %v3770
      %4234 = vmatmul.mubr.bf16.gmra.mrb[0].mxu0 %v3658
      %v4235 = vpop.f32.mrb[0].mxu0
      %v4236 = vadd.f32 0.0, %v4235
      %v4237 = vpop.f32.mrb[0].mxu0
      %v4238 = vpop.f32.mrb[0].mxu0
      %v4239 = vadd.f32 0.0, %v4238
      %v4240 = vpop.f32.mrb[0].mxu0
      %4241 = vmatprep.mubr.bf16.mxu0 %v3773
      %4242 = vmatmul.mubr.bf16.gmra.mrb[0].mxu0 %v3661
      %v4243 = vpop.f32.mrb[0].mxu0
      %v4244 = vadd.f32 0.0, %v4243
      %v4245 = vpop.f32.mrb[0].mxu0
      %v4246 = vpop.f32.mrb[0].mxu0
      %v4247 = vadd.f32 0.0, %v4246
      %v4248 = vpop.f32.mrb[0].mxu0
      %4249 = vmatprep.mubr.bf16.mxu0 %v3776
      %4250 = vmatmul.mubr.bf16.gmra.mrb[0].mxu0 %v3664
      %v4251 = vpop.f32.mrb[0].mxu0
      %v4252 = vadd.f32 0.0, %v4251
      %v4253 = vpop.f32.mrb[0].mxu0
      %v4254 = vpop.f32.mrb[0].mxu0
      %v4255 = vadd.f32 0.0, %v4254
      %v4256 = vpop.f32.mrb[0].mxu0
      %4257 = vmatprep.mubr.bf16.mxu0 %v3779
      %4258 = vmatmul.mubr.bf16.gmra.mrb[0].mxu0 %v3667
      %v4259 = vpop.f32.mrb[0].mxu0
      %v4260 = vadd.f32 0.0, %v4259
      %v4261 = vpop.f32.mrb[0].mxu0
      %v4262 = vpop.f32.mrb[0].mxu0
      %v4263 = vadd.f32 0.0, %v4262
      %v4264 = vpop.f32.mrb[0].mxu0
      %4265 = vmatprep.mubr.bf16.mxu0 %v3782
      %4266 = vmatmul.mubr.bf16.gmra.mrb[0].mxu0 %v3670
      %v4267 = vpop.f32.mrb[0].mxu0
      %v4268 = vadd.f32 0.0, %v4267
      %v4269 = vpop.f32.mrb[0].mxu0
      %v4270 = vpop.f32.mrb[0].mxu0
      %v4271 = vadd.f32 0.0, %v4270
      %v4272 = vpop.f32.mrb[0].mxu0
      %4273 = vmatprep.mubr.bf16.mxu0 %v3785
      %4274 = vmatmul.mubr.bf16.gmra.mrb[0].mxu0 %v3673
      %v4275 = vpop.f32.mrb[0].mxu0
      %v4276 = vadd.f32 0.0, %v4275
      %v4277 = vpop.f32.mrb[0].mxu0
      %v4278 = vpop.f32.mrb[0].mxu0
      %v4279 = vadd.f32 0.0, %v4278
      %v4280 = vpop.f32.mrb[0].mxu0
      %4281 = vmatprep.mubr.bf16.mxu0 %v3788
      %4282 = vmatmul.mubr.bf16.gmra.mrb[0].mxu0 %v3676
      %v4283 = vpop.f32.mrb[0].mxu0
      %v4284 = vadd.f32 0.0, %v4283
      %v4285 = vpop.f32.mrb[0].mxu0
      %v4286 = vpop.f32.mrb[0].mxu0
      %v4287 = vadd.f32 0.0, %v4286
      %v4288 = vpop.f32.mrb[0].mxu0
      %4289 = vdwg.mxu0
      %4290 = vmatprep.subr.bf16.mxu0 0
      %4291 = vmatpush1.bf16.msra.mxu0 %v4046
      %4292 = vmatprep.subr.bf16.mxu0 0
      %4293 = vmatpush1.bf16.msra.mxu0 %v4047
      %4294 = vmatprep.subr.bf16.mxu0 0
      %4295 = vmatpush1.bf16.msra.mxu0 %v4048
      %4296 = vmatprep.subr.bf16.mxu0 0
      %4297 = vmatpush1.bf16.msra.mxu0 %v4049
      %4298 = vmatprep.subr.bf16.mxu0 0
      %4299 = vmatpush1.bf16.msra.mxu0 %v4050
      %4300 = vmatprep.subr.bf16.mxu0 0
      %4301 = vmatpush1.bf16.msra.mxu0 %v4051
      %4302 = vmatprep.subr.bf16.mxu0 0
      %4303 = vmatpush1.bf16.msra.mxu0 %v4052
      %4304 = vmatprep.subr.bf16.mxu0 0
      %4305 = vmatpush1.bf16.msra.mxu0 %v4053
      %4306 = vmatprep.subr.bf16.mxu0 0
      %4307 = vmatpush1.bf16.msra.mxu0 %v4054
      %4308 = vmatprep.subr.bf16.mxu0 0
      %4309 = vmatpush1.bf16.msra.mxu0 %v4055
      %4310 = vmatprep.subr.bf16.mxu0 0
      %4311 = vmatpush1.bf16.msra.mxu0 %v4056
      %4312 = vmatprep.subr.bf16.mxu0 0
      %4313 = vmatpush1.bf16.msra.mxu0 0
      %4314 = vmatprep.subr.bf16.mxu0 0
      %4315 = vmatpush1.bf16.msra.mxu0 0
      %4316 = vmatprep.subr.bf16.mxu0 0
      %4317 = vmatpush1.bf16.msra.mxu0 0
      %4318 = vmatprep.subr.bf16.mxu0 0
      %4319 = vmatpush1.bf16.msra.mxu0 0
      %4320 = vmatprep.subr.bf16.mxu0 0
      %4321 = vmatpush1.bf16.msra.mxu0 0
      %4322 = vmatprep.mubr.bf16.mxu0 %v4085
      %4323 = vmatmul.mubr.bf16.gmra.mrb[0].mxu0 %v3822
      %v4324 = vpop.f32.mrb[0].mxu0
      %v4325 = vadd.f32 %v4164, %v4324
      %v4326 = vpop.f32.mrb[0].mxu0
      %v4327 = vpop.f32.mrb[0].mxu0
      %v4328 = vadd.f32 %v4167, %v4327
      %v4329 = vpop.f32.mrb[0].mxu0
      %4330 = vmatprep.mubr.bf16.mxu0 %v4088
      %4331 = vmatmul.mubr.bf16.gmra.mrb[0].mxu0 %v3825
      %v4332 = vpop.f32.mrb[0].mxu0
      %v4333 = vadd.f32 %v4172, %v4332
      %v4334 = vpop.f32.mrb[0].mxu0
      %v4335 = vpop.f32.mrb[0].mxu0
      %v4336 = vadd.f32 %v4175, %v4335
      %v4337 = vpop.f32.mrb[0].mxu0
      %4338 = vmatprep.mubr.bf16.mxu0 %v4091
      %4339 = vmatmul.mubr.bf16.gmra.mrb[0].mxu0 %v3828
      %v4340 = vpop.f32.mrb[0].mxu0
      %v4341 = vadd.f32 %v4180, %v4340
      %v4342 = vpop.f32.mrb[0].mxu0
      %v4343 = vpop.f32.mrb[0].mxu0
      %v4344 = vadd.f32 %v4183, %v4343
      %v4345 = vpop.f32.mrb[0].mxu0
      %4346 = vmatprep.mubr.bf16.mxu0 %v4094
      %4347 = vmatmul.mubr.bf16.gmra.mrb[0].mxu0 %v3831
      %v4348 = vpop.f32.mrb[0].mxu0
      %v4349 = vadd.f32 %v4188, %v4348
      %v4350 = vpop.f32.mrb[0].mxu0
      %v4351 = vpop.f32.mrb[0].mxu0
      %v4352 = vadd.f32 %v4191, %v4351
      %v4353 = vpop.f32.mrb[0].mxu0
      %4354 = vmatprep.mubr.bf16.mxu0 %v4097
      %4355 = vmatmul.mubr.bf16.gmra.mrb[0].mxu0 %v3834
      %v4356 = vpop.f32.mrb[0].mxu0
      %v4357 = vadd.f32 %v4196, %v4356
      %v4358 = vpop.f32.mrb[0].mxu0
      %v4359 = vpop.f32.mrb[0].mxu0
      %v4360 = vadd.f32 %v4199, %v4359
      %v4361 = vpop.f32.mrb[0].mxu0
      %4362 = vmatprep.mubr.bf16.mxu0 %v4100
      %4363 = vmatmul.mubr.bf16.gmra.mrb[0].mxu0 %v3837
      %v4364 = vpop.f32.mrb[0].mxu0
      %v4365 = vadd.f32 %v4204, %v4364
      %v4366 = vpop.f32.mrb[0].mxu0
      %v4367 = vpop.f32.mrb[0].mxu0
      %v4368 = vadd.f32 %v4207, %v4367
      %v4369 = vpop.f32.mrb[0].mxu0
      %4370 = vmatprep.mubr.bf16.mxu0 %v4103
      %4371 = vmatmul.mubr.bf16.gmra.mrb[0].mxu0 %v3840
      %v4372 = vpop.f32.mrb[0].mxu0
      %v4373 = vadd.f32 %v4212, %v4372
      %v4374 = vpop.f32.mrb[0].mxu0
      %v4375 = vpop.f32.mrb[0].mxu0
      %v4376 = vadd.f32 %v4215, %v4375
      %v4377 = vpop.f32.mrb[0].mxu0
      %4378 = vmatprep.mubr.bf16.mxu0 %v4106
      %4379 = vmatmul.mubr.bf16.gmra.mrb[0].mxu0 %v3843
      %v4380 = vpop.f32.mrb[0].mxu0
      %v4381 = vadd.f32 %v4220, %v4380
      %v4382 = vpop.f32.mrb[0].mxu0
      %v4383 = vpop.f32.mrb[0].mxu0
      %v4384 = vadd.f32 %v4223, %v4383
      %v4385 = vpop.f32.mrb[0].mxu0
      %4386 = vmatprep.mubr.bf16.mxu0 %v4109
      %4387 = vmatmul.mubr.bf16.gmra.mrb[0].mxu0 %v3846
      %v4388 = vpop.f32.mrb[0].mxu0
      %v4389 = vadd.f32 %v4228, %v4388
      %v4390 = vpop.f32.mrb[0].mxu0
      %v4391 = vpop.f32.mrb[0].mxu0
      %v4392 = vadd.f32 %v4231, %v4391
      %v4393 = vpop.f32.mrb[0].mxu0
      %4394 = vmatprep.mubr.bf16.mxu0 %v4112
      %4395 = vmatmul.mubr.bf16.gmra.mrb[0].mxu0 %v3849
      %v4396 = vpop.f32.mrb[0].mxu0
      %v4397 = vadd.f32 %v4236, %v4396
      %v4398 = vpop.f32.mrb[0].mxu0
      %v4399 = vpop.f32.mrb[0].mxu0
      %v4400 = vadd.f32 %v4239, %v4399
      %v4401 = vpop.f32.mrb[0].mxu0
      %4402 = vmatprep.mubr.bf16.mxu0 %v4115
      %4403 = vmatmul.mubr.bf16.gmra.mrb[0].mxu0 %v3852
      %v4404 = vpop.f32.mrb[0].mxu0
      %v4405 = vadd.f32 %v4244, %v4404
      %v4406 = vpop.f32.mrb[0].mxu0
      %v4407 = vpop.f32.mrb[0].mxu0
      %v4408 = vadd.f32 %v4247, %v4407
      %v4409 = vpop.f32.mrb[0].mxu0
      %4410 = vmatprep.mubr.bf16.mxu0 %v4118
      %4411 = vmatmul.mubr.bf16.gmra.mrb[0].mxu0 %v3855
      %v4412 = vpop.f32.mrb[0].mxu0
      %v4413 = vadd.f32 %v4252, %v4412
      %v4414 = vpop.f32.mrb[0].mxu0
      %v4415 = vpop.f32.mrb[0].mxu0
      %v4416 = vadd.f32 %v4255, %v4415
      %v4417 = vpop.f32.mrb[0].mxu0
      %4418 = vmatprep.mubr.bf16.mxu0 %v4121
      %4419 = vmatmul.mubr.bf16.gmra.mrb[0].mxu0 %v3858
      %v4420 = vpop.f32.mrb[0].mxu0
      %v4421 = vadd.f32 %v4260, %v4420
      %v4422 = vpop.f32.mrb[0].mxu0
      %v4423 = vpop.f32.mrb[0].mxu0
      %v4424 = vadd.f32 %v4263, %v4423
      %v4425 = vpop.f32.mrb[0].mxu0
      %4426 = vmatprep.mubr.bf16.mxu0 %v4124
      %4427 = vmatmul.mubr.bf16.gmra.mrb[0].mxu0 %v3861
      %v4428 = vpop.f32.mrb[0].mxu0
      %v4429 = vadd.f32 %v4268, %v4428
      %v4430 = vpop.f32.mrb[0].mxu0
      %v4431 = vpop.f32.mrb[0].mxu0
      %v4432 = vadd.f32 %v4271, %v4431
      %v4433 = vpop.f32.mrb[0].mxu0
      %4434 = vmatprep.mubr.bf16.mxu0 %v4127
      %4435 = vmatmul.mubr.bf16.gmra.mrb[0].mxu0 %v3864
      %v4436 = vpop.f32.mrb[0].mxu0
      %v4437 = vadd.f32 %v4276, %v4436
      %v4438 = vpop.f32.mrb[0].mxu0
      %v4439 = vpop.f32.mrb[0].mxu0
      %v4440 = vadd.f32 %v4279, %v4439
      %v4441 = vpop.f32.mrb[0].mxu0
      %4442 = vmatprep.mubr.bf16.mxu0 %v4127
      %4443 = vmatmul.mubr.bf16.gmra.mrb[0].mxu0 %v3866
      %v4444 = vpop.f32.mrb[0].mxu0
      %v4445 = vadd.f32 %v4284, %v4444
      %v4446 = vpop.f32.mrb[0].mxu0
      %v4447 = vpop.f32.mrb[0].mxu0
      %v4448 = vadd.f32 %v4287, %v4447
      %v4449 = vpop.f32.mrb[0].mxu0
      %4450 = vdwg.mxu0
      %v4451 = vsel %vm1023, %v4325, 0.0
      %v4452 = vsel %vm1023, %v4328, 0.0
      %v4453 = vadd.f32 %v4451, %v4452
      %v4454 = vsel %vm1023, %v4333, 0.0
      %v4455 = vadd.f32 %v4453, %v4454
      %v4456 = vsel %vm1023, %v4336, 0.0
      %v4457 = vadd.f32 %v4455, %v4456
      %v4458 = vsel %vm1023, %v4341, 0.0
      %v4459 = vadd.f32 %v4457, %v4458
      %v4460 = vsel %vm1023, %v4344, 0.0
      %v4461 = vadd.f32 %v4459, %v4460
      %v4462 = vsel %vm1023, %v4349, 0.0
      %v4463 = vadd.f32 %v4461, %v4462
      %v4464 = vsel %vm1023, %v4352, 0.0
      %v4465 = vadd.f32 %v4463, %v4464
      %v4466 = vsel %vm1023, %v4357, 0.0
      %v4467 = vadd.f32 %v4465, %v4466
      %v4468 = vsel %vm1023, %v4360, 0.0
      %v4469 = vadd.f32 %v4467, %v4468
      %v4470 = vsel %vm1023, %v4365, 0.0
      %v4471 = vadd.f32 %v4469, %v4470
      %v4472 = vsel %vm1023, %v4368, 0.0
      %v4473 = vadd.f32 %v4471, %v4472
      %v4474 = vsel %vm1023, %v4373, 0.0
      %v4475 = vadd.f32 %v4473, %v4474
      %v4476 = vsel %vm1023, %v4376, 0.0
      %v4477 = vadd.f32 %v4475, %v4476
      %v4478 = vsel %vm1023, %v4381, 0.0
      %v4479 = vadd.f32 %v4477, %v4478
      %v4480 = vsel %vm1023, %v4384, 0.0
      %v4481 = vadd.f32 %v4479, %v4480
      %v4482 = vsel %vm1023, %v4389, 0.0
      %v4483 = vadd.f32 %v4481, %v4482
      %v4484 = vsel %vm1023, %v4392, 0.0
      %v4485 = vadd.f32 %v4483, %v4484
      %v4486 = vsel %vm1023, %v4397, 0.0
      %v4487 = vadd.f32 %v4485, %v4486
      %v4488 = vsel %vm1023, %v4400, 0.0
      %v4489 = vadd.f32 %v4487, %v4488
      %v4490 = vsel %vm1023, %v4405, 0.0
      %v4491 = vadd.f32 %v4489, %v4490
      %v4492 = vsel %vm1023, %v4408, 0.0
      %v4493 = vadd.f32 %v4491, %v4492
      %v4494 = vsel %vm1023, %v4413, 0.0
      %v4495 = vadd.f32 %v4493, %v4494
      %v4496 = vsel %vm1023, %v4416, 0.0
      %v4497 = vadd.f32 %v4495, %v4496
      %v4498 = vsel %vm1023, %v4421, 0.0
      %v4499 = vadd.f32 %v4497, %v4498
      %v4500 = vsel %vm1023, %v4424, 0.0
      %v4501 = vadd.f32 %v4499, %v4500
      %v4502 = vsel %vm1023, %v4429, 0.0
      %v4503 = vadd.f32 %v4501, %v4502
      %v4504 = vsel %vm1023, %v4432, 0.0
      %v4505 = vadd.f32 %v4503, %v4504
      %v4506 = vsel %vm1023, %v4437, 0.0
      %v4507 = vadd.f32 %v4505, %v4506
      %v4508 = vsel %vm1023, %v4440, 0.0
      %v4509 = vadd.f32 %v4507, %v4508
      %v4510 = vsel %vm1023, %v4445, 0.0
      %v4511 = vadd.f32 %v4509, %v4510
      %v4512 = vsel %vm1023, %v4448, 0.0
      %v4513 = vadd.f32 %v4511, %v4512
      %v4514 = vrot.slane %v4513, 4
      %v4515 = vadd.f32 %v4513, %v4514
      %v4516 = vrot.slane %v4515, 2
      %v4517 = vadd.f32 %v4515, %v4516
      %v4518 = vrot.slane %v4517, 1
      %v4519 = vadd.f32 %v4517, %v4518
      %v4520 = vmul.f32 %v4519, %v355
      %v4521 = vsub.f32 %v4325, %v4520
      %v4522 = vsub.f32 %v4328, %v4520
      %v4523 = vsub.f32 %v4333, %v4520
      %v4524 = vsub.f32 %v4336, %v4520
      %v4525 = vsub.f32 %v4341, %v4520
      %v4526 = vsub.f32 %v4344, %v4520
      %v4527 = vsub.f32 %v4349, %v4520
      %v4528 = vsub.f32 %v4352, %v4520
      %v4529 = vsub.f32 %v4357, %v4520
      %v4530 = vsub.f32 %v4360, %v4520
      %v4531 = vsub.f32 %v4365, %v4520
      %v4532 = vsub.f32 %v4368, %v4520
      %v4533 = vsub.f32 %v4373, %v4520
      %v4534 = vsub.f32 %v4376, %v4520
      %v4535 = vsub.f32 %v4381, %v4520
      %v4536 = vsub.f32 %v4384, %v4520
      %v4537 = vsub.f32 %v4389, %v4520
      %v4538 = vsub.f32 %v4392, %v4520
      %v4539 = vsub.f32 %v4397, %v4520
      %v4540 = vsub.f32 %v4400, %v4520
      %v4541 = vsub.f32 %v4405, %v4520
      %v4542 = vsub.f32 %v4408, %v4520
      %v4543 = vsub.f32 %v4413, %v4520
      %v4544 = vsub.f32 %v4416, %v4520
      %v4545 = vsub.f32 %v4421, %v4520
      %v4546 = vsub.f32 %v4424, %v4520
      %v4547 = vsub.f32 %v4429, %v4520
      %v4548 = vsub.f32 %v4432, %v4520
      %v4549 = vsub.f32 %v4437, %v4520
      %v4550 = vsub.f32 %v4440, %v4520
      %v4551 = vsub.f32 %v4445, %v4520
      %v4552 = vsub.f32 %v4448, %v4520
      %v4553 = vmul.f32 %v4521, %v4521
      %v4554 = vmul.f32 %v4522, %v4522
      %v4555 = vmul.f32 %v4523, %v4523
      %v4556 = vmul.f32 %v4524, %v4524
      %v4557 = vmul.f32 %v4525, %v4525
      %v4558 = vmul.f32 %v4526, %v4526
      %v4559 = vmul.f32 %v4527, %v4527
      %v4560 = vmul.f32 %v4528, %v4528
      %v4561 = vmul.f32 %v4529, %v4529
      %v4562 = vmul.f32 %v4530, %v4530
      %v4563 = vmul.f32 %v4531, %v4531
      %v4564 = vmul.f32 %v4532, %v4532
      %v4565 = vmul.f32 %v4533, %v4533
      %v4566 = vmul.f32 %v4534, %v4534
      %v4567 = vmul.f32 %v4535, %v4535
      %v4568 = vmul.f32 %v4536, %v4536
      %v4569 = vmul.f32 %v4537, %v4537
      %v4570 = vmul.f32 %v4538, %v4538
      %v4571 = vmul.f32 %v4539, %v4539
      %v4572 = vmul.f32 %v4540, %v4540
      %v4573 = vmul.f32 %v4541, %v4541
      %v4574 = vmul.f32 %v4542, %v4542
      %v4575 = vmul.f32 %v4543, %v4543
      %v4576 = vmul.f32 %v4544, %v4544
      %v4577 = vmul.f32 %v4545, %v4545
      %v4578 = vmul.f32 %v4546, %v4546
      %v4579 = vmul.f32 %v4547, %v4547
      %v4580 = vmul.f32 %v4548, %v4548
      %v4581 = vmul.f32 %v4549, %v4549
      %v4582 = vmul.f32 %v4550, %v4550
      %v4583 = vmul.f32 %v4551, %v4551
      %v4584 = vmul.f32 %v4552, %v4552
      %v4585 = vsel %vm1023, %v4553, 0.0
      %v4586 = vsel %vm1023, %v4554, 0.0
      %v4587 = vadd.f32 %v4585, %v4586
      %v4588 = vsel %vm1023, %v4555, 0.0
      %v4589 = vadd.f32 %v4587, %v4588
      %v4590 = vsel %vm1023, %v4556, 0.0
      %v4591 = vadd.f32 %v4589, %v4590
      %v4592 = vsel %vm1023, %v4557, 0.0
      %v4593 = vadd.f32 %v4591, %v4592
      %v4594 = vsel %vm1023, %v4558, 0.0
      %v4595 = vadd.f32 %v4593, %v4594
      %v4596 = vsel %vm1023, %v4559, 0.0
      %v4597 = vadd.f32 %v4595, %v4596
      %v4598 = vsel %vm1023, %v4560, 0.0
      %v4599 = vadd.f32 %v4597, %v4598
      %v4600 = vsel %vm1023, %v4561, 0.0
      %v4601 = vadd.f32 %v4599, %v4600
      %v4602 = vsel %vm1023, %v4562, 0.0
      %v4603 = vadd.f32 %v4601, %v4602
      %v4604 = vsel %vm1023, %v4563, 0.0
      %v4605 = vadd.f32 %v4603, %v4604
      %v4606 = vsel %vm1023, %v4564, 0.0
      %v4607 = vadd.f32 %v4605, %v4606
      %v4608 = vsel %vm1023, %v4565, 0.0
      %v4609 = vadd.f32 %v4607, %v4608
      %v4610 = vsel %vm1023, %v4566, 0.0
      %v4611 = vadd.f32 %v4609, %v4610
      %v4612 = vsel %vm1023, %v4567, 0.0
      %v4613 = vadd.f32 %v4611, %v4612
      %v4614 = vsel %vm1023, %v4568, 0.0
      %v4615 = vadd.f32 %v4613, %v4614
      %v4616 = vsel %vm1023, %v4569, 0.0
      %v4617 = vadd.f32 %v4615, %v4616
      %v4618 = vsel %vm1023, %v4570, 0.0
      %v4619 = vadd.f32 %v4617, %v4618
      %v4620 = vsel %vm1023, %v4571, 0.0
      %v4621 = vadd.f32 %v4619, %v4620
      %v4622 = vsel %vm1023, %v4572, 0.0
      %v4623 = vadd.f32 %v4621, %v4622
      %v4624 = vsel %vm1023, %v4573, 0.0
      %v4625 = vadd.f32 %v4623, %v4624
      %v4626 = vsel %vm1023, %v4574, 0.0
      %v4627 = vadd.f32 %v4625, %v4626
      %v4628 = vsel %vm1023, %v4575, 0.0
      %v4629 = vadd.f32 %v4627, %v4628
      %v4630 = vsel %vm1023, %v4576, 0.0
      %v4631 = vadd.f32 %v4629, %v4630
      %v4632 = vsel %vm1023, %v4577, 0.0
      %v4633 = vadd.f32 %v4631, %v4632
      %v4634 = vsel %vm1023, %v4578, 0.0
      %v4635 = vadd.f32 %v4633, %v4634
      %v4636 = vsel %vm1023, %v4579, 0.0
      %v4637 = vadd.f32 %v4635, %v4636
      %v4638 = vsel %vm1023, %v4580, 0.0
      %v4639 = vadd.f32 %v4637, %v4638
      %v4640 = vsel %vm1023, %v4581, 0.0
      %v4641 = vadd.f32 %v4639, %v4640
      %v4642 = vsel %vm1023, %v4582, 0.0
      %v4643 = vadd.f32 %v4641, %v4642
      %v4644 = vsel %vm1023, %v4583, 0.0
      %v4645 = vadd.f32 %v4643, %v4644
      %v4646 = vsel %vm1023, %v4584, 0.0
      %v4647 = vadd.f32 %v4645, %v4646
      %v4648 = vrot.slane %v4647, 4
      %v4649 = vadd.f32 %v4647, %v4648
      %v4650 = vrot.slane %v4649, 2
      %v4651 = vadd.f32 %v4649, %v4650
      %v4652 = vrot.slane %v4651, 1
      %v4653 = vadd.f32 %v4651, %v4652
      %v4654 = vmul.f32 %v4653, %v355
      %v4655 = vadd.f32 %v4654, 1e-05
      %v4656 = vrsqrt.pop %v4655
      %v4657 = vmul.f32 %v4521, %v4656
      %v4658 = vmul.f32 %v4522, %v4656
      %v4659 = vmul.f32 %v4523, %v4656
      %v4660 = vmul.f32 %v4524, %v4656
      %v4661 = vmul.f32 %v4525, %v4656
      %v4662 = vmul.f32 %v4526, %v4656
      %v4663 = vmul.f32 %v4527, %v4656
      %v4664 = vmul.f32 %v4528, %v4656
      %v4665 = vmul.f32 %v4529, %v4656
      %v4666 = vmul.f32 %v4530, %v4656
      %v4667 = vmul.f32 %v4531, %v4656
      %v4668 = vmul.f32 %v4532, %v4656
      %v4669 = vmul.f32 %v4533, %v4656
      %v4670 = vmul.f32 %v4534, %v4656
      %v4671 = vmul.f32 %v4535, %v4656
      %v4672 = vmul.f32 %v4536, %v4656
      %v4673 = vmul.f32 %v4537, %v4656
      %v4674 = vmul.f32 %v4538, %v4656
      %v4675 = vmul.f32 %v4539, %v4656
      %v4676 = vmul.f32 %v4540, %v4656
      %v4677 = vmul.f32 %v4541, %v4656
      %v4678 = vmul.f32 %v4542, %v4656
      %v4679 = vmul.f32 %v4543, %v4656
      %v4680 = vmul.f32 %v4544, %v4656
      %v4681 = vmul.f32 %v4545, %v4656
      %v4682 = vmul.f32 %v4546, %v4656
      %v4683 = vmul.f32 %v4547, %v4656
      %v4684 = vmul.f32 %v4548, %v4656
      %v4685 = vmul.f32 %v4549, %v4656
      %v4686 = vmul.f32 %v4550, %v4656
      %v4687 = vmul.f32 %v4551, %v4656
      %v4688 = vmul.f32 %v4552, %v4656
      %v4689 = vmax.f32 %v4657, 0.0
      %v4690 = vmax.f32 %v4658, 0.0
      %v4691 = vmax.f32 %v4659, 0.0
      %v4692 = vmax.f32 %v4660, 0.0
      %v4693 = vmax.f32 %v4661, 0.0
      %v4694 = vmax.f32 %v4662, 0.0
      %v4695 = vmax.f32 %v4663, 0.0
      %v4696 = vmax.f32 %v4664, 0.0
      %v4697 = vmax.f32 %v4665, 0.0
      %v4698 = vmax.f32 %v4666, 0.0
      %v4699 = vmax.f32 %v4667, 0.0
      %v4700 = vmax.f32 %v4668, 0.0
      %v4701 = vmax.f32 %v4669, 0.0
      %v4702 = vmax.f32 %v4670, 0.0
      %v4703 = vmax.f32 %v4671, 0.0
      %v4704 = vmax.f32 %v4672, 0.0
      %v4705 = vmax.f32 %v4673, 0.0
      %v4706 = vmax.f32 %v4674, 0.0
      %v4707 = vmax.f32 %v4675, 0.0
      %v4708 = vmax.f32 %v4676, 0.0
      %v4709 = vmax.f32 %v4677, 0.0
      %v4710 = vmax.f32 %v4678, 0.0
      %v4711 = vmax.f32 %v4679, 0.0
      %v4712 = vmax.f32 %v4680, 0.0
      %v4713 = vmax.f32 %v4681, 0.0
      %v4714 = vmax.f32 %v4682, 0.0
      %v4715 = vmax.f32 %v4683, 0.0
      %v4716 = vmax.f32 %v4684, 0.0
      %v4717 = vmax.f32 %v4685, 0.0
      %v4718 = vmax.f32 %v4686, 0.0
      %v4719 = vmax.f32 %v4687, 0.0
      %v4720 = vmax.f32 %v4688, 0.0
      %v4721 = vpack.c.bf16 %v4690, %v4689
      %v4722 = vpack.c.bf16 %v4692, %v4691
      %v4723 = vpack.c.bf16 %v4694, %v4693
      %v4724 = vpack.c.bf16 %v4696, %v4695
      %v4725 = vpack.c.bf16 %v4698, %v4697
      %v4726 = vpack.c.bf16 %v4700, %v4699
      %v4727 = vpack.c.bf16 %v4702, %v4701
      %v4728 = vpack.c.bf16 %v4704, %v4703
      %v4729 = vpack.c.bf16 %v4706, %v4705
      %v4730 = vpack.c.bf16 %v4708, %v4707
      %v4731 = vpack.c.bf16 %v4710, %v4709
      %v4732 = vpack.c.bf16 %v4712, %v4711
      %v4733 = vpack.c.bf16 %v4714, %v4713
      %v4734 = vpack.c.bf16 %v4716, %v4715
      %v4735 = vpack.c.bf16 %v4718, %v4717
      %v4736 = vpack.c.bf16 %v4720, %v4719
      %v4738 = vshrl.u32 %v4721, 16
      %v4740 = vrot.slane %v4738, 7
      %v4741 = vshll.u32 %v4721, 16
      %v4743 = vor.u32 %v4740, %v4741
      %v4745 = vshrl.u32 %v4722, 16
      %v4747 = vrot.slane %v4745, 7
      %v4748 = vshll.u32 %v4722, 16
      %v4750 = vor.u32 %v4747, %v4748
      %v4752 = vshrl.u32 %v4723, 16
      %v4754 = vrot.slane %v4752, 7
      %v4755 = vshll.u32 %v4723, 16
      %v4757 = vor.u32 %v4754, %v4755
      %v4759 = vshrl.u32 %v4724, 16
      %v4761 = vrot.slane %v4759, 7
      %v4762 = vshll.u32 %v4724, 16
      %v4764 = vor.u32 %v4761, %v4762
      %v4766 = vshrl.u32 %v4725, 16
      %v4768 = vrot.slane %v4766, 7
      %v4769 = vshll.u32 %v4725, 16
      %v4771 = vor.u32 %v4768, %v4769
      %v4773 = vshrl.u32 %v4726, 16
      %v4775 = vrot.slane %v4773, 7
      %v4776 = vshll.u32 %v4726, 16
      %v4778 = vor.u32 %v4775, %v4776
      %v4780 = vshrl.u32 %v4727, 16
      %v4782 = vrot.slane %v4780, 7
      %v4783 = vshll.u32 %v4727, 16
      %v4785 = vor.u32 %v4782, %v4783
      %v4787 = vshrl.u32 %v4728, 16
      %v4789 = vrot.slane %v4787, 7
      %v4790 = vshll.u32 %v4728, 16
      %v4792 = vor.u32 %v4789, %v4790
      %v4794 = vshrl.u32 %v4729, 16
      %v4796 = vrot.slane %v4794, 7
      %v4797 = vshll.u32 %v4729, 16
      %v4799 = vor.u32 %v4796, %v4797
      %v4801 = vshrl.u32 %v4730, 16
      %v4803 = vrot.slane %v4801, 7
      %v4804 = vshll.u32 %v4730, 16
      %v4806 = vor.u32 %v4803, %v4804
      %v4808 = vshrl.u32 %v4731, 16
      %v4810 = vrot.slane %v4808, 7
      %v4811 = vshll.u32 %v4731, 16
      %v4813 = vor.u32 %v4810, %v4811
      %v4815 = vshrl.u32 %v4732, 16
      %v4817 = vrot.slane %v4815, 7
      %v4818 = vshll.u32 %v4732, 16
      %v4820 = vor.u32 %v4817, %v4818
      %v4822 = vshrl.u32 %v4733, 16
      %v4824 = vrot.slane %v4822, 7
      %v4825 = vshll.u32 %v4733, 16
      %v4827 = vor.u32 %v4824, %v4825
      %v4829 = vshrl.u32 %v4734, 16
      %v4831 = vrot.slane %v4829, 7
      %v4832 = vshll.u32 %v4734, 16
      %v4834 = vor.u32 %v4831, %v4832
      %v4836 = vshrl.u32 %v4735, 16
      %v4838 = vrot.slane %v4836, 7
      %v4839 = vshll.u32 %v4735, 16
      %v4841 = vor.u32 %v4838, %v4839
      %v4843 = vshrl.u32 %v4736, 16
      %v4845 = vrot.slane %v4843, 7
      %v4846 = vshll.u32 %v4736, 16
      %v4848 = vor.u32 %v4845, %v4846
      %v4881 = vsel %vm1465, 0, %v4743
      %v4882 = vsel %vm1465, 0, %v4750
      %v4883 = vsel %vm1465, 0, %v4757
      %v4884 = vsel %vm1465, 0, %v4764
      %v4885 = vsel %vm1465, 0, %v4771
      %v4886 = vsel %vm1465, 0, %v4778
      %v4887 = vsel %vm1465, 0, %v4785
      %v4888 = vsel %vm1465, 0, %v4792
      %v4889 = vsel %vm1465, 0, %v4799
      %v4890 = vsel %vm1465, 0, %v4806
      %v4891 = vsel %vm1465, 0, %v4813
      %v4892 = vsel %vm1465, 0, %v4820
      %v4893 = vsel %vm1465, 0, %v4827
      %v4894 = vsel %vm1465, 0, %v4834
      %v4895 = vsel %vm1465, 0, %v4841
      %v4896 = vsel %vm1465, 0, %v4848
      %v4897 = vsel %vm1465, %v4740, 0
      %v4898 = vsel %vm1465, %v4747, 0
      %v4899 = vsel %vm1465, %v4754, 0
      %v4900 = vsel %vm1465, %v4761, 0
      %v4901 = vsel %vm1465, %v4768, 0
      %v4902 = vsel %vm1465, %v4775, 0
      %v4903 = vsel %vm1465, %v4782, 0
      %v4904 = vsel %vm1465, %v4789, 0
      %v4905 = vsel %vm1465, %v4796, 0
      %v4906 = vsel %vm1465, %v4803, 0
      %v4907 = vsel %vm1465, %v4810, 0
      %v4908 = vsel %vm1465, %v4817, 0
      %v4909 = vsel %vm1465, %v4824, 0
      %v4910 = vsel %vm1465, %v4831, 0
      %v4911 = vsel %vm1465, %v4838, 0
      %v4912 = vsel %vm1465, %v4845, 0
      %v4914 = vshrl.u32 %v4881, 16
      %v4916 = vshll.u32 %v4881, 16
      %v4918 = vrot.slane %v4916, 1
      %v4919 = vor.u32 %v4914, %v4918
      %v4921 = vshll.u32 %v4897, 16
      %v4923 = vrot.slane %v4921, 1
      %v4924 = vsel %vm1500, %v4919, %v4923
      %v4926 = vshrl.u32 %v4882, 16
      %v4928 = vshll.u32 %v4882, 16
      %v4930 = vrot.slane %v4928, 1
      %v4931 = vor.u32 %v4926, %v4930
      %v4933 = vshll.u32 %v4898, 16
      %v4935 = vrot.slane %v4933, 1
      %v4936 = vsel %vm1500, %v4931, %v4935
      %v4938 = vshrl.u32 %v4883, 16
      %v4940 = vshll.u32 %v4883, 16
      %v4942 = vrot.slane %v4940, 1
      %v4943 = vor.u32 %v4938, %v4942
      %v4945 = vshll.u32 %v4899, 16
      %v4947 = vrot.slane %v4945, 1
      %v4948 = vsel %vm1500, %v4943, %v4947
      %v4950 = vshrl.u32 %v4884, 16
      %v4952 = vshll.u32 %v4884, 16
      %v4954 = vrot.slane %v4952, 1
      %v4955 = vor.u32 %v4950, %v4954
      %v4957 = vshll.u32 %v4900, 16
      %v4959 = vrot.slane %v4957, 1
      %v4960 = vsel %vm1500, %v4955, %v4959
      %v4962 = vshrl.u32 %v4885, 16
      %v4964 = vshll.u32 %v4885, 16
      %v4966 = vrot.slane %v4964, 1
      %v4967 = vor.u32 %v4962, %v4966
      %v4969 = vshll.u32 %v4901, 16
      %v4971 = vrot.slane %v4969, 1
      %v4972 = vsel %vm1500, %v4967, %v4971
      %v4974 = vshrl.u32 %v4886, 16
      %v4976 = vshll.u32 %v4886, 16
      %v4978 = vrot.slane %v4976, 1
      %v4979 = vor.u32 %v4974, %v4978
      %v4981 = vshll.u32 %v4902, 16
      %v4983 = vrot.slane %v4981, 1
      %v4984 = vsel %vm1500, %v4979, %v4983
      %v4986 = vshrl.u32 %v4887, 16
      %v4988 = vshll.u32 %v4887, 16
      %v4990 = vrot.slane %v4988, 1
      %v4991 = vor.u32 %v4986, %v4990
      %v4993 = vshll.u32 %v4903, 16
      %v4995 = vrot.slane %v4993, 1
      %v4996 = vsel %vm1500, %v4991, %v4995
      %v4998 = vshrl.u32 %v4888, 16
      %v5000 = vshll.u32 %v4888, 16
      %v5002 = vrot.slane %v5000, 1
      %v5003 = vor.u32 %v4998, %v5002
      %v5005 = vshll.u32 %v4904, 16
      %v5007 = vrot.slane %v5005, 1
      %v5008 = vsel %vm1500, %v5003, %v5007
      %v5010 = vshrl.u32 %v4889, 16
      %v5012 = vshll.u32 %v4889, 16
      %v5014 = vrot.slane %v5012, 1
      %v5015 = vor.u32 %v5010, %v5014
      %v5017 = vshll.u32 %v4905, 16
      %v5019 = vrot.slane %v5017, 1
      %v5020 = vsel %vm1500, %v5015, %v5019
      %v5022 = vshrl.u32 %v4890, 16
      %v5024 = vshll.u32 %v4890, 16
      %v5026 = vrot.slane %v5024, 1
      %v5027 = vor.u32 %v5022, %v5026
      %v5029 = vshll.u32 %v4906, 16
      %v5031 = vrot.slane %v5029, 1
      %v5032 = vsel %vm1500, %v5027, %v5031
      %v5034 = vshrl.u32 %v4891, 16
      %v5036 = vshll.u32 %v4891, 16
      %v5038 = vrot.slane %v5036, 1
      %v5039 = vor.u32 %v5034, %v5038
      %v5041 = vshll.u32 %v4907, 16
      %v5043 = vrot.slane %v5041, 1
      %v5044 = vsel %vm1500, %v5039, %v5043
      %v5046 = vshrl.u32 %v4892, 16
      %v5048 = vshll.u32 %v4892, 16
      %v5050 = vrot.slane %v5048, 1
      %v5051 = vor.u32 %v5046, %v5050
      %v5053 = vshll.u32 %v4908, 16
      %v5055 = vrot.slane %v5053, 1
      %v5056 = vsel %vm1500, %v5051, %v5055
      %v5058 = vshrl.u32 %v4893, 16
      %v5060 = vshll.u32 %v4893, 16
      %v5062 = vrot.slane %v5060, 1
      %v5063 = vor.u32 %v5058, %v5062
      %v5065 = vshll.u32 %v4909, 16
      %v5067 = vrot.slane %v5065, 1
      %v5068 = vsel %vm1500, %v5063, %v5067
      %v5070 = vshrl.u32 %v4894, 16
      %v5072 = vshll.u32 %v4894, 16
      %v5074 = vrot.slane %v5072, 1
      %v5075 = vor.u32 %v5070, %v5074
      %v5077 = vshll.u32 %v4910, 16
      %v5079 = vrot.slane %v5077, 1
      %v5080 = vsel %vm1500, %v5075, %v5079
      %v5082 = vshrl.u32 %v4895, 16
      %v5084 = vshll.u32 %v4895, 16
      %v5086 = vrot.slane %v5084, 1
      %v5087 = vor.u32 %v5082, %v5086
      %v5089 = vshll.u32 %v4911, 16
      %v5091 = vrot.slane %v5089, 1
      %v5092 = vsel %vm1500, %v5087, %v5091
      %v5123 = vrot.slane %v4881, 1
      %v5124 = vrot.slane %v4897, 1
      %v5125 = vsel %vm1725, %v5123, %v5124
      %v5126 = vrot.slane %v4882, 1
      %v5127 = vrot.slane %v4898, 1
      %v5128 = vsel %vm1725, %v5126, %v5127
      %v5129 = vrot.slane %v4883, 1
      %v5130 = vrot.slane %v4899, 1
      %v5131 = vsel %vm1725, %v5129, %v5130
      %v5132 = vrot.slane %v4884, 1
      %v5133 = vrot.slane %v4900, 1
      %v5134 = vsel %vm1725, %v5132, %v5133
      %v5135 = vrot.slane %v4885, 1
      %v5136 = vrot.slane %v4901, 1
      %v5137 = vsel %vm1725, %v5135, %v5136
      %v5138 = vrot.slane %v4886, 1
      %v5139 = vrot.slane %v4902, 1
      %v5140 = vsel %vm1725, %v5138, %v5139
      %v5141 = vrot.slane %v4887, 1
      %v5142 = vrot.slane %v4903, 1
      %v5143 = vsel %vm1725, %v5141, %v5142
      %v5144 = vrot.slane %v4888, 1
      %v5145 = vrot.slane %v4904, 1
      %v5146 = vsel %vm1725, %v5144, %v5145
      %v5147 = vrot.slane %v4889, 1
      %v5148 = vrot.slane %v4905, 1
      %v5149 = vsel %vm1725, %v5147, %v5148
      %v5150 = vrot.slane %v4890, 1
      %v5151 = vrot.slane %v4906, 1
      %v5152 = vsel %vm1725, %v5150, %v5151
      %v5153 = vrot.slane %v4891, 1
      %v5154 = vrot.slane %v4907, 1
      %v5155 = vsel %vm1725, %v5153, %v5154
      %v5156 = vrot.slane %v4892, 1
      %v5157 = vrot.slane %v4908, 1
      %v5158 = vsel %vm1725, %v5156, %v5157
      %v5159 = vrot.slane %v4893, 1
      %v5160 = vrot.slane %v4909, 1
      %v5161 = vsel %vm1725, %v5159, %v5160
      %v5162 = vrot.slane %v4894, 1
      %v5163 = vrot.slane %v4910, 1
      %v5164 = vsel %vm1725, %v5162, %v5163
      %v5165 = vrot.slane %v4895, 1
      %v5166 = vrot.slane %v4911, 1
      %v5167 = vsel %vm1725, %v5165, %v5166
      %v5169 = vshrl.u32 %v4896, 16
      %v5171 = vshll.u32 %v4896, 16
      %v5173 = vrot.slane %v5171, 1
      %v5174 = vor.u32 %v5169, %v5173
      %v5176 = vshll.u32 %v4912, 16
      %v5178 = vrot.slane %v5176, 1
      %v5179 = vsel %vm1500, %v5174, %v5178
      %v5182 = vrot.slane %v4896, 1
      %v5183 = vrot.slane %v4912, 1
      %v5184 = vsel %vm1725, %v5182, %v5183
      %5185 = vrot.lane.b32.xlu0 %v4924, 48
      %v5186 = vpop.permute.xlu0 %5185
      %5187 = vrot.lane.b32.xlu0 %v4936, 48
      %v5188 = vpop.permute.xlu0 %5187
      %5189 = vrot.lane.b32.xlu0 %v4948, 48
      %v5190 = vpop.permute.xlu0 %5189
      %5191 = vrot.lane.b32.xlu0 %v4960, 48
      %v5192 = vpop.permute.xlu0 %5191
      %5193 = vrot.lane.b32.xlu0 %v4972, 48
      %v5194 = vpop.permute.xlu0 %5193
      %5195 = vrot.lane.b32.xlu0 %v4984, 48
      %v5196 = vpop.permute.xlu0 %5195
      %5197 = vrot.lane.b32.xlu0 %v4996, 48
      %v5198 = vpop.permute.xlu0 %5197
      %5199 = vrot.lane.b32.xlu0 %v5008, 48
      %v5200 = vpop.permute.xlu0 %5199
      %5201 = vrot.lane.b32.xlu0 %v5020, 48
      %v5202 = vpop.permute.xlu0 %5201
      %5203 = vrot.lane.b32.xlu0 %v5032, 48
      %v5204 = vpop.permute.xlu0 %5203
      %5205 = vrot.lane.b32.xlu0 %v5044, 48
      %v5206 = vpop.permute.xlu0 %5205
      %5207 = vrot.lane.b32.xlu0 %v5056, 48
      %v5208 = vpop.permute.xlu0 %5207
      %5209 = vrot.lane.b32.xlu0 %v5068, 48
      %v5210 = vpop.permute.xlu0 %5209
      %5211 = vrot.lane.b32.xlu0 %v5080, 48
      %v5212 = vpop.permute.xlu0 %5211
      %5213 = vrot.lane.b32.xlu0 %v5092, 48
      %v5214 = vpop.permute.xlu0 %5213
      %5215 = vrot.lane.b32.xlu0 %v5125, 96
      %v5216 = vpop.permute.xlu0 %5215
      %5217 = vrot.lane.b32.xlu0 %v5128, 96
      %v5218 = vpop.permute.xlu0 %5217
      %5219 = vrot.lane.b32.xlu0 %v5131, 96
      %v5220 = vpop.permute.xlu0 %5219
      %5221 = vrot.lane.b32.xlu0 %v5134, 96
      %v5222 = vpop.permute.xlu0 %5221
      %5223 = vrot.lane.b32.xlu0 %v5137, 96
      %v5224 = vpop.permute.xlu0 %5223
      %5225 = vrot.lane.b32.xlu0 %v5140, 96
      %v5226 = vpop.permute.xlu0 %5225
      %5227 = vrot.lane.b32.xlu0 %v5143, 96
      %v5228 = vpop.permute.xlu0 %5227
      %5229 = vrot.lane.b32.xlu0 %v5146, 96
      %v5230 = vpop.permute.xlu0 %5229
      %5231 = vrot.lane.b32.xlu0 %v5149, 96
      %v5232 = vpop.permute.xlu0 %5231
      %5233 = vrot.lane.b32.xlu0 %v5152, 96
      %v5234 = vpop.permute.xlu0 %5233
      %5235 = vrot.lane.b32.xlu0 %v5155, 96
      %v5236 = vpop.permute.xlu0 %5235
      %5237 = vrot.lane.b32.xlu0 %v5158, 96
      %v5238 = vpop.permute.xlu0 %5237
      %5239 = vrot.lane.b32.xlu0 %v5161, 96
      %v5240 = vpop.permute.xlu0 %5239
      %5241 = vrot.lane.b32.xlu0 %v5164, 96
      %v5242 = vpop.permute.xlu0 %5241
      %5243 = vrot.lane.b32.xlu0 %v5167, 96
      %v5244 = vpop.permute.xlu0 %5243
      %5245 = vrot.lane.b32.xlu0 %v4881, 16
      %v5246 = vpop.permute.xlu0 %5245
      %5247 = vrot.lane.b32.xlu0 %v4882, 16
      %v5248 = vpop.permute.xlu0 %5247
      %5249 = vrot.lane.b32.xlu0 %v4883, 16
      %v5250 = vpop.permute.xlu0 %5249
      %5251 = vrot.lane.b32.xlu0 %v4884, 16
      %v5252 = vpop.permute.xlu0 %5251
      %5253 = vrot.lane.b32.xlu0 %v4885, 16
      %v5254 = vpop.permute.xlu0 %5253
      %5255 = vrot.lane.b32.xlu0 %v4886, 16
      %v5256 = vpop.permute.xlu0 %5255
      %5257 = vrot.lane.b32.xlu0 %v4887, 16
      %v5258 = vpop.permute.xlu0 %5257
      %5259 = vrot.lane.b32.xlu0 %v4888, 16
      %v5260 = vpop.permute.xlu0 %5259
      %5261 = vrot.lane.b32.xlu0 %v4889, 16
      %v5262 = vpop.permute.xlu0 %5261
      %5263 = vrot.lane.b32.xlu0 %v4890, 16
      %v5264 = vpop.permute.xlu0 %5263
      %5265 = vrot.lane.b32.xlu0 %v4891, 16
      %v5266 = vpop.permute.xlu0 %5265
      %5267 = vrot.lane.b32.xlu0 %v4892, 16
      %v5268 = vpop.permute.xlu0 %5267
      %5269 = vrot.lane.b32.xlu0 %v4893, 16
      %v5270 = vpop.permute.xlu0 %5269
      %5271 = vrot.lane.b32.xlu0 %v4894, 16
      %v5272 = vpop.permute.xlu0 %5271
      %5273 = vrot.lane.b32.xlu0 %v4895, 16
      %v5274 = vpop.permute.xlu0 %5273
      %5275 = vrot.lane.b32.xlu0 %v4896, 16
      %v5276 = vpop.permute.xlu0 %5275
      %5277 = vrot.lane.b32.xlu0 %v4924, 64
      %v5278 = vpop.permute.xlu0 %5277
      %5279 = vrot.lane.b32.xlu0 %v4936, 64
      %v5280 = vpop.permute.xlu0 %5279
      %5281 = vrot.lane.b32.xlu0 %v4948, 64
      %v5282 = vpop.permute.xlu0 %5281
      %5283 = vrot.lane.b32.xlu0 %v4960, 64
      %v5284 = vpop.permute.xlu0 %5283
      %5285 = vrot.lane.b32.xlu0 %v4972, 64
      %v5286 = vpop.permute.xlu0 %5285
      %5287 = vrot.lane.b32.xlu0 %v4984, 64
      %v5288 = vpop.permute.xlu0 %5287
      %5289 = vrot.lane.b32.xlu0 %v4996, 64
      %v5290 = vpop.permute.xlu0 %5289
      %5291 = vrot.lane.b32.xlu0 %v5008, 64
      %v5292 = vpop.permute.xlu0 %5291
      %5293 = vrot.lane.b32.xlu0 %v5020, 64
      %v5294 = vpop.permute.xlu0 %5293
      %5295 = vrot.lane.b32.xlu0 %v5032, 64
      %v5296 = vpop.permute.xlu0 %5295
      %5297 = vrot.lane.b32.xlu0 %v5044, 64
      %v5298 = vpop.permute.xlu0 %5297
      %5299 = vrot.lane.b32.xlu0 %v5056, 64
      %v5300 = vpop.permute.xlu0 %5299
      %5301 = vrot.lane.b32.xlu0 %v5068, 64
      %v5302 = vpop.permute.xlu0 %5301
      %5303 = vrot.lane.b32.xlu0 %v5080, 64
      %v5304 = vpop.permute.xlu0 %5303
      %5305 = vrot.lane.b32.xlu0 %v5092, 64
      %v5306 = vpop.permute.xlu0 %5305
      %5307 = vrot.lane.b32.xlu0 %v5179, 64
      %v5308 = vpop.permute.xlu0 %5307
      %5309 = vrot.lane.b32.xlu0 %v5125, 112
      %v5310 = vpop.permute.xlu0 %5309
      %5311 = vrot.lane.b32.xlu0 %v5128, 112
      %v5312 = vpop.permute.xlu0 %5311
      %5313 = vrot.lane.b32.xlu0 %v5131, 112
      %v5314 = vpop.permute.xlu0 %5313
      %5315 = vrot.lane.b32.xlu0 %v5134, 112
      %v5316 = vpop.permute.xlu0 %5315
      %5317 = vrot.lane.b32.xlu0 %v5137, 112
      %v5318 = vpop.permute.xlu0 %5317
      %5319 = vrot.lane.b32.xlu0 %v5140, 112
      %v5320 = vpop.permute.xlu0 %5319
      %5321 = vrot.lane.b32.xlu0 %v5143, 112
      %v5322 = vpop.permute.xlu0 %5321
      %5323 = vrot.lane.b32.xlu0 %v5146, 112
      %v5324 = vpop.permute.xlu0 %5323
      %5325 = vrot.lane.b32.xlu0 %v5149, 112
      %v5326 = vpop.permute.xlu0 %5325
      %5327 = vrot.lane.b32.xlu0 %v5152, 112
      %v5328 = vpop.permute.xlu0 %5327
      %5329 = vrot.lane.b32.xlu0 %v5155, 112
      %v5330 = vpop.permute.xlu0 %5329
      %5331 = vrot.lane.b32.xlu0 %v5158, 112
      %v5332 = vpop.permute.xlu0 %5331
      %5333 = vrot.lane.b32.xlu0 %v5161, 112
      %v5334 = vpop.permute.xlu0 %5333
      %5335 = vrot.lane.b32.xlu0 %v5164, 112
      %v5336 = vpop.permute.xlu0 %5335
      %5337 = vrot.lane.b32.xlu0 %v5167, 112
      %v5338 = vpop.permute.xlu0 %5337
      %5339 = vrot.lane.b32.xlu0 %v5184, 112
      %v5340 = vpop.permute.xlu0 %5339
      %5341 = vrot.lane.b32.xlu0 %v4882, 32
      %v5342 = vpop.permute.xlu0 %5341
      %5343 = vrot.lane.b32.xlu0 %v4883, 32
      %v5344 = vpop.permute.xlu0 %5343
      %5345 = vrot.lane.b32.xlu0 %v4884, 32
      %v5346 = vpop.permute.xlu0 %5345
      %5347 = vrot.lane.b32.xlu0 %v4885, 32
      %v5348 = vpop.permute.xlu0 %5347
      %5349 = vrot.lane.b32.xlu0 %v4886, 32
      %v5350 = vpop.permute.xlu0 %5349
      %5351 = vrot.lane.b32.xlu0 %v4887, 32
      %v5352 = vpop.permute.xlu0 %5351
      %5353 = vrot.lane.b32.xlu0 %v4888, 32
      %v5354 = vpop.permute.xlu0 %5353
      %5355 = vrot.lane.b32.xlu0 %v4889, 32
      %v5356 = vpop.permute.xlu0 %5355
      %5357 = vrot.lane.b32.xlu0 %v4890, 32
      %v5358 = vpop.permute.xlu0 %5357
      %5359 = vrot.lane.b32.xlu0 %v4891, 32
      %v5360 = vpop.permute.xlu0 %5359
      %5361 = vrot.lane.b32.xlu0 %v4892, 32
      %v5362 = vpop.permute.xlu0 %5361
      %5363 = vrot.lane.b32.xlu0 %v4893, 32
      %v5364 = vpop.permute.xlu0 %5363
      %5365 = vrot.lane.b32.xlu0 %v4894, 32
      %v5366 = vpop.permute.xlu0 %5365
      %5367 = vrot.lane.b32.xlu0 %v4895, 32
      %v5368 = vpop.permute.xlu0 %5367
      %5369 = vrot.lane.b32.xlu0 %v4896, 32
      %v5370 = vpop.permute.xlu0 %5369
      %5371 = vrot.lane.b32.xlu0 %v4936, 80
      %v5372 = vpop.permute.xlu0 %5371
      %5373 = vrot.lane.b32.xlu0 %v4948, 80
      %v5374 = vpop.permute.xlu0 %5373
      %5375 = vrot.lane.b32.xlu0 %v4960, 80
      %v5376 = vpop.permute.xlu0 %5375
      %5377 = vrot.lane.b32.xlu0 %v4972, 80
      %v5378 = vpop.permute.xlu0 %5377
      %5379 = vrot.lane.b32.xlu0 %v4984, 80
      %v5380 = vpop.permute.xlu0 %5379
      %5381 = vrot.lane.b32.xlu0 %v4996, 80
      %v5382 = vpop.permute.xlu0 %5381
      %5383 = vrot.lane.b32.xlu0 %v5008, 80
      %v5384 = vpop.permute.xlu0 %5383
      %5385 = vrot.lane.b32.xlu0 %v5020, 80
      %v5386 = vpop.permute.xlu0 %5385
      %5387 = vrot.lane.b32.xlu0 %v5032, 80
      %v5388 = vpop.permute.xlu0 %5387
      %5389 = vrot.lane.b32.xlu0 %v5044, 80
      %v5390 = vpop.permute.xlu0 %5389
      %5391 = vrot.lane.b32.xlu0 %v5056, 80
      %v5392 = vpop.permute.xlu0 %5391
      %5393 = vrot.lane.b32.xlu0 %v5068, 80
      %v5394 = vpop.permute.xlu0 %5393
      %5395 = vrot.lane.b32.xlu0 %v5080, 80
      %v5396 = vpop.permute.xlu0 %5395
      %5397 = vrot.lane.b32.xlu0 %v5092, 80
      %v5398 = vpop.permute.xlu0 %5397
      %5399 = vrot.lane.b32.xlu0 %v5179, 80
      %v5400 = vpop.permute.xlu0 %5399
      %v5402 = vsel %vm1023, %v4881, %v5186
      %v5404 = vsel %vm1023, %v4882, %v5188
      %v5406 = vsel %vm1023, %v4883, %v5190
      %v5408 = vsel %vm1023, %v4884, %v5192
      %v5410 = vsel %vm1023, %v4885, %v5194
      %v5412 = vsel %vm1023, %v4886, %v5196
      %v5414 = vsel %vm1023, %v4887, %v5198
      %v5416 = vsel %vm1023, %v4888, %v5200
      %v5418 = vsel %vm1023, %v4889, %v5202
      %v5420 = vsel %vm1023, %v4890, %v5204
      %v5422 = vsel %vm1023, %v4891, %v5206
      %v5424 = vsel %vm1023, %v4892, %v5208
      %v5426 = vsel %vm1023, %v4893, %v5210
      %v5428 = vsel %vm1023, %v4894, %v5212
      %v5430 = vsel %vm1023, %v4895, %v5214
      %v5432 = vsel %vm2047, %v5402, %v5216
      %v5435 = vsel %vm2047, %v5404, %v5218
      %v5438 = vsel %vm2047, %v5406, %v5220
      %v5441 = vsel %vm2047, %v5408, %v5222
      %v5444 = vsel %vm2047, %v5410, %v5224
      %v5447 = vsel %vm2047, %v5412, %v5226
      %v5450 = vsel %vm2047, %v5414, %v5228
      %v5453 = vsel %vm2047, %v5416, %v5230
      %v5456 = vsel %vm2047, %v5418, %v5232
      %v5459 = vsel %vm2047, %v5420, %v5234
      %v5462 = vsel %vm2047, %v5422, %v5236
      %v5465 = vsel %vm2047, %v5424, %v5238
      %v5468 = vsel %vm2047, %v5426, %v5240
      %v5471 = vsel %vm2047, %v5428, %v5242
      %v5474 = vsel %vm2047, %v5430, %v5244
      %v5477 = vsel %vm285, %v1824, %v5246
      %v5479 = vsel %vm285, %v5216, %v5248
      %v5481 = vsel %vm285, %v5218, %v5250
      %v5483 = vsel %vm285, %v5220, %v5252
      %v5485 = vsel %vm285, %v5222, %v5254
      %v5487 = vsel %vm285, %v5224, %v5256
      %v5489 = vsel %vm285, %v5226, %v5258
      %v5491 = vsel %vm285, %v5228, %v5260
      %v5493 = vsel %vm285, %v5230, %v5262
      %v5495 = vsel %vm285, %v5232, %v5264
      %v5497 = vsel %vm285, %v5234, %v5266
      %v5499 = vsel %vm285, %v5236, %v5268
      %v5501 = vsel %vm285, %v5238, %v5270
      %v5503 = vsel %vm285, %v5240, %v5272
      %v5505 = vsel %vm285, %v5242, %v5274
      %v5507 = vsel %vm285, %v5244, %v5276
      %v5509 = vsel %vm2128, %v5477, %v5278
      %v5511 = vsel %vm2128, %v5479, %v5280
      %v5513 = vsel %vm2128, %v5481, %v5282
      %v5515 = vsel %vm2128, %v5483, %v5284
      %v5517 = vsel %vm2128, %v5485, %v5286
      %v5519 = vsel %vm2128, %v5487, %v5288
      %v5521 = vsel %vm2128, %v5489, %v5290
      %v5523 = vsel %vm2128, %v5491, %v5292
      %v5525 = vsel %vm2128, %v5493, %v5294
      %v5527 = vsel %vm2128, %v5495, %v5296
      %v5529 = vsel %vm2128, %v5497, %v5298
      %v5531 = vsel %vm2128, %v5499, %v5300
      %v5533 = vsel %vm2128, %v5501, %v5302
      %v5535 = vsel %vm2128, %v5503, %v5304
      %v5537 = vsel %vm2128, %v5505, %v5306
      %v5539 = vsel %vm2128, %v5507, %v5308
      %v5541 = vsel %vm2161, %v5509, %v5310
      %v5544 = vsel %vm2161, %v5511, %v5312
      %v5547 = vsel %vm2161, %v5513, %v5314
      %v5550 = vsel %vm2161, %v5515, %v5316
      %v5553 = vsel %vm2161, %v5517, %v5318
      %v5556 = vsel %vm2161, %v5519, %v5320
      %v5559 = vsel %vm2161, %v5521, %v5322
      %v5562 = vsel %vm2161, %v5523, %v5324
      %v5565 = vsel %vm2161, %v5525, %v5326
      %v5568 = vsel %vm2161, %v5527, %v5328
      %v5571 = vsel %vm2161, %v5529, %v5330
      %v5574 = vsel %vm2161, %v5531, %v5332
      %v5577 = vsel %vm2161, %v5533, %v5334
      %v5580 = vsel %vm2161, %v5535, %v5336
      %v5583 = vsel %vm2161, %v5537, %v5338
      %v5586 = vsel %vm2161, %v5539, %v5340
      %v5589 = vsel %vm2210, %v5310, %v5342
      %v5591 = vsel %vm2210, %v5312, %v5344
      %v5593 = vsel %vm2210, %v5314, %v5346
      %v5595 = vsel %vm2210, %v5316, %v5348
      %v5597 = vsel %vm2210, %v5318, %v5350
      %v5599 = vsel %vm2210, %v5320, %v5352
      %v5601 = vsel %vm2210, %v5322, %v5354
      %v5603 = vsel %vm2210, %v5324, %v5356
      %v5605 = vsel %vm2210, %v5326, %v5358
      %v5607 = vsel %vm2210, %v5328, %v5360
      %v5609 = vsel %vm2210, %v5330, %v5362
      %v5611 = vsel %vm2210, %v5332, %v5364
      %v5613 = vsel %vm2210, %v5334, %v5366
      %v5615 = vsel %vm2210, %v5336, %v5368
      %v5617 = vsel %vm2210, %v5338, %v5370
      %v5618 = vsel %vm2210, %v5340, %v1982
      %v5620 = vsel %vm2243, %v5589, %v5372
      %v5623 = vsel %vm2243, %v5591, %v5374
      %v5626 = vsel %vm2243, %v5593, %v5376
      %v5629 = vsel %vm2243, %v5595, %v5378
      %v5632 = vsel %vm2243, %v5597, %v5380
      %v5635 = vsel %vm2243, %v5599, %v5382
      %v5638 = vsel %vm2243, %v5601, %v5384
      %v5641 = vsel %vm2243, %v5603, %v5386
      %v5644 = vsel %vm2243, %v5605, %v5388
      %v5647 = vsel %vm2243, %v5607, %v5390
      %v5650 = vsel %vm2243, %v5609, %v5392
      %v5653 = vsel %vm2243, %v5611, %v5394
      %v5656 = vsel %vm2243, %v5613, %v5396
      %v5659 = vsel %vm2243, %v5615, %v5398
      %v5662 = vsel %vm2243, %v5617, %v5400
      %v5664 = vsel %vm2243, %v5618, %v2014
      %v5666 = vld [vmem:[%s4] sm:$0xf]
      %v5667 = vld [vmem:[%s4 + $0x4] sm:$0xf]
      %v5668 = vld [vmem:[%s4 + $0x8] sm:$0xf]
      %v5669 = vld [vmem:[%s4 + $0xc] sm:$0xf]
      %v5670 = vld [vmem:[%s4 + $0x10] sm:$0xf]
      %v5671 = vld [vmem:[%s4 + $0x14] sm:$0xf]
      %v5672 = vld [vmem:[%s4 + $0x18] sm:$0xf]
      %v5673 = vld [vmem:[%s4 + $0x1c] sm:$0xf]
      %v5674 = vld [vmem:[%s4 + $0x20] sm:$0xf]
      %v5675 = vld [vmem:[%s4 + $0x24] sm:$0xf]
      %v5676 = vld [vmem:[%s4 + $0x28] sm:$0xf]
      %v5677 = vld [vmem:[%s4 + $0x2c] sm:$0xf]
      %v5678 = vld [vmem:[%s4 + $0x30] sm:$0xf]
      %v5679 = vld [vmem:[%s4 + $0x34] sm:$0xf]
      %v5680 = vld [vmem:[%s4 + $0x38] sm:$0xf]
      %v5681 = vld [vmem:[%s4 + $0x3c] sm:$0xf]
      %v5682 = vld [vmem:[%s4 + $0x40] sm:$0xf]
      %v5683 = vld [vmem:[%s4 + $0x44] sm:$0xf]
      %v5684 = vld [vmem:[%s4 + $0x48] sm:$0xf]
      %v5685 = vld [vmem:[%s4 + $0x4c] sm:$0xf]
      %v5686 = vld [vmem:[%s4 + $0x50] sm:$0xf]
      %v5687 = vld [vmem:[%s4 + $0x54] sm:$0xf]
      %v5688 = vld [vmem:[%s4 + $0x58] sm:$0xf]
      %v5689 = vld [vmem:[%s4 + $0x5c] sm:$0xf]
      %v5690 = vld [vmem:[%s4 + $0x60] sm:$0xf]
      %v5691 = vld [vmem:[%s4 + $0x64] sm:$0xf]
      %v5692 = vld [vmem:[%s4 + $0x68] sm:$0xf]
      %v5693 = vld [vmem:[%s4 + $0x6c] sm:$0xf]
      %v5694 = vld [vmem:[%s4 + $0x70] sm:$0xf]
      %v5695 = vld [vmem:[%s4 + $0x74] sm:$0xf]
      %v5696 = vld [vmem:[%s4 + $0x78] sm:$0xf]
      %v5697 = vld [vmem:[%s4 + $0x7c] sm:$0xf]
      %v5698 = vld [vmem:[%s4 + $0x80] sm:$0xf]
      %v5699 = vld [vmem:[%s4 + $0x84] sm:$0xf]
      %v5700 = vld [vmem:[%s4 + $0x88] sm:$0xf]
      %v5701 = vld [vmem:[%s4 + $0x8c] sm:$0xf]
      %v5702 = vld [vmem:[%s4 + $0x90] sm:$0xf]
      %v5703 = vld [vmem:[%s4 + $0x94] sm:$0xf]
      %v5704 = vld [vmem:[%s4 + $0x98] sm:$0xf]
      %v5705 = vld [vmem:[%s4 + $0x9c] sm:$0xf]
      %v5706 = vld [vmem:[%s4 + $0xa0] sm:$0xf]
      %v5707 = vld [vmem:[%s4 + $0xa4] sm:$0xf]
      %v5708 = vld [vmem:[%s4 + $0xa8] sm:$0xf]
      %v5709 = vld [vmem:[%s4 + $0xac] sm:$0xf]
      %v5710 = vld [vmem:[%s4 + $0xb0] sm:$0xf]
      %v5711 = vld [vmem:[%s4 + $0xb4] sm:$0xf]
      %v5712 = vld [vmem:[%s4 + $0xb8] sm:$0xf]
      %v5713 = vld [vmem:[%s4 + $0xbc] sm:$0xf]
      %v5714 = vld [vmem:[%s4 + $0xc0] sm:$0xf]
      %v5715 = vld [vmem:[%s4 + $0xc4] sm:$0xf]
      %v5716 = vld [vmem:[%s4 + $0xc8] sm:$0xf]
      %v5717 = vld [vmem:[%s4 + $0xcc] sm:$0xf]
      %v5718 = vld [vmem:[%s4 + $0xd0] sm:$0xf]
      %v5719 = vld [vmem:[%s4 + $0xd4] sm:$0xf]
      %v5774 = vunpack.c.l.b16 %v5666
      %v5775 = vunpack.c.l.b16 %v5667
      %v5776 = vunpack.c.l.b16 %v5668
      %v5777 = vunpack.c.l.b16 %v5669
      %v5778 = vunpack.c.l.b16 %v5670
      %v5779 = vunpack.c.l.b16 %v5671
      %v5780 = vunpack.c.l.b16 %v5672
      %v5781 = vunpack.c.l.b16 %v5673
      %v5782 = vunpack.c.l.b16 %v5674
      %v5783 = vunpack.c.l.b16 %v5675
      %v5784 = vunpack.c.l.b16 %v5676
      %v5785 = vunpack.c.l.b16 %v5677
      %v5786 = vunpack.c.l.b16 %v5678
      %v5787 = vunpack.c.l.b16 %v5679
      %v5788 = vunpack.c.l.b16 %v5680
      %v5789 = vunpack.c.l.b16 %v5681
      %v5790 = vunpack.c.l.b16 %v5682
      %v5791 = vunpack.c.l.b16 %v5683
      %v5792 = vunpack.c.l.b16 %v5684
      %v5793 = vunpack.c.l.b16 %v5685
      %v5794 = vunpack.c.l.b16 %v5686
      %v5795 = vunpack.c.l.b16 %v5687
      %v5796 = vunpack.c.l.b16 %v5688
      %v5797 = vunpack.c.l.b16 %v5689
      %v5798 = vunpack.c.l.b16 %v5690
      %v5799 = vunpack.c.l.b16 %v5691
      %v5800 = vunpack.c.l.b16 %v5692
      %v5801 = vunpack.c.l.b16 %v5693
      %v5802 = vunpack.c.l.b16 %v5694
      %v5803 = vunpack.c.l.b16 %v5695
      %v5804 = vunpack.c.l.b16 %v5696
      %v5805 = vunpack.c.l.b16 %v5697
      %v5806 = vunpack.c.l.b16 %v5698
      %v5807 = vunpack.c.l.b16 %v5699
      %v5808 = vunpack.c.l.b16 %v5700
      %v5809 = vunpack.c.l.b16 %v5701
      %v5810 = vunpack.c.l.b16 %v5702
      %v5811 = vunpack.c.l.b16 %v5703
      %v5812 = vunpack.c.l.b16 %v5704
      %v5813 = vunpack.c.l.b16 %v5705
      %v5814 = vunpack.c.l.b16 %v5706
      %v5815 = vunpack.c.l.b16 %v5707
      %v5816 = vunpack.c.l.b16 %v5708
      %v5817 = vunpack.c.l.b16 %v5709
      %v5818 = vunpack.c.l.b16 %v5710
      %v5819 = vunpack.c.l.b16 %v5711
      %v5820 = vunpack.c.l.b16 %v5712
      %v5821 = vunpack.c.l.b16 %v5713
      %v5822 = vunpack.c.l.b16 %v5714
      %v5823 = vunpack.c.l.b16 %v5715
      %v5824 = vunpack.c.l.b16 %v5716
      %v5825 = vunpack.c.l.b16 %v5717
      %v5826 = vunpack.c.l.b16 %v5718
      %v5827 = vunpack.c.l.b16 %v5719
      %v5828 = vpack.c.b16 %v5775, %v5774
      %v5829 = vpack.c.b16 %v5777, %v5776
      %v5830 = vpack.c.b16 %v5779, %v5778
      %v5831 = vpack.c.b16 %v5781, %v5780
      %v5832 = vpack.c.b16 %v5783, %v5782
      %v5833 = vpack.c.b16 %v5785, %v5784
      %v5834 = vpack.c.b16 %v5787, %v5786
      %v5835 = vpack.c.b16 %v5789, %v5788
      %v5836 = vpack.c.b16 %v5791, %v5790
      %v5837 = vpack.c.b16 %v5793, %v5792
      %v5838 = vpack.c.b16 %v5795, %v5794
      %v5839 = vpack.c.b16 %v5797, %v5796
      %v5840 = vpack.c.b16 %v5799, %v5798
      %v5841 = vpack.c.b16 %v5801, %v5800
      %v5842 = vpack.c.b16 %v5803, %v5802
      %v5843 = vpack.c.b16 %v5805, %v5804
      %v5844 = vpack.c.b16 %v5807, %v5806
      %v5845 = vpack.c.b16 %v5809, %v5808
      %v5846 = vpack.c.b16 %v5811, %v5810
      %v5847 = vpack.c.b16 %v5813, %v5812
      %v5848 = vpack.c.b16 %v5815, %v5814
      %v5849 = vpack.c.b16 %v5817, %v5816
      %v5850 = vpack.c.b16 %v5819, %v5818
      %v5851 = vpack.c.b16 %v5821, %v5820
      %v5852 = vpack.c.b16 %v5823, %v5822
      %v5853 = vpack.c.b16 %v5825, %v5824
      %v5854 = vpack.c.b16 %v5827, %v5826
      %v5883 = vsel %vm1023, %v5128, 0
      %v5886 = vsel %vm1023, %v5131, 0
      %v5889 = vsel %vm1023, %v5134, 0
      %v5892 = vsel %vm1023, %v5137, 0
      %v5895 = vsel %vm1023, %v5140, 0
      %v5898 = vsel %vm1023, %v5143, 0
      %v5901 = vsel %vm1023, %v5146, 0
      %v5904 = vsel %vm1023, %v5149, 0
      %v5907 = vsel %vm1023, %v5152, 0
      %v5910 = vsel %vm1023, %v5155, 0
      %v5913 = vsel %vm1023, %v5158, 0
      %v5916 = vsel %vm1023, %v5161, 0
      %v5919 = vsel %vm1023, %v5164, 0
      %v5922 = vsel %vm1023, %v5167, 0
      %v5925 = vsel %vm1023, %v5184, 0
      %5927 = vmatprep.subr.bf16.mxu0 0
      %5928 = vmatpush1.bf16.msra.mxu0 %v5828
      %5929 = vmatprep.subr.bf16.mxu0 0
      %5930 = vmatpush1.bf16.msra.mxu0 %v5829
      %5931 = vmatprep.subr.bf16.mxu0 0
      %5932 = vmatpush1.bf16.msra.mxu0 %v5830
      %5933 = vmatprep.subr.bf16.mxu0 0
      %5934 = vmatpush1.bf16.msra.mxu0 %v5831
      %5935 = vmatprep.subr.bf16.mxu0 0
      %5936 = vmatpush1.bf16.msra.mxu0 %v5832
      %5937 = vmatprep.subr.bf16.mxu0 0
      %5938 = vmatpush1.bf16.msra.mxu0 %v5833
      %5939 = vmatprep.subr.bf16.mxu0 0
      %5940 = vmatpush1.bf16.msra.mxu0 %v5834
      %5941 = vmatprep.subr.bf16.mxu0 0
      %5942 = vmatpush1.bf16.msra.mxu0 %v5835
      %5943 = vmatprep.subr.bf16.mxu0 0
      %5944 = vmatpush1.bf16.msra.mxu0 %v5836
      %5945 = vmatprep.subr.bf16.mxu0 0
      %5946 = vmatpush1.bf16.msra.mxu0 %v5837
      %5947 = vmatprep.subr.bf16.mxu0 0
      %5948 = vmatpush1.bf16.msra.mxu0 %v5838
      %5949 = vmatprep.subr.bf16.mxu0 0
      %5950 = vmatpush1.bf16.msra.mxu0 %v5839
      %5951 = vmatprep.subr.bf16.mxu0 0
      %5952 = vmatpush1.bf16.msra.mxu0 %v5840
      %5953 = vmatprep.subr.bf16.mxu0 0
      %5954 = vmatpush1.bf16.msra.mxu0 %v5841
      %5955 = vmatprep.subr.bf16.mxu0 0
      %5956 = vmatpush1.bf16.msra.mxu0 %v5842
      %5957 = vmatprep.subr.bf16.mxu0 0
      %5958 = vmatpush1.bf16.msra.mxu0 %v5843
      %5959 = vmatprep.mubr.bf16.mxu0 %v5541
      %5960 = vmatmul.mubr.bf16.gmra.mrb[0].mxu0 %v2049
      %v5961 = vpop.f32.mrb[0].mxu0
      %v5962 = vadd.f32 0.0, %v5961
      %v5963 = vpop.f32.mrb[0].mxu0
      %v5964 = vpop.f32.mrb[0].mxu0
      %v5965 = vadd.f32 0.0, %v5964
      %v5966 = vpop.f32.mrb[0].mxu0
      %5967 = vmatprep.mubr.bf16.mxu0 %v5544
      %5968 = vmatmul.mubr.bf16.gmra.mrb[0].mxu0 %v5432
      %v5969 = vpop.f32.mrb[0].mxu0
      %v5970 = vadd.f32 0.0, %v5969
      %v5971 = vpop.f32.mrb[0].mxu0
      %v5972 = vpop.f32.mrb[0].mxu0
      %v5973 = vadd.f32 0.0, %v5972
      %v5974 = vpop.f32.mrb[0].mxu0
      %5975 = vmatprep.mubr.bf16.mxu0 %v5547
      %5976 = vmatmul.mubr.bf16.gmra.mrb[0].mxu0 %v5435
      %v5977 = vpop.f32.mrb[0].mxu0
      %v5978 = vadd.f32 0.0, %v5977
      %v5979 = vpop.f32.mrb[0].mxu0
      %v5980 = vpop.f32.mrb[0].mxu0
      %v5981 = vadd.f32 0.0, %v5980
      %v5982 = vpop.f32.mrb[0].mxu0
      %5983 = vmatprep.mubr.bf16.mxu0 %v5550
      %5984 = vmatmul.mubr.bf16.gmra.mrb[0].mxu0 %v5438
      %v5985 = vpop.f32.mrb[0].mxu0
      %v5986 = vadd.f32 0.0, %v5985
      %v5987 = vpop.f32.mrb[0].mxu0
      %v5988 = vpop.f32.mrb[0].mxu0
      %v5989 = vadd.f32 0.0, %v5988
      %v5990 = vpop.f32.mrb[0].mxu0
      %5991 = vmatprep.mubr.bf16.mxu0 %v5553
      %5992 = vmatmul.mubr.bf16.gmra.mrb[0].mxu0 %v5441
      %v5993 = vpop.f32.mrb[0].mxu0
      %v5994 = vadd.f32 0.0, %v5993
      %v5995 = vpop.f32.mrb[0].mxu0
      %v5996 = vpop.f32.mrb[0].mxu0
      %v5997 = vadd.f32 0.0, %v5996
      %v5998 = vpop.f32.mrb[0].mxu0
      %5999 = vmatprep.mubr.bf16.mxu0 %v5556
      %6000 = vmatmul.mubr.bf16.gmra.mrb[0].mxu0 %v5444
      %v6001 = vpop.f32.mrb[0].mxu0
      %v6002 = vadd.f32 0.0, %v6001
      %v6003 = vpop.f32.mrb[0].mxu0
      %v6004 = vpop.f32.mrb[0].mxu0
      %v6005 = vadd.f32 0.0, %v6004
      %v6006 = vpop.f32.mrb[0].mxu0
      %6007 = vmatprep.mubr.bf16.mxu0 %v5559
      %6008 = vmatmul.mubr.bf16.gmra.mrb[0].mxu0 %v5447
      %v6009 = vpop.f32.mrb[0].mxu0
      %v6010 = vadd.f32 0.0, %v6009
      %v6011 = vpop.f32.mrb[0].mxu0
      %v6012 = vpop.f32.mrb[0].mxu0
      %v6013 = vadd.f32 0.0, %v6012
      %v6014 = vpop.f32.mrb[0].mxu0
      %6015 = vmatprep.mubr.bf16.mxu0 %v5562
      %6016 = vmatmul.mubr.bf16.gmra.mrb[0].mxu0 %v5450
      %v6017 = vpop.f32.mrb[0].mxu0
      %v6018 = vadd.f32 0.0, %v6017
      %v6019 = vpop.f32.mrb[0].mxu0
      %v6020 = vpop.f32.mrb[0].mxu0
      %v6021 = vadd.f32 0.0, %v6020
      %v6022 = vpop.f32.mrb[0].mxu0
      %6023 = vmatprep.mubr.bf16.mxu0 %v5565
      %6024 = vmatmul.mubr.bf16.gmra.mrb[0].mxu0 %v5453
      %v6025 = vpop.f32.mrb[0].mxu0
      %v6026 = vadd.f32 0.0, %v6025
      %v6027 = vpop.f32.mrb[0].mxu0
      %v6028 = vpop.f32.mrb[0].mxu0
      %v6029 = vadd.f32 0.0, %v6028
      %v6030 = vpop.f32.mrb[0].mxu0
      %6031 = vmatprep.mubr.bf16.mxu0 %v5568
      %6032 = vmatmul.mubr.bf16.gmra.mrb[0].mxu0 %v5456
      %v6033 = vpop.f32.mrb[0].mxu0
      %v6034 = vadd.f32 0.0, %v6033
      %v6035 = vpop.f32.mrb[0].mxu0
      %v6036 = vpop.f32.mrb[0].mxu0
      %v6037 = vadd.f32 0.0, %v6036
      %v6038 = vpop.f32.mrb[0].mxu0
      %6039 = vmatprep.mubr.bf16.mxu0 %v5571
      %6040 = vmatmul.mubr.bf16.gmra.mrb[0].mxu0 %v5459
      %v6041 = vpop.f32.mrb[0].mxu0
      %v6042 = vadd.f32 0.0, %v6041
      %v6043 = vpop.f32.mrb[0].mxu0
      %v6044 = vpop.f32.mrb[0].mxu0
      %v6045 = vadd.f32 0.0, %v6044
      %v6046 = vpop.f32.mrb[0].mxu0
      %6047 = vmatprep.mubr.bf16.mxu0 %v5574
      %6048 = vmatmul.mubr.bf16.gmra.mrb[0].mxu0 %v5462
      %v6049 = vpop.f32.mrb[0].mxu0
      %v6050 = vadd.f32 0.0, %v6049
      %v6051 = vpop.f32.mrb[0].mxu0
      %v6052 = vpop.f32.mrb[0].mxu0
      %v6053 = vadd.f32 0.0, %v6052
      %v6054 = vpop.f32.mrb[0].mxu0
      %6055 = vmatprep.mubr.bf16.mxu0 %v5577
      %6056 = vmatmul.mubr.bf16.gmra.mrb[0].mxu0 %v5465
      %v6057 = vpop.f32.mrb[0].mxu0
      %v6058 = vadd.f32 0.0, %v6057
      %v6059 = vpop.f32.mrb[0].mxu0
      %v6060 = vpop.f32.mrb[0].mxu0
      %v6061 = vadd.f32 0.0, %v6060
      %v6062 = vpop.f32.mrb[0].mxu0
      %6063 = vmatprep.mubr.bf16.mxu0 %v5580
      %6064 = vmatmul.mubr.bf16.gmra.mrb[0].mxu0 %v5468
      %v6065 = vpop.f32.mrb[0].mxu0
      %v6066 = vadd.f32 0.0, %v6065
      %v6067 = vpop.f32.mrb[0].mxu0
      %v6068 = vpop.f32.mrb[0].mxu0
      %v6069 = vadd.f32 0.0, %v6068
      %v6070 = vpop.f32.mrb[0].mxu0
      %6071 = vmatprep.mubr.bf16.mxu0 %v5583
      %6072 = vmatmul.mubr.bf16.gmra.mrb[0].mxu0 %v5471
      %v6073 = vpop.f32.mrb[0].mxu0
      %v6074 = vadd.f32 0.0, %v6073
      %v6075 = vpop.f32.mrb[0].mxu0
      %v6076 = vpop.f32.mrb[0].mxu0
      %v6077 = vadd.f32 0.0, %v6076
      %v6078 = vpop.f32.mrb[0].mxu0
      %6079 = vmatprep.mubr.bf16.mxu0 %v5586
      %6080 = vmatmul.mubr.bf16.gmra.mrb[0].mxu0 %v5474
      %v6081 = vpop.f32.mrb[0].mxu0
      %v6082 = vadd.f32 0.0, %v6081
      %v6083 = vpop.f32.mrb[0].mxu0
      %v6084 = vpop.f32.mrb[0].mxu0
      %v6085 = vadd.f32 0.0, %v6084
      %v6086 = vpop.f32.mrb[0].mxu0
      %6087 = vdwg.mxu0
      %6088 = vmatprep.subr.bf16.mxu0 0
      %6089 = vmatpush1.bf16.msra.mxu0 %v5844
      %6090 = vmatprep.subr.bf16.mxu0 0
      %6091 = vmatpush1.bf16.msra.mxu0 %v5845
      %6092 = vmatprep.subr.bf16.mxu0 0
      %6093 = vmatpush1.bf16.msra.mxu0 %v5846
      %6094 = vmatprep.subr.bf16.mxu0 0
      %6095 = vmatpush1.bf16.msra.mxu0 %v5847
      %6096 = vmatprep.subr.bf16.mxu0 0
      %6097 = vmatpush1.bf16.msra.mxu0 %v5848
      %6098 = vmatprep.subr.bf16.mxu0 0
      %6099 = vmatpush1.bf16.msra.mxu0 %v5849
      %6100 = vmatprep.subr.bf16.mxu0 0
      %6101 = vmatpush1.bf16.msra.mxu0 %v5850
      %6102 = vmatprep.subr.bf16.mxu0 0
      %6103 = vmatpush1.bf16.msra.mxu0 %v5851
      %6104 = vmatprep.subr.bf16.mxu0 0
      %6105 = vmatpush1.bf16.msra.mxu0 %v5852
      %6106 = vmatprep.subr.bf16.mxu0 0
      %6107 = vmatpush1.bf16.msra.mxu0 %v5853
      %6108 = vmatprep.subr.bf16.mxu0 0
      %6109 = vmatpush1.bf16.msra.mxu0 %v5854
      %6110 = vmatprep.subr.bf16.mxu0 0
      %6111 = vmatpush1.bf16.msra.mxu0 0
      %6112 = vmatprep.subr.bf16.mxu0 0
      %6113 = vmatpush1.bf16.msra.mxu0 0
      %6114 = vmatprep.subr.bf16.mxu0 0
      %6115 = vmatpush1.bf16.msra.mxu0 0
      %6116 = vmatprep.subr.bf16.mxu0 0
      %6117 = vmatpush1.bf16.msra.mxu0 0
      %6118 = vmatprep.subr.bf16.mxu0 0
      %6119 = vmatpush1.bf16.msra.mxu0 0
      %6120 = vmatprep.mubr.bf16.mxu0 %v5883
      %6121 = vmatmul.mubr.bf16.gmra.mrb[0].mxu0 %v5620
      %v6122 = vpop.f32.mrb[0].mxu0
      %v6123 = vadd.f32 %v5962, %v6122
      %v6124 = vpop.f32.mrb[0].mxu0
      %v6125 = vpop.f32.mrb[0].mxu0
      %v6126 = vadd.f32 %v5965, %v6125
      %v6127 = vpop.f32.mrb[0].mxu0
      %6128 = vmatprep.mubr.bf16.mxu0 %v5886
      %6129 = vmatmul.mubr.bf16.gmra.mrb[0].mxu0 %v5623
      %v6130 = vpop.f32.mrb[0].mxu0
      %v6131 = vadd.f32 %v5970, %v6130
      %v6132 = vpop.f32.mrb[0].mxu0
      %v6133 = vpop.f32.mrb[0].mxu0
      %v6134 = vadd.f32 %v5973, %v6133
      %v6135 = vpop.f32.mrb[0].mxu0
      %6136 = vmatprep.mubr.bf16.mxu0 %v5889
      %6137 = vmatmul.mubr.bf16.gmra.mrb[0].mxu0 %v5626
      %v6138 = vpop.f32.mrb[0].mxu0
      %v6139 = vadd.f32 %v5978, %v6138
      %v6140 = vpop.f32.mrb[0].mxu0
      %v6141 = vpop.f32.mrb[0].mxu0
      %v6142 = vadd.f32 %v5981, %v6141
      %v6143 = vpop.f32.mrb[0].mxu0
      %6144 = vmatprep.mubr.bf16.mxu0 %v5892
      %6145 = vmatmul.mubr.bf16.gmra.mrb[0].mxu0 %v5629
      %v6146 = vpop.f32.mrb[0].mxu0
      %v6147 = vadd.f32 %v5986, %v6146
      %v6148 = vpop.f32.mrb[0].mxu0
      %v6149 = vpop.f32.mrb[0].mxu0
      %v6150 = vadd.f32 %v5989, %v6149
      %v6151 = vpop.f32.mrb[0].mxu0
      %6152 = vmatprep.mubr.bf16.mxu0 %v5895
      %6153 = vmatmul.mubr.bf16.gmra.mrb[0].mxu0 %v5632
      %v6154 = vpop.f32.mrb[0].mxu0
      %v6155 = vadd.f32 %v5994, %v6154
      %v6156 = vpop.f32.mrb[0].mxu0
      %v6157 = vpop.f32.mrb[0].mxu0
      %v6158 = vadd.f32 %v5997, %v6157
      %v6159 = vpop.f32.mrb[0].mxu0
      %6160 = vmatprep.mubr.bf16.mxu0 %v5898
      %6161 = vmatmul.mubr.bf16.gmra.mrb[0].mxu0 %v5635
      %v6162 = vpop.f32.mrb[0].mxu0
      %v6163 = vadd.f32 %v6002, %v6162
      %v6164 = vpop.f32.mrb[0].mxu0
      %v6165 = vpop.f32.mrb[0].mxu0
      %v6166 = vadd.f32 %v6005, %v6165
      %v6167 = vpop.f32.mrb[0].mxu0
      %6168 = vmatprep.mubr.bf16.mxu0 %v5901
      %6169 = vmatmul.mubr.bf16.gmra.mrb[0].mxu0 %v5638
      %v6170 = vpop.f32.mrb[0].mxu0
      %v6171 = vadd.f32 %v6010, %v6170
      %v6172 = vpop.f32.mrb[0].mxu0
      %v6173 = vpop.f32.mrb[0].mxu0
      %v6174 = vadd.f32 %v6013, %v6173
      %v6175 = vpop.f32.mrb[0].mxu0
      %6176 = vmatprep.mubr.bf16.mxu0 %v5904
      %6177 = vmatmul.mubr.bf16.gmra.mrb[0].mxu0 %v5641
      %v6178 = vpop.f32.mrb[0].mxu0
      %v6179 = vadd.f32 %v6018, %v6178
      %v6180 = vpop.f32.mrb[0].mxu0
      %v6181 = vpop.f32.mrb[0].mxu0
      %v6182 = vadd.f32 %v6021, %v6181
      %v6183 = vpop.f32.mrb[0].mxu0
      %6184 = vmatprep.mubr.bf16.mxu0 %v5907
      %6185 = vmatmul.mubr.bf16.gmra.mrb[0].mxu0 %v5644
      %v6186 = vpop.f32.mrb[0].mxu0
      %v6187 = vadd.f32 %v6026, %v6186
      %v6188 = vpop.f32.mrb[0].mxu0
      %v6189 = vpop.f32.mrb[0].mxu0
      %v6190 = vadd.f32 %v6029, %v6189
      %v6191 = vpop.f32.mrb[0].mxu0
      %6192 = vmatprep.mubr.bf16.mxu0 %v5910
      %6193 = vmatmul.mubr.bf16.gmra.mrb[0].mxu0 %v5647
      %v6194 = vpop.f32.mrb[0].mxu0
      %v6195 = vadd.f32 %v6034, %v6194
      %v6196 = vpop.f32.mrb[0].mxu0
      %v6197 = vpop.f32.mrb[0].mxu0
      %v6198 = vadd.f32 %v6037, %v6197
      %v6199 = vpop.f32.mrb[0].mxu0
      %6200 = vmatprep.mubr.bf16.mxu0 %v5913
      %6201 = vmatmul.mubr.bf16.gmra.mrb[0].mxu0 %v5650
      %v6202 = vpop.f32.mrb[0].mxu0
      %v6203 = vadd.f32 %v6042, %v6202
      %v6204 = vpop.f32.mrb[0].mxu0
      %v6205 = vpop.f32.mrb[0].mxu0
      %v6206 = vadd.f32 %v6045, %v6205
      %v6207 = vpop.f32.mrb[0].mxu0
      %6208 = vmatprep.mubr.bf16.mxu0 %v5916
      %6209 = vmatmul.mubr.bf16.gmra.mrb[0].mxu0 %v5653
      %v6210 = vpop.f32.mrb[0].mxu0
      %v6211 = vadd.f32 %v6050, %v6210
      %v6212 = vpop.f32.mrb[0].mxu0
      %v6213 = vpop.f32.mrb[0].mxu0
      %v6214 = vadd.f32 %v6053, %v6213
      %v6215 = vpop.f32.mrb[0].mxu0
      %6216 = vmatprep.mubr.bf16.mxu0 %v5919
      %6217 = vmatmul.mubr.bf16.gmra.mrb[0].mxu0 %v5656
      %v6218 = vpop.f32.mrb[0].mxu0
      %v6219 = vadd.f32 %v6058, %v6218
      %v6220 = vpop.f32.mrb[0].mxu0
      %v6221 = vpop.f32.mrb[0].mxu0
      %v6222 = vadd.f32 %v6061, %v6221
      %v6223 = vpop.f32.mrb[0].mxu0
      %6224 = vmatprep.mubr.bf16.mxu0 %v5922
      %6225 = vmatmul.mubr.bf16.gmra.mrb[0].mxu0 %v5659
      %v6226 = vpop.f32.mrb[0].mxu0
      %v6227 = vadd.f32 %v6066, %v6226
      %v6228 = vpop.f32.mrb[0].mxu0
      %v6229 = vpop.f32.mrb[0].mxu0
      %v6230 = vadd.f32 %v6069, %v6229
      %v6231 = vpop.f32.mrb[0].mxu0
      %6232 = vmatprep.mubr.bf16.mxu0 %v5925
      %6233 = vmatmul.mubr.bf16.gmra.mrb[0].mxu0 %v5662
      %v6234 = vpop.f32.mrb[0].mxu0
      %v6235 = vadd.f32 %v6074, %v6234
      %v6236 = vpop.f32.mrb[0].mxu0
      %v6237 = vpop.f32.mrb[0].mxu0
      %v6238 = vadd.f32 %v6077, %v6237
      %v6239 = vpop.f32.mrb[0].mxu0
      %6240 = vmatprep.mubr.bf16.mxu0 %v2554
      %6241 = vmatmul.mubr.bf16.gmra.mrb[0].mxu0 %v5664
      %v6242 = vpop.f32.mrb[0].mxu0
      %v6243 = vadd.f32 %v6082, %v6242
      %v6244 = vpop.f32.mrb[0].mxu0
      %v6245 = vpop.f32.mrb[0].mxu0
      %v6246 = vadd.f32 %v6085, %v6245
      %v6247 = vpop.f32.mrb[0].mxu0
      %6248 = vdwg.mxu0
      %v6249 = vadd.f32 %v897, %v6123
      %v6250 = vadd.f32 %v900, %v6126
      %v6251 = vadd.f32 %v905, %v6131
      %v6252 = vadd.f32 %v908, %v6134
      %v6253 = vadd.f32 %v913, %v6139
      %v6254 = vadd.f32 %v916, %v6142
      %v6255 = vadd.f32 %v921, %v6147
      %v6256 = vadd.f32 %v924, %v6150
      %v6257 = vadd.f32 %v929, %v6155
      %v6258 = vadd.f32 %v932, %v6158
      %v6259 = vadd.f32 %v937, %v6163
      %v6260 = vadd.f32 %v940, %v6166
      %v6261 = vadd.f32 %v945, %v6171
      %v6262 = vadd.f32 %v948, %v6174
      %v6263 = vadd.f32 %v953, %v6179
      %v6264 = vadd.f32 %v956, %v6182
      %v6265 = vadd.f32 %v961, %v6187
      %v6266 = vadd.f32 %v964, %v6190
      %v6267 = vadd.f32 %v969, %v6195
      %v6268 = vadd.f32 %v972, %v6198
      %v6269 = vadd.f32 %v977, %v6203
      %v6270 = vadd.f32 %v980, %v6206
      %v6271 = vadd.f32 %v985, %v6211
      %v6272 = vadd.f32 %v988, %v6214
      %v6273 = vadd.f32 %v993, %v6219
      %v6274 = vadd.f32 %v996, %v6222
      %v6275 = vadd.f32 %v1001, %v6227
      %v6276 = vadd.f32 %v1004, %v6230
      %v6277 = vadd.f32 %v1009, %v6235
      %v6278 = vadd.f32 %v1012, %v6238
      %v6279 = vadd.f32 %v1017, %v6243
      %v6280 = vadd.f32 %v1020, %v6246
      %6313 = vrot.lane.b32.xlu0 %v6249, 16
      %v6314 = vpop.permute.xlu0 %6313
      %6315 = vrot.lane.b32.xlu0 %v6250, 16
      %v6316 = vpop.permute.xlu0 %6315
      %6317 = vrot.lane.b32.xlu0 %v6251, 16
      %v6318 = vpop.permute.xlu0 %6317
      %6319 = vrot.lane.b32.xlu0 %v6252, 16
      %v6320 = vpop.permute.xlu0 %6319
      %6321 = vrot.lane.b32.xlu0 %v6253, 16
      %v6322 = vpop.permute.xlu0 %6321
      %6323 = vrot.lane.b32.xlu0 %v6254, 16
      %v6324 = vpop.permute.xlu0 %6323
      %6325 = vrot.lane.b32.xlu0 %v6255, 16
      %v6326 = vpop.permute.xlu0 %6325
      %6327 = vrot.lane.b32.xlu0 %v6256, 16
      %v6328 = vpop.permute.xlu0 %6327
      %6329 = vrot.lane.b32.xlu0 %v6257, 16
      %v6330 = vpop.permute.xlu0 %6329
      %6331 = vrot.lane.b32.xlu0 %v6258, 16
      %v6332 = vpop.permute.xlu0 %6331
      %6333 = vrot.lane.b32.xlu0 %v6259, 16
      %v6334 = vpop.permute.xlu0 %6333
      %6335 = vrot.lane.b32.xlu0 %v6260, 16
      %v6336 = vpop.permute.xlu0 %6335
      %6337 = vrot.lane.b32.xlu0 %v6261, 16
      %v6338 = vpop.permute.xlu0 %6337
      %6339 = vrot.lane.b32.xlu0 %v6262, 16
      %v6340 = vpop.permute.xlu0 %6339
      %6341 = vrot.lane.b32.xlu0 %v6263, 16
      %v6342 = vpop.permute.xlu0 %6341
      %6343 = vrot.lane.b32.xlu0 %v6264, 16
      %v6344 = vpop.permute.xlu0 %6343
      %6345 = vrot.lane.b32.xlu0 %v6265, 16
      %v6346 = vpop.permute.xlu0 %6345
      %6347 = vrot.lane.b32.xlu0 %v6266, 16
      %v6348 = vpop.permute.xlu0 %6347
      %6349 = vrot.lane.b32.xlu0 %v6267, 16
      %v6350 = vpop.permute.xlu0 %6349
      %6351 = vrot.lane.b32.xlu0 %v6268, 16
      %v6352 = vpop.permute.xlu0 %6351
      %6353 = vrot.lane.b32.xlu0 %v6269, 16
      %v6354 = vpop.permute.xlu0 %6353
      %6355 = vrot.lane.b32.xlu0 %v6270, 16
      %v6356 = vpop.permute.xlu0 %6355
      %6357 = vrot.lane.b32.xlu0 %v6271, 16
      %v6358 = vpop.permute.xlu0 %6357
      %6359 = vrot.lane.b32.xlu0 %v6272, 16
      %v6360 = vpop.permute.xlu0 %6359
      %6361 = vrot.lane.b32.xlu0 %v6273, 16
      %v6362 = vpop.permute.xlu0 %6361
      %6363 = vrot.lane.b32.xlu0 %v6274, 16
      %v6364 = vpop.permute.xlu0 %6363
      %6365 = vrot.lane.b32.xlu0 %v6275, 16
      %v6366 = vpop.permute.xlu0 %6365
      %6367 = vrot.lane.b32.xlu0 %v6276, 16
      %v6368 = vpop.permute.xlu0 %6367
      %6369 = vrot.lane.b32.xlu0 %v6277, 16
      %v6370 = vpop.permute.xlu0 %6369
      %6371 = vrot.lane.b32.xlu0 %v6278, 16
      %v6372 = vpop.permute.xlu0 %6371
      %6373 = vrot.lane.b32.xlu0 %v6279, 16
      %v6374 = vpop.permute.xlu0 %6373
      %6375 = vrot.lane.b32.xlu0 %v6280, 16
      %v6376 = vpop.permute.xlu0 %6375
      %v6409 = vsel %vm285, %v253, %v6314
      %v6410 = vsel %vm285, %v254, %v6316
      %v6411 = vsel %vm285, %v255, %v6318
      %v6412 = vsel %vm285, %v256, %v6320
      %v6413 = vsel %vm285, %v257, %v6322
      %v6414 = vsel %vm285, %v258, %v6324
      %v6415 = vsel %vm285, %v259, %v6326
      %v6416 = vsel %vm285, %v260, %v6328
      %v6417 = vsel %vm285, %v261, %v6330
      %v6418 = vsel %vm285, %v262, %v6332
      %v6419 = vsel %vm285, %v263, %v6334
      %v6420 = vsel %vm285, %v264, %v6336
      %v6421 = vsel %vm285, %v265, %v6338
      %v6422 = vsel %vm285, %v266, %v6340
      %v6423 = vsel %vm285, %v267, %v6342
      %v6424 = vsel %vm285, %v268, %v6344
      %v6425 = vsel %vm285, %v269, %v6346
      %v6426 = vsel %vm285, %v270, %v6348
      %v6427 = vsel %vm285, %v271, %v6350
      %v6428 = vsel %vm285, %v272, %v6352
      %v6429 = vsel %vm285, %v273, %v6354
      %v6430 = vsel %vm285, %v274, %v6356
      %v6431 = vsel %vm285, %v275, %v6358
      %v6432 = vsel %vm285, %v276, %v6360
      %v6433 = vsel %vm285, %v277, %v6362
      %v6434 = vsel %vm285, %v278, %v6364
      %v6435 = vsel %vm285, %v279, %v6366
      %v6436 = vsel %vm285, %v280, %v6368
      %v6437 = vsel %vm285, %v281, %v6370
      %v6438 = vsel %vm285, %v282, %v6372
      %v6439 = vsel %vm285, %v283, %v6374
      %v6440 = vsel %vm285, %v284, %v6376
      %v6441 = vcombine.low %v6409, %v6413
      %v6442 = vcombine.high %v6409, %v6413
      %v6444 = vunpack.c.l.s4 1983009808
      %v6445 = vunpack.c.0.s8 %v6444
      %v6446 = vlaneseq
      %v6447 = vshrl.u32 %v6446, 7
      %v6448 = vsub.s32 %v6445, %v6447
      %v6449 = vrot.slane %v6441, %v6448
      %v6451 = vunpack.c.l.s4 1983009808
      %v6452 = vunpack.c.0.s8 %v6451
      %v6453 = vlaneseq
      %v6454 = vshrl.u32 %v6453, 7
      %v6455 = vsub.s32 %v6452, %v6454
      %v6456 = vrot.slane %v6442, %v6455
      %v6457 = vcombine.low %v6411, %v6415
      %v6458 = vcombine.high %v6411, %v6415
      %v6460 = vunpack.c.l.s4 1983009808
      %v6461 = vunpack.c.0.s8 %v6460
      %v6462 = vlaneseq
      %v6463 = vshrl.u32 %v6462, 7
      %v6464 = vsub.s32 %v6461, %v6463
      %v6465 = vrot.slane %v6457, %v6464
      %v6467 = vunpack.c.l.s4 1983009808
      %v6468 = vunpack.c.0.s8 %v6467
      %v6469 = vlaneseq
      %v6470 = vshrl.u32 %v6469, 7
      %v6471 = vsub.s32 %v6468, %v6470
      %v6472 = vrot.slane %v6458, %v6471
      %v6473 = vcombine.low %v6417, %v6421
      %v6474 = vcombine.high %v6417, %v6421
      %v6476 = vunpack.c.l.s4 1983009808
      %v6477 = vunpack.c.0.s8 %v6476
      %v6478 = vlaneseq
      %v6479 = vshrl.u32 %v6478, 7
      %v6480 = vsub.s32 %v6477, %v6479
      %v6481 = vrot.slane %v6473, %v6480
      %v6483 = vunpack.c.l.s4 1983009808
      %v6484 = vunpack.c.0.s8 %v6483
      %v6485 = vlaneseq
      %v6486 = vshrl.u32 %v6485, 7
      %v6487 = vsub.s32 %v6484, %v6486
      %v6488 = vrot.slane %v6474, %v6487
      %v6489 = vcombine.low %v6419, %v6423
      %v6490 = vcombine.high %v6419, %v6423
      %v6492 = vunpack.c.l.s4 1983009808
      %v6493 = vunpack.c.0.s8 %v6492
      %v6494 = vlaneseq
      %v6495 = vshrl.u32 %v6494, 7
      %v6496 = vsub.s32 %v6493, %v6495
      %v6497 = vrot.slane %v6489, %v6496
      %v6499 = vunpack.c.l.s4 1983009808
      %v6500 = vunpack.c.0.s8 %v6499
      %v6501 = vlaneseq
      %v6502 = vshrl.u32 %v6501, 7
      %v6503 = vsub.s32 %v6500, %v6502
      %v6504 = vrot.slane %v6490, %v6503
      %v6505 = vcombine.low %v6449, %v6465
      %v6506 = vcombine.high %v6449, %v6465
      %v6508 = vunpack.c.l.s4 1934713408
      %v6509 = vunpack.c.0.s8 %v6508
      %v6510 = vlaneseq
      %v6511 = vshrl.u32 %v6510, 7
      %v6512 = vsub.s32 %v6509, %v6511
      %v6513 = vrot.slane %v6505, %v6512
      %v6515 = vunpack.c.l.s4 1934713408
      %v6516 = vunpack.c.0.s8 %v6515
      %v6517 = vlaneseq
      %v6518 = vshrl.u32 %v6517, 7
      %v6519 = vsub.s32 %v6516, %v6518
      %v6520 = vrot.slane %v6506, %v6519
      %v6521 = vcombine.low %v6456, %v6472
      %v6522 = vcombine.high %v6456, %v6472
      %v6524 = vunpack.c.l.s4 1934713408
      %v6525 = vunpack.c.0.s8 %v6524
      %v6526 = vlaneseq
      %v6527 = vshrl.u32 %v6526, 7
      %v6528 = vsub.s32 %v6525, %v6527
      %v6529 = vrot.slane %v6521, %v6528
      %v6531 = vunpack.c.l.s4 1934713408
      %v6532 = vunpack.c.0.s8 %v6531
      %v6533 = vlaneseq
      %v6534 = vshrl.u32 %v6533, 7
      %v6535 = vsub.s32 %v6532, %v6534
      %v6536 = vrot.slane %v6522, %v6535
      %v6537 = vcombine.low %v6481, %v6497
      %v6538 = vcombine.high %v6481, %v6497
      %v6540 = vunpack.c.l.s4 1934713408
      %v6541 = vunpack.c.0.s8 %v6540
      %v6542 = vlaneseq
      %v6543 = vshrl.u32 %v6542, 7
      %v6544 = vsub.s32 %v6541, %v6543
      %v6545 = vrot.slane %v6537, %v6544
      %v6547 = vunpack.c.l.s4 1934713408
      %v6548 = vunpack.c.0.s8 %v6547
      %v6549 = vlaneseq
      %v6550 = vshrl.u32 %v6549, 7
      %v6551 = vsub.s32 %v6548, %v6550
      %v6552 = vrot.slane %v6538, %v6551
      %v6553 = vcombine.low %v6488, %v6504
      %v6554 = vcombine.high %v6488, %v6504
      %v6556 = vunpack.c.l.s4 1934713408
      %v6557 = vunpack.c.0.s8 %v6556
      %v6558 = vlaneseq
      %v6559 = vshrl.u32 %v6558, 7
      %v6560 = vsub.s32 %v6557, %v6559
      %v6561 = vrot.slane %v6553, %v6560
      %v6563 = vunpack.c.l.s4 1934713408
      %v6564 = vunpack.c.0.s8 %v6563
      %v6565 = vlaneseq
      %v6566 = vshrl.u32 %v6565, 7
      %v6567 = vsub.s32 %v6564, %v6566
      %v6568 = vrot.slane %v6554, %v6567
      %v6569 = vcombine.low %v6513, %v6545
      %v6570 = vcombine.high %v6513, %v6545
      %v6571 = vcombine.low %v6520, %v6552
      %v6572 = vcombine.high %v6520, %v6552
      %v6573 = vcombine.low %v6529, %v6561
      %v6574 = vcombine.high %v6529, %v6561
      %v6575 = vcombine.low %v6536, %v6568
      %v6576 = vcombine.high %v6536, %v6568
      %v6577 = vcombine.low %v6425, %v6429
      %v6578 = vcombine.high %v6425, %v6429
      %v6580 = vunpack.c.l.s4 1983009808
      %v6581 = vunpack.c.0.s8 %v6580
      %v6582 = vlaneseq
      %v6583 = vshrl.u32 %v6582, 7
      %v6584 = vsub.s32 %v6581, %v6583
      %v6585 = vrot.slane %v6577, %v6584
      %v6587 = vunpack.c.l.s4 1983009808
      %v6588 = vunpack.c.0.s8 %v6587
      %v6589 = vlaneseq
      %v6590 = vshrl.u32 %v6589, 7
      %v6591 = vsub.s32 %v6588, %v6590
      %v6592 = vrot.slane %v6578, %v6591
      %v6593 = vcombine.low %v6427, %v6431
      %v6594 = vcombine.high %v6427, %v6431
      %v6596 = vunpack.c.l.s4 1983009808
      %v6597 = vunpack.c.0.s8 %v6596
      %v6598 = vlaneseq
      %v6599 = vshrl.u32 %v6598, 7
      %v6600 = vsub.s32 %v6597, %v6599
      %v6601 = vrot.slane %v6593, %v6600
      %v6603 = vunpack.c.l.s4 1983009808
      %v6604 = vunpack.c.0.s8 %v6603
      %v6605 = vlaneseq
      %v6606 = vshrl.u32 %v6605, 7
      %v6607 = vsub.s32 %v6604, %v6606
      %v6608 = vrot.slane %v6594, %v6607
      %v6609 = vcombine.low %v6433, %v6437
      %v6610 = vcombine.high %v6433, %v6437
      %v6612 = vunpack.c.l.s4 1983009808
      %v6613 = vunpack.c.0.s8 %v6612
      %v6614 = vlaneseq
      %v6615 = vshrl.u32 %v6614, 7
      %v6616 = vsub.s32 %v6613, %v6615
      %v6617 = vrot.slane %v6609, %v6616
      %v6619 = vunpack.c.l.s4 1983009808
      %v6620 = vunpack.c.0.s8 %v6619
      %v6621 = vlaneseq
      %v6622 = vshrl.u32 %v6621, 7
      %v6623 = vsub.s32 %v6620, %v6622
      %v6624 = vrot.slane %v6610, %v6623
      %v6625 = vcombine.low %v6435, %v6439
      %v6626 = vcombine.high %v6435, %v6439
      %v6628 = vunpack.c.l.s4 1983009808
      %v6629 = vunpack.c.0.s8 %v6628
      %v6630 = vlaneseq
      %v6631 = vshrl.u32 %v6630, 7
      %v6632 = vsub.s32 %v6629, %v6631
      %v6633 = vrot.slane %v6625, %v6632
      %v6635 = vunpack.c.l.s4 1983009808
      %v6636 = vunpack.c.0.s8 %v6635
      %v6637 = vlaneseq
      %v6638 = vshrl.u32 %v6637, 7
      %v6639 = vsub.s32 %v6636, %v6638
      %v6640 = vrot.slane %v6626, %v6639
      %v6641 = vcombine.low %v6585, %v6601
      %v6642 = vcombine.high %v6585, %v6601
      %v6644 = vunpack.c.l.s4 1934713408
      %v6645 = vunpack.c.0.s8 %v6644
      %v6646 = vlaneseq
      %v6647 = vshrl.u32 %v6646, 7
      %v6648 = vsub.s32 %v6645, %v6647
      %v6649 = vrot.slane %v6641, %v6648
      %v6651 = vunpack.c.l.s4 1934713408
      %v6652 = vunpack.c.0.s8 %v6651
      %v6653 = vlaneseq
      %v6654 = vshrl.u32 %v6653, 7
      %v6655 = vsub.s32 %v6652, %v6654
      %v6656 = vrot.slane %v6642, %v6655
      %v6657 = vcombine.low %v6592, %v6608
      %v6658 = vcombine.high %v6592, %v6608
      %v6660 = vunpack.c.l.s4 1934713408
      %v6661 = vunpack.c.0.s8 %v6660
      %v6662 = vlaneseq
      %v6663 = vshrl.u32 %v6662, 7
      %v6664 = vsub.s32 %v6661, %v6663
      %v6665 = vrot.slane %v6657, %v6664
      %v6667 = vunpack.c.l.s4 1934713408
      %v6668 = vunpack.c.0.s8 %v6667
      %v6669 = vlaneseq
      %v6670 = vshrl.u32 %v6669, 7
      %v6671 = vsub.s32 %v6668, %v6670
      %v6672 = vrot.slane %v6658, %v6671
      %v6673 = vcombine.low %v6617, %v6633
      %v6674 = vcombine.high %v6617, %v6633
      %v6676 = vunpack.c.l.s4 1934713408
      %v6677 = vunpack.c.0.s8 %v6676
      %v6678 = vlaneseq
      %v6679 = vshrl.u32 %v6678, 7
      %v6680 = vsub.s32 %v6677, %v6679
      %v6681 = vrot.slane %v6673, %v6680
      %v6683 = vunpack.c.l.s4 1934713408
      %v6684 = vunpack.c.0.s8 %v6683
      %v6685 = vlaneseq
      %v6686 = vshrl.u32 %v6685, 7
      %v6687 = vsub.s32 %v6684, %v6686
      %v6688 = vrot.slane %v6674, %v6687
      %v6689 = vcombine.low %v6624, %v6640
      %v6690 = vcombine.high %v6624, %v6640
      %v6692 = vunpack.c.l.s4 1934713408
      %v6693 = vunpack.c.0.s8 %v6692
      %v6694 = vlaneseq
      %v6695 = vshrl.u32 %v6694, 7
      %v6696 = vsub.s32 %v6693, %v6695
      %v6697 = vrot.slane %v6689, %v6696
      %v6699 = vunpack.c.l.s4 1934713408
      %v6700 = vunpack.c.0.s8 %v6699
      %v6701 = vlaneseq
      %v6702 = vshrl.u32 %v6701, 7
      %v6703 = vsub.s32 %v6700, %v6702
      %v6704 = vrot.slane %v6690, %v6703
      %v6705 = vcombine.low %v6649, %v6681
      %v6706 = vcombine.high %v6649, %v6681
      %v6707 = vcombine.low %v6656, %v6688
      %v6708 = vcombine.high %v6656, %v6688
      %v6709 = vcombine.low %v6665, %v6697
      %v6710 = vcombine.high %v6665, %v6697
      %v6711 = vcombine.low %v6672, %v6704
      %v6712 = vcombine.high %v6672, %v6704
      %v6713 = vcombine.low %v6410, %v6414
      %v6714 = vcombine.high %v6410, %v6414
      %v6716 = vunpack.c.l.s4 1983009808
      %v6717 = vunpack.c.0.s8 %v6716
      %v6718 = vlaneseq
      %v6719 = vshrl.u32 %v6718, 7
      %v6720 = vsub.s32 %v6717, %v6719
      %v6721 = vrot.slane %v6713, %v6720
      %v6723 = vunpack.c.l.s4 1983009808
      %v6724 = vunpack.c.0.s8 %v6723
      %v6725 = vlaneseq
      %v6726 = vshrl.u32 %v6725, 7
      %v6727 = vsub.s32 %v6724, %v6726
      %v6728 = vrot.slane %v6714, %v6727
      %v6729 = vcombine.low %v6412, %v6416
      %v6730 = vcombine.high %v6412, %v6416
      %v6732 = vunpack.c.l.s4 1983009808
      %v6733 = vunpack.c.0.s8 %v6732
      %v6734 = vlaneseq
      %v6735 = vshrl.u32 %v6734, 7
      %v6736 = vsub.s32 %v6733, %v6735
      %v6737 = vrot.slane %v6729, %v6736
      %v6739 = vunpack.c.l.s4 1983009808
      %v6740 = vunpack.c.0.s8 %v6739
      %v6741 = vlaneseq
      %v6742 = vshrl.u32 %v6741, 7
      %v6743 = vsub.s32 %v6740, %v6742
      %v6744 = vrot.slane %v6730, %v6743
      %v6745 = vcombine.low %v6418, %v6422
      %v6746 = vcombine.high %v6418, %v6422
      %v6748 = vunpack.c.l.s4 1983009808
      %v6749 = vunpack.c.0.s8 %v6748
      %v6750 = vlaneseq
      %v6751 = vshrl.u32 %v6750, 7
      %v6752 = vsub.s32 %v6749, %v6751
      %v6753 = vrot.slane %v6745, %v6752
      %v6755 = vunpack.c.l.s4 1983009808
      %v6756 = vunpack.c.0.s8 %v6755
      %v6757 = vlaneseq
      %v6758 = vshrl.u32 %v6757, 7
      %v6759 = vsub.s32 %v6756, %v6758
      %v6760 = vrot.slane %v6746, %v6759
      %v6761 = vcombine.low %v6420, %v6424
      %v6762 = vcombine.high %v6420, %v6424
      %v6764 = vunpack.c.l.s4 1983009808
      %v6765 = vunpack.c.0.s8 %v6764
      %v6766 = vlaneseq
      %v6767 = vshrl.u32 %v6766, 7
      %v6768 = vsub.s32 %v6765, %v6767
      %v6769 = vrot.slane %v6761, %v6768
      %v6771 = vunpack.c.l.s4 1983009808
      %v6772 = vunpack.c.0.s8 %v6771
      %v6773 = vlaneseq
      %v6774 = vshrl.u32 %v6773, 7
      %v6775 = vsub.s32 %v6772, %v6774
      %v6776 = vrot.slane %v6762, %v6775
      %v6777 = vcombine.low %v6721, %v6737
      %v6778 = vcombine.high %v6721, %v6737
      %v6780 = vunpack.c.l.s4 1934713408
      %v6781 = vunpack.c.0.s8 %v6780
      %v6782 = vlaneseq
      %v6783 = vshrl.u32 %v6782, 7
      %v6784 = vsub.s32 %v6781, %v6783
      %v6785 = vrot.slane %v6777, %v6784
      %v6787 = vunpack.c.l.s4 1934713408
      %v6788 = vunpack.c.0.s8 %v6787
      %v6789 = vlaneseq
      %v6790 = vshrl.u32 %v6789, 7
      %v6791 = vsub.s32 %v6788, %v6790
      %v6792 = vrot.slane %v6778, %v6791
      %v6793 = vcombine.low %v6728, %v6744
      %v6794 = vcombine.high %v6728, %v6744
      %v6796 = vunpack.c.l.s4 1934713408
      %v6797 = vunpack.c.0.s8 %v6796
      %v6798 = vlaneseq
      %v6799 = vshrl.u32 %v6798, 7
      %v6800 = vsub.s32 %v6797, %v6799
      %v6801 = vrot.slane %v6793, %v6800
      %v6803 = vunpack.c.l.s4 1934713408
      %v6804 = vunpack.c.0.s8 %v6803
      %v6805 = vlaneseq
      %v6806 = vshrl.u32 %v6805, 7
      %v6807 = vsub.s32 %v6804, %v6806
      %v6808 = vrot.slane %v6794, %v6807
      %v6809 = vcombine.low %v6753, %v6769
      %v6810 = vcombine.high %v6753, %v6769
      %v6812 = vunpack.c.l.s4 1934713408
      %v6813 = vunpack.c.0.s8 %v6812
      %v6814 = vlaneseq
      %v6815 = vshrl.u32 %v6814, 7
      %v6816 = vsub.s32 %v6813, %v6815
      %v6817 = vrot.slane %v6809, %v6816
      %v6819 = vunpack.c.l.s4 1934713408
      %v6820 = vunpack.c.0.s8 %v6819
      %v6821 = vlaneseq
      %v6822 = vshrl.u32 %v6821, 7
      %v6823 = vsub.s32 %v6820, %v6822
      %v6824 = vrot.slane %v6810, %v6823
      %v6825 = vcombine.low %v6760, %v6776
      %v6826 = vcombine.high %v6760, %v6776
      %v6828 = vunpack.c.l.s4 1934713408
      %v6829 = vunpack.c.0.s8 %v6828
      %v6830 = vlaneseq
      %v6831 = vshrl.u32 %v6830, 7
      %v6832 = vsub.s32 %v6829, %v6831
      %v6833 = vrot.slane %v6825, %v6832
      %v6835 = vunpack.c.l.s4 1934713408
      %v6836 = vunpack.c.0.s8 %v6835
      %v6837 = vlaneseq
      %v6838 = vshrl.u32 %v6837, 7
      %v6839 = vsub.s32 %v6836, %v6838
      %v6840 = vrot.slane %v6826, %v6839
      %v6841 = vcombine.low %v6785, %v6817
      %v6842 = vcombine.high %v6785, %v6817
      %v6843 = vcombine.low %v6792, %v6824
      %v6844 = vcombine.high %v6792, %v6824
      %v6845 = vcombine.low %v6801, %v6833
      %v6846 = vcombine.high %v6801, %v6833
      %v6847 = vcombine.low %v6808, %v6840
      %v6848 = vcombine.high %v6808, %v6840
      %v6849 = vcombine.low %v6426, %v6430
      %v6850 = vcombine.high %v6426, %v6430
      %v6852 = vunpack.c.l.s4 1983009808
      %v6853 = vunpack.c.0.s8 %v6852
      %v6854 = vlaneseq
      %v6855 = vshrl.u32 %v6854, 7
      %v6856 = vsub.s32 %v6853, %v6855
      %v6857 = vrot.slane %v6849, %v6856
      %v6859 = vunpack.c.l.s4 1983009808
      %v6860 = vunpack.c.0.s8 %v6859
      %v6861 = vlaneseq
      %v6862 = vshrl.u32 %v6861, 7
      %v6863 = vsub.s32 %v6860, %v6862
      %v6864 = vrot.slane %v6850, %v6863
      %v6865 = vcombine.low %v6428, %v6432
      %v6866 = vcombine.high %v6428, %v6432
      %v6868 = vunpack.c.l.s4 1983009808
      %v6869 = vunpack.c.0.s8 %v6868
      %v6870 = vlaneseq
      %v6871 = vshrl.u32 %v6870, 7
      %v6872 = vsub.s32 %v6869, %v6871
      %v6873 = vrot.slane %v6865, %v6872
      %v6875 = vunpack.c.l.s4 1983009808
      %v6876 = vunpack.c.0.s8 %v6875
      %v6877 = vlaneseq
      %v6878 = vshrl.u32 %v6877, 7
      %v6879 = vsub.s32 %v6876, %v6878
      %v6880 = vrot.slane %v6866, %v6879
      %v6881 = vcombine.low %v6434, %v6438
      %v6882 = vcombine.high %v6434, %v6438
      %v6884 = vunpack.c.l.s4 1983009808
      %v6885 = vunpack.c.0.s8 %v6884
      %v6886 = vlaneseq
      %v6887 = vshrl.u32 %v6886, 7
      %v6888 = vsub.s32 %v6885, %v6887
      %v6889 = vrot.slane %v6881, %v6888
      %v6891 = vunpack.c.l.s4 1983009808
      %v6892 = vunpack.c.0.s8 %v6891
      %v6893 = vlaneseq
      %v6894 = vshrl.u32 %v6893, 7
      %v6895 = vsub.s32 %v6892, %v6894
      %v6896 = vrot.slane %v6882, %v6895
      %v6897 = vcombine.low %v6436, %v6440
      %v6898 = vcombine.high %v6436, %v6440
      %v6900 = vunpack.c.l.s4 1983009808
      %v6901 = vunpack.c.0.s8 %v6900
      %v6902 = vlaneseq
      %v6903 = vshrl.u32 %v6902, 7
      %v6904 = vsub.s32 %v6901, %v6903
      %v6905 = vrot.slane %v6897, %v6904
      %v6907 = vunpack.c.l.s4 1983009808
      %v6908 = vunpack.c.0.s8 %v6907
      %v6909 = vlaneseq
      %v6910 = vshrl.u32 %v6909, 7
      %v6911 = vsub.s32 %v6908, %v6910
      %v6912 = vrot.slane %v6898, %v6911
      %v6913 = vcombine.low %v6857, %v6873
      %v6914 = vcombine.high %v6857, %v6873
      %v6916 = vunpack.c.l.s4 1934713408
      %v6917 = vunpack.c.0.s8 %v6916
      %v6918 = vlaneseq
      %v6919 = vshrl.u32 %v6918, 7
      %v6920 = vsub.s32 %v6917, %v6919
      %v6921 = vrot.slane %v6913, %v6920
      %v6923 = vunpack.c.l.s4 1934713408
      %v6924 = vunpack.c.0.s8 %v6923
      %v6925 = vlaneseq
      %v6926 = vshrl.u32 %v6925, 7
      %v6927 = vsub.s32 %v6924, %v6926
      %v6928 = vrot.slane %v6914, %v6927
      %v6929 = vcombine.low %v6864, %v6880
      %v6930 = vcombine.high %v6864, %v6880
      %v6932 = vunpack.c.l.s4 1934713408
      %v6933 = vunpack.c.0.s8 %v6932
      %v6934 = vlaneseq
      %v6935 = vshrl.u32 %v6934, 7
      %v6936 = vsub.s32 %v6933, %v6935
      %v6937 = vrot.slane %v6929, %v6936
      %v6939 = vunpack.c.l.s4 1934713408
      %v6940 = vunpack.c.0.s8 %v6939
      %v6941 = vlaneseq
      %v6942 = vshrl.u32 %v6941, 7
      %v6943 = vsub.s32 %v6940, %v6942
      %v6944 = vrot.slane %v6930, %v6943
      %v6945 = vcombine.low %v6889, %v6905
      %v6946 = vcombine.high %v6889, %v6905
      %v6948 = vunpack.c.l.s4 1934713408
      %v6949 = vunpack.c.0.s8 %v6948
      %v6950 = vlaneseq
      %v6951 = vshrl.u32 %v6950, 7
      %v6952 = vsub.s32 %v6949, %v6951
      %v6953 = vrot.slane %v6945, %v6952
      %v6955 = vunpack.c.l.s4 1934713408
      %v6956 = vunpack.c.0.s8 %v6955
      %v6957 = vlaneseq
      %v6958 = vshrl.u32 %v6957, 7
      %v6959 = vsub.s32 %v6956, %v6958
      %v6960 = vrot.slane %v6946, %v6959
      %v6961 = vcombine.low %v6896, %v6912
      %v6962 = vcombine.high %v6896, %v6912
      %v6964 = vunpack.c.l.s4 1934713408
      %v6965 = vunpack.c.0.s8 %v6964
      %v6966 = vlaneseq
      %v6967 = vshrl.u32 %v6966, 7
      %v6968 = vsub.s32 %v6965, %v6967
      %v6969 = vrot.slane %v6961, %v6968
      %v6971 = vunpack.c.l.s4 1934713408
      %v6972 = vunpack.c.0.s8 %v6971
      %v6973 = vlaneseq
      %v6974 = vshrl.u32 %v6973, 7
      %v6975 = vsub.s32 %v6972, %v6974
      %v6976 = vrot.slane %v6962, %v6975
      %v6977 = vcombine.low %v6921, %v6953
      %v6978 = vcombine.high %v6921, %v6953
      %v6979 = vcombine.low %v6928, %v6960
      %v6980 = vcombine.high %v6928, %v6960
      %v6981 = vcombine.low %v6937, %v6969
      %v6982 = vcombine.high %v6937, %v6969
      %v6983 = vcombine.low %v6944, %v6976
      %v6984 = vcombine.high %v6944, %v6976
      %6987 = vrot.lane.b32.xlu0 %v6570, 32
      %v6988 = vpop.permute.xlu0 %6987
      %6989 = vrot.lane.b32.xlu0 %v6706, 32
      %v6990 = vpop.permute.xlu0 %6989
      %6995 = vrot.lane.b32.xlu0 %v6571, 64
      %v6996 = vpop.permute.xlu0 %6995
      %6997 = vrot.lane.b32.xlu0 %v6707, 64
      %v6998 = vpop.permute.xlu0 %6997
      %7003 = vrot.lane.b32.xlu0 %v6572, 96
      %v7004 = vpop.permute.xlu0 %7003
      %7005 = vrot.lane.b32.xlu0 %v6708, 96
      %v7006 = vpop.permute.xlu0 %7005
      %7011 = vrot.lane.b32.xlu0 %v6574, 32
      %v7012 = vpop.permute.xlu0 %7011
      %7013 = vrot.lane.b32.xlu0 %v6710, 32
      %v7014 = vpop.permute.xlu0 %7013
      %7019 = vrot.lane.b32.xlu0 %v6575, 64
      %v7020 = vpop.permute.xlu0 %7019
      %7021 = vrot.lane.b32.xlu0 %v6711, 64
      %v7022 = vpop.permute.xlu0 %7021
      %7027 = vrot.lane.b32.xlu0 %v6576, 96
      %v7028 = vpop.permute.xlu0 %7027
      %7029 = vrot.lane.b32.xlu0 %v6712, 96
      %v7030 = vpop.permute.xlu0 %7029
      %7035 = vrot.lane.b32.xlu0 %v6842, 32
      %v7036 = vpop.permute.xlu0 %7035
      %7037 = vrot.lane.b32.xlu0 %v6978, 32
      %v7038 = vpop.permute.xlu0 %7037
      %7043 = vrot.lane.b32.xlu0 %v6843, 64
      %v7044 = vpop.permute.xlu0 %7043
      %7045 = vrot.lane.b32.xlu0 %v6979, 64
      %v7046 = vpop.permute.xlu0 %7045
      %7051 = vrot.lane.b32.xlu0 %v6844, 96
      %v7052 = vpop.permute.xlu0 %7051
      %7053 = vrot.lane.b32.xlu0 %v6980, 96
      %v7054 = vpop.permute.xlu0 %7053
      %7059 = vrot.lane.b32.xlu0 %v6846, 32
      %v7060 = vpop.permute.xlu0 %7059
      %7061 = vrot.lane.b32.xlu0 %v6982, 32
      %v7062 = vpop.permute.xlu0 %7061
      %7067 = vrot.lane.b32.xlu0 %v6847, 64
      %v7068 = vpop.permute.xlu0 %7067
      %7069 = vrot.lane.b32.xlu0 %v6983, 64
      %v7070 = vpop.permute.xlu0 %7069
      %7075 = vrot.lane.b32.xlu0 %v6848, 96
      %v7076 = vpop.permute.xlu0 %7075
      %7077 = vrot.lane.b32.xlu0 %v6984, 96
      %v7078 = vpop.permute.xlu0 %7077
      %v7081 = vsel %vm2210, %v6569, %v6988
      %v7082 = vsel %vm2210, %v6705, %v6990
      %v7083 = vsel %vm2128, %v7081, %v6996
      %v7084 = vsel %vm2128, %v7082, %v6998
      %v7085 = vsel %vm2047, %v7083, %v7004
      %v7086 = vsel %vm2047, %v7084, %v7006
      %v7087 = vsel %vm2210, %v6573, %v7012
      %v7088 = vsel %vm2210, %v6709, %v7014
      %v7089 = vsel %vm2128, %v7087, %v7020
      %v7090 = vsel %vm2128, %v7088, %v7022
      %v7091 = vsel %vm2047, %v7089, %v7028
      %v7092 = vsel %vm2047, %v7090, %v7030
      %v7093 = vsel %vm2210, %v6841, %v7036
      %v7094 = vsel %vm2210, %v6977, %v7038
      %v7095 = vsel %vm2128, %v7093, %v7044
      %v7096 = vsel %vm2128, %v7094, %v7046
      %v7097 = vsel %vm2047, %v7095, %v7052
      %v7098 = vsel %vm2047, %v7096, %v7054
      %v7099 = vsel %vm2210, %v6845, %v7060
      %v7100 = vsel %vm2210, %v6981, %v7062
      %v7101 = vsel %vm2128, %v7099, %v7068
      %v7102 = vsel %vm2128, %v7100, %v7070
      %v7103 = vsel %vm2047, %v7101, %v7076
      %v7104 = vsel %vm2047, %v7102, %v7078
      %7105 = vst [vmem:[%s251] sm:$0xff] %v7085
      %7106 = vst [vmem:[%s251 + $0x8] sm:$0xff] %v7091
      %7107 = vst [vmem:[%s251 + $0x10] sm:$0xff] %v7097
      %7108 = vst [vmem:[%s251 + $0x18] sm:$0xff] %v7103
      %7109 = vst [vmem:[%s251 + $0x20] sm:$0xff] %v7086
      %7110 = vst [vmem:[%s251 + $0x28] sm:$0xff] %v7092
      %7111 = vst [vmem:[%s251 + $0x30] sm:$0xff] %v7098
      %7112 = vst [vmem:[%s251 + $0x38] sm:$0xff] %v7104
      %p7113 = scmp.lt.s32.totalorder %s17, 1
      %s7114 = scalar_select %p7113, %s17, 1
      %s7115 = smul.addr %s7114, 8
      %s7116 = smul.addr %s7115, 8
      %s7117 = scalar_lea.vmem %s6, %s7116
      // Predicated region
      $region45: #{bottleneck_block_rs1.1} parent=43 // pred_check
        %p7118 = pneg %p166
      $region46: #{bottleneck_block_rs1.1} parent=43 // pred_check_branch
        %7120 = sbr.rel (%p7118) target = $region48
      $region47: #{bottleneck_block_rs1.1} parent=43 // pred_region
        _
      $region48: #{bottleneck_block_rs1.1} parent=43 // pred_fallthru
        _
    $region44: #{bottleneck_block_rs1.1} parent=5 // pred_fallthru
      _
    %p7121 = scmp.le.s32.totalorder 2, %s12
    // Predicated region
    $region49: #{bottleneck_block_rs1.1} parent=5 // pred_check
      %p7122 = pneg %p7121
    $region50: #{bottleneck_block_rs1.1} parent=5 // pred_check_branch
      %7124 = sbr.rel (%p7122) target = $region52
    $region51: #{bottleneck_block_rs1.1} parent=5 // pred_region
      %s7125 = ssub.s32 %s12, 2
      // Predicated region
      $region53: #{bottleneck_block_rs1.1} parent=51 // pred_check
        %p7126 = pneg %p172
      $region54: #{bottleneck_block_rs1.1} parent=51 // pred_check_branch
        %7128 = sbr.rel (%p7126) target = $region56
      $region55: #{bottleneck_block_rs1.1} parent=51 // pred_region
        %p7129 = scmp.lt.s32.totalorder %s18, 1
        %s7130 = scalar_select %p7129, %s18, 1
        %s7131 = smul.addr %s7130, 8
        %s7132 = smul.addr %s7131, 8
        %s7133 = scalar_lea.vmem %s6, %s7132
      $region56: #{bottleneck_block_rs1.1} parent=51 // pred_fallthru
        _
    $region52: #{bottleneck_block_rs1.1} parent=5 // pred_fallthru
      _
  $region6: #{bottleneck_block_rs1.1} parent=0 // loop_footer
    %s16 = sadd.s32 1, %s12
  $region7: #{bottleneck_block_rs1.1} parent=0 // loop_footer_branch
    %11 = sbr.rel target = $region3
  $region8: #{bottleneck_block_rs1.1} parent=0 // loop_exit
    _

</llo_original>
